<compile_context>
chip_gen: v7x
topology: tpu7x:2x2x1
jax: 0.10.0
libtpu: 0.0.40
codegen_flags: <defaults>
</compile_context>

<pallas_src>
import functools

import jax
import jax.numpy as jnp
from jax.experimental import pallas as pl
from jax.experimental.pallas import tpu as pltpu


def _bilinear_matrix(in_size: int, out_size: int) -> jnp.ndarray:
    """Row-interpolation matrix A (out_size, in_size) matching PyTorch
    F.interpolate(..., mode='bilinear', align_corners=False)."""
    scale = in_size / out_size
    dst = jnp.arange(out_size, dtype=jnp.float32)
    src = (dst + 0.5) * scale - 0.5
    src = jnp.maximum(src, 0.0)                       # PyTorch clamps negatives
    i0 = jnp.floor(src).astype(jnp.int32)
    i0 = jnp.minimum(i0, in_size - 1)
    i1 = jnp.minimum(i0 + 1, in_size - 1)
    lam = src - i0.astype(jnp.float32)
    rows = jnp.arange(out_size)
    A = jnp.zeros((out_size, in_size), jnp.float32)
    A = A.at[rows, i0].add(1.0 - lam)
    A = A.at[rows, i1].add(lam)
    return A


def _pick_batch_block(N: int, H: int, W: int, C: int) -> int:
    """Images per grid step.  Batching amortizes the per-step Pallas overhead
    (this head is step-overhead bound, not MXU bound), while keeping >=2
    parallel grid steps when N allows it (v7x has 2 TensorCores) and capping
    the per-step im2col block so the VMEM working set stays far below every
    generation's scoped default."""
    bytes_per_image = H * W * 9 * C * 2            # bf16 im2col rows per image
    nb = max(1, min(N, (4 << 20) // max(1, bytes_per_image)))
    if N >= 2:
        nb = min(nb, max(1, N // 2))               # leave >=2 steps for v7x
    while N % nb:                                  # blocks must tile N evenly
        nb -= 1
    return nb


def conv_head_kernel(patch_ref, w3_ref, scale_ref, bias_ref, w1_ref, out_ref):
    """Per batch-block: 3x3 conv (one deep im2col matmul) + folded BN + ReLU6
    + 1x1 conv.

    patch_ref: (Nb*H*W, 9*C)  wrapper-built im2col patches (bf16)
    w3_ref   : (9*C, C)       im2col 3x3 weights, rows = (tap, c_in)  (bf16)
    scale_ref: (1, C)         folded BN scale  (f32)
    bias_ref : (1, C)         folded BN bias   (f32)
    w1_ref   : (C, K)         1x1 conv weights (bf16)
    out_ref  : (Nb*H*W, K)    class logits at low resolution (f32)
    """
    # Single deep-contraction MXU matmul (contraction depth 9*C), f32 accum.
    acc = jnp.dot(patch_ref[...], w3_ref[...],
                  preferred_element_type=jnp.float32)        # (rows, C) f32

    # Folded BatchNorm (eval mode) + ReLU6 on the VPU in f32.
    feat = jnp.clip(acc * scale_ref[...] + bias_ref[...], 0.0, 6.0)
    # TODO(synk): nn.Dropout(0.1) is identity at inference; train-mode dropout
    # (pltpu.prng_*) not implemented here.

    # 1x1 conv to num_classes (bf16 x bf16 -> f32 accumulate).
    out_ref[...] = jnp.dot(feat.astype(jnp.bfloat16), w1_ref[...],
                           preferred_element_type=jnp.float32)


def upsample_kernel(l_ref, ah_ref, bw_ref, out_ref, *, nb, H, h):
    """Per batch-block separable bilinear upsample (align_corners=False),
    width expansion FIRST (on the low-res H rows), then height.

    l_ref  : (Nb*H, W*K)   low-res logits, lane-dense (f32)
    ah_ref : (h, H)        height interpolation operator (bf16)
    bw_ref : (W*K, w*K)    width operator kron(Aw^T, I_K) (bf16)
    out_ref: (Nb*h, w*K)   upsampled logits, lane-dense (f32)
    """
    # Width matmul on H rows (cheaper than after the height expansion).
    up_w = jnp.dot(l_ref[...].astype(jnp.bfloat16), bw_ref[...],
                   preferred_element_type=jnp.float32)        # (Nb*H, w*K)
    up_w = up_w.astype(jnp.bfloat16)
    ah = ah_ref[...]
    # Height matmul per image (nb is a small static int -> unrolled; offsets
    # are static multiples of the sublane tile).
    for n in range(nb):
        out_ref[pl.ds(n * h, h), :] = jnp.dot(
            ah, up_w[n * H:(n + 1) * H, :],
            preferred_element_type=jnp.float32)               # (h, w*K)


def aux_head_forward(x_nchw, h, w, w3_oihw, gamma, beta, running_mean,
                     running_var, w1_oihw, eps=1e-5):
    N, C, H, W = x_nchw.shape
    K = w1_oihw.shape[0]

    nb = _pick_batch_block(N, H, W, C)
    num_blocks = N // nb
    rows = nb * H * W

    # ---- glue / parameter prep (plain JAX; fused by XLA under jit) ----
    # NCHW -> NHWC, bf16 cast, 1px zero halo, and wrapper-side im2col.  The 9
    # shifted slices + concat are fused copies in XLA; feeding (rows, 9C)
    # directly removes the in-kernel slice/concat/reshape relayout traffic.
    x_nhwc = jnp.transpose(x_nchw, (0, 2, 3, 1)).astype(jnp.bfloat16)
    xpad = jnp.pad(x_nhwc, ((0, 0), (1, 1), (1, 1), (0, 0)))
    taps = [xpad[:, dy:dy + H, dx:dx + W, :]
            for dy in range(3) for dx in range(3)]
    patches = jnp.concatenate(taps, axis=-1).reshape(N * H * W, 9 * C)

    # 3x3 weights OIHW -> (kh, kw, in, out) -> (9*C_in, C_out), matching the
    # im2col column order (tap-major, then input channel).
    w3 = jnp.transpose(w3_oihw, (2, 3, 1, 0)).reshape(9 * C, C)
    w3 = w3.astype(jnp.bfloat16)

    # Fold eval-mode BatchNorm into per-channel scale/bias (kept f32).
    inv_std = 1.0 / jnp.sqrt(running_var + eps)
    scale = (gamma * inv_std).reshape(1, C).astype(jnp.float32)
    bias = (beta - running_mean * gamma * inv_std).reshape(1, C)
    bias = bias.astype(jnp.float32)

    # 1x1 conv weight (K, C, 1, 1) -> (C, K)
    w1 = jnp.transpose(w1_oihw.reshape(K, C), (1, 0)).astype(jnp.bfloat16)

    # Separable bilinear operators (align_corners=False).  The width operator
    # Bw = kron(Aw^T, I_K) keeps the width contraction a lane-dense 2-D MXU
    # matmul on the (.., W*K) layout; K=8 makes the K^2 inflation negligible.
    # At large K, tile Bw along its output columns instead (extra grid axis)
    # and set vmem_limit_bytes, so the working set also fits v7x's 64 MiB.
    Ah = _bilinear_matrix(H, h).astype(jnp.bfloat16)
    Aw = _bilinear_matrix(W, w)
    Bw = jnp.kron(Aw.T, jnp.eye(K, dtype=jnp.float32)).astype(jnp.bfloat16)

    # ---- pallas_call #1: conv + BN + ReLU6 + 1x1 conv (Nb images / step) ----
    logits = pl.pallas_call(
        conv_head_kernel,
        out_shape=jax.ShapeDtypeStruct((N * H * W, K), jnp.float32),
        grid_spec=pltpu.PrefetchScalarGridSpec(
            num_scalar_prefetch=0,
            grid=(num_blocks,),
            in_specs=[
                pl.BlockSpec((rows, 9 * C), lambda b: (b, 0)),
                # Grid-invariant operands (constant index_map).  <0.4 MiB
                # total here; switch to pipeline_mode=pl.Buffered(1) when
                # these grow (halves their VMEM reservation).
                pl.BlockSpec((9 * C, C), lambda b: (0, 0)),
                pl.BlockSpec((1, C), lambda b: (0, 0)),
                pl.BlockSpec((1, C), lambda b: (0, 0)),
                pl.BlockSpec((C, K), lambda b: (0, 0)),
            ],
            out_specs=pl.BlockSpec((rows, K), lambda b: (b, 0)),
        ),
        compiler_params=pltpu.CompilerParams(
            dimension_semantics=("parallel",)),
    )(patches, w3, scale, bias, w1)

    # Free, contiguous re-layout in HBM: (N*H*W, K) === (N*H, W*K).  This is
    # why the upsample stays a second (tiny) pallas_call: the lane-dim change
    # is free between calls but a risky relayout inside one.
    logits_2d = logits.reshape(N * H, W * K)

    # ---- pallas_call #2: separable bilinear upsample (Nb images / step) ----
    up_kernel = functools.partial(upsample_kernel, nb=nb, H=H, h=h)
    out2d = pl.pallas_call(
        up_kernel,
        out_shape=jax.ShapeDtypeStruct((N * h, w * K), jnp.float32),
        grid_spec=pltpu.PrefetchScalarGridSpec(
            num_scalar_prefetch=0,
            grid=(num_blocks,),
            in_specs=[
                pl.BlockSpec((nb * H, W * K), lambda b: (b, 0)),
                pl.BlockSpec((h, H), lambda b: (0, 0)),
                pl.BlockSpec((W * K, w * K), lambda b: (0, 0)),
            ],
            out_specs=pl.BlockSpec((nb * h, w * K), lambda b: (b, 0)),
        ),
        compiler_params=pltpu.CompilerParams(
            dimension_semantics=("parallel",)),
    )(logits_2d, Ah, Bw)

    # (N*h, w*K) -> (N, h, w, K) -> NCHW.  f32 NCHW kept to match the PyTorch
    # reference; emit bf16 / NHWC here to halve the dominant output write if
    # the consumer allows it.
    out = out2d.reshape(N, h, w, K)
    return jnp.transpose(out, (0, 3, 1, 2))


def _reference_forward(x, h, w, w3, gamma, beta, mean, var, w1, eps=1e-5):
    """Pure-f32 JAX reference (no Pallas, no bf16) for a tolerance check."""
    feat = jax.lax.conv_general_dilated(
        x, w3, window_strides=(1, 1), padding=((1, 1), (1, 1)),
        dimension_numbers=("NCHW", "OIHW", "NCHW"))
    inv = 1.0 / jnp.sqrt(var + eps)
    feat = (feat - mean[None, :, None, None]) * (gamma * inv)[None, :, None, None] \
        + beta[None, :, None, None]
    feat = jnp.clip(feat, 0.0, 6.0)
    logits = jax.lax.conv_general_dilated(
        feat, w1, window_strides=(1, 1), padding=((0, 0), (0, 0)),
        dimension_numbers=("NCHW", "OIHW", "NCHW"))
    N, K = logits.shape[0], logits.shape[1]
    return jax.image.resize(logits, (N, K, h, w), method="bilinear")


if __name__ == "__main__":
    # Shapes consistent with AuxHead(in_channels=64, num_classes=8).  N=4 so
    # the batch-blocking path (Nb=2 images per step, 2 parallel steps) is
    # actually exercised.
    N, C, H, W = 4, 64, 16, 16
    num_classes = 8
    h_out, w_out = 32, 32   # interpolate target (h, w)

    key = jax.random.PRNGKey(0)
    keys = jax.random.split(key, 7)
    x = jax.random.normal(keys[0], (N, C, H, W), jnp.float32)

    # Deterministic synthetic parameters (shapes from the module __init__).
    w3 = 0.05 * jax.random.normal(keys[1], (C, C, 3, 3), jnp.float32)      # OIHW
    gamma = 1.0 + 0.1 * jax.random.normal(keys[2], (C,), jnp.float32)
    beta = 0.1 * jax.random.normal(keys[3], (C,), jnp.float32)
    running_mean = 0.1 * jax.random.normal(keys[4], (C,), jnp.float32)
    running_var = 0.5 + jnp.abs(jax.random.normal(keys[5], (C,), jnp.float32))
    w1 = 0.05 * jax.random.normal(keys[6], (num_classes, C, 1, 1), jnp.float32)

    fwd = jax.jit(aux_head_forward, static_argnums=(1, 2))
    out = jax.block_until_ready(fwd(x, h_out, w_out, w3, gamma, beta,
                                    running_mean, running_var, w1))
    assert out.shape == (N, num_classes, h_out, w_out), out.shape
    assert bool(jnp.all(jnp.isfinite(out)))

    # Tolerance check against the pure-f32 reference (bf16 MXU path deviates
    # at the ~1e-2 absolute level on these magnitudes).
    ref = jax.block_until_ready(
        _reference_forward(x, h_out, w_out, w3, gamma, beta, running_mean,
                           running_var, w1))
    max_err = float(jnp.max(jnp.abs(out - ref)))
    assert max_err < 1e-1, f"max abs err vs f32 reference: {max_err}"

    print("KERNEL_OK")
</pallas_src>

<mosaic_0001>
module attributes {stable_mosaic.version = 11 : i64} {
  func.func private @main(%arg0: i32) attributes {dimension_semantics = [#tpu.dimension_semantics<core_parallel>], iteration_bounds = array<i64: 2>, tpu.core_type = #tpu.core_type<sc_scalar_subcore>, window_params = []} {
    return
  }
}

module attributes {stable_mosaic.version = 11 : i64} {
  func.func private @main(%arg0: i32) attributes {dimension_semantics = [#tpu.dimension_semantics<core_parallel>], iteration_bounds = array<i64: 2>, tpu.core_type = #tpu.core_type<sc_scalar_subcore>, window_params = []} {
    return
  }
}

module attributes {stable_mosaic.version = 11 : i64} {
  func.func @conv_head_kernel(%arg0: i32, %arg1: memref<512x576xbf16, #tpu.memory_space<vmem>>, %arg2: memref<576x64xbf16, #tpu.memory_space<vmem>>, %arg3: memref<1x64xf32, #tpu.memory_space<vmem>>, %arg4: memref<1x64xf32, #tpu.memory_space<vmem>>, %arg5: memref<64x8xbf16, #tpu.memory_space<vmem>>, %arg6: memref<512x8xf32, #tpu.memory_space<vmem>>) attributes {dimension_semantics = [#tpu.dimension_semantics<parallel>], iteration_bounds = array<i64: 2>, scalar_prefetch = 0 : i64, scratch_operands = 0 : i64, tpu.core_type = #tpu.core_type<tc>, window_params = [{transform_indices = @transform_0, window_bounds = array<i64: 512, 576>}, {pipeline_mode = #tpu.pipeline_mode<synchronous>, transform_indices = @transform_1, window_bounds = array<i64: 576, 64>}, {pipeline_mode = #tpu.pipeline_mode<synchronous>, transform_indices = @transform_2, window_bounds = array<i64: 1, 64>}, {pipeline_mode = #tpu.pipeline_mode<synchronous>, transform_indices = @transform_3, window_bounds = array<i64: 1, 64>}, {pipeline_mode = #tpu.pipeline_mode<synchronous>, transform_indices = @transform_4, window_bounds = array<i64: 64, 8>}, {transform_indices = @transform_5, window_bounds = array<i64: 512, 8>}]} {
    %c0 = arith.constant 0 : index
    %c0_0 = arith.constant 0 : index
    %0 = vector.load %arg1[%c0, %c0_0] : memref<512x576xbf16, #tpu.memory_space<vmem>>, vector<512x576xbf16>
    %c0_1 = arith.constant 0 : index
    %c0_2 = arith.constant 0 : index
    %1 = vector.load %arg2[%c0_1, %c0_2] : memref<576x64xbf16, #tpu.memory_space<vmem>>, vector<576x64xbf16>
    %cst = arith.constant dense<0.000000e+00> : vector<512x64xf32>
    %2 = tpu.matmul %0, %1, %cst {dimension_numbers = #tpu.dot_dimension_numbers<[1], [0], [0], [1], [0, 0, 1, 1], [], []>} : vector<512x576xbf16>, vector<576x64xbf16>, vector<512x64xf32> -> vector<512x64xf32>
    %c0_3 = arith.constant 0 : index
    %c0_4 = arith.constant 0 : index
    %3 = vector.load %arg3[%c0_3, %c0_4] : memref<1x64xf32, #tpu.memory_space<vmem>>, vector<1x64xf32>
    %4 = vector.broadcast %3 : vector<1x64xf32> to vector<512x64xf32>
    %5 = arith.mulf %2, %4 : vector<512x64xf32>
    %c0_5 = arith.constant 0 : index
    %c0_6 = arith.constant 0 : index
    %6 = vector.load %arg4[%c0_5, %c0_6] : memref<1x64xf32, #tpu.memory_space<vmem>>, vector<1x64xf32>
    %7 = vector.broadcast %6 : vector<1x64xf32> to vector<512x64xf32>
    %8 = arith.addf %5, %7 : vector<512x64xf32>
    %cst_7 = arith.constant 0.000000e+00 : f32
    %cst_8 = arith.constant 6.000000e+00 : f32
    %9 = vector.broadcast %cst_7 : f32 to vector<512x64xf32>
    %10 = arith.maximumf %9, %8 : vector<512x64xf32>
    %11 = vector.broadcast %cst_8 : f32 to vector<512x64xf32>
    %12 = arith.minimumf %11, %10 : vector<512x64xf32>
    %13 = arith.truncf %12 : vector<512x64xf32> to vector<512x64xbf16>
    %c0_9 = arith.constant 0 : index
    %c0_10 = arith.constant 0 : index
    %14 = vector.load %arg5[%c0_9, %c0_10] : memref<64x8xbf16, #tpu.memory_space<vmem>>, vector<64x8xbf16>
    %cst_11 = arith.constant dense<0.000000e+00> : vector<512x8xf32>
    %15 = tpu.matmul %13, %14, %cst_11 {dimension_numbers = #tpu.dot_dimension_numbers<[1], [0], [0], [1], [0, 0, 1, 1], [], []>} : vector<512x64xbf16>, vector<64x8xbf16>, vector<512x8xf32> -> vector<512x8xf32>
    %c0_12 = arith.constant 0 : index
    %c0_13 = arith.constant 0 : index
    %16 = vector.load %arg6[%c0_12, %c0_13] : memref<512x8xf32, #tpu.memory_space<vmem>>, vector<512x8xf32>
    tpu.vector_store %arg6[%c0_12, %c0_13], %15 {strides = array<i32>} : memref<512x8xf32, #tpu.memory_space<vmem>>, vector<512x8xf32>,
    return
  }
  func.func @transform_0(%arg0: i32) -> (i32, i32) {
    %c0_i32 = arith.constant 0 : i32
    %c0_i32_0 = arith.constant 0 : i32
    return %arg0, %c0_i32 : i32, i32
  }
  func.func @transform_1(%arg0: i32) -> (i32, i32) {
    %c0_i32 = arith.constant 0 : i32
    %c0_i32_0 = arith.constant 0 : i32
    %c0_i32_1 = arith.constant 0 : i32
    return %c0_i32, %c0_i32_0 : i32, i32
  }
  func.func @transform_2(%arg0: i32) -> (i32, i32) {
    %c0_i32 = arith.constant 0 : i32
    %c0_i32_0 = arith.constant 0 : i32
    %c0_i32_1 = arith.constant 0 : i32
    return %c0_i32, %c0_i32_0 : i32, i32
  }
  func.func @transform_3(%arg0: i32) -> (i32, i32) {
    %c0_i32 = arith.constant 0 : i32
    %c0_i32_0 = arith.constant 0 : i32
    %c0_i32_1 = arith.constant 0 : i32
    return %c0_i32, %c0_i32_0 : i32, i32
  }
  func.func @transform_4(%arg0: i32) -> (i32, i32) {
    %c0_i32 = arith.constant 0 : i32
    %c0_i32_0 = arith.constant 0 : i32
    %c0_i32_1 = arith.constant 0 : i32
    return %c0_i32, %c0_i32_0 : i32, i32
  }
  func.func @transform_5(%arg0: i32) -> (i32, i32) {
    %c0_i32 = arith.constant 0 : i32
    %c0_i32_0 = arith.constant 0 : i32
    return %arg0, %c0_i32 : i32, i32
  }
}

module attributes {stable_mosaic.version = 11 : i64} {
  func.func @upsample_kernel(%arg0: i32, %arg1: memref<32x128xf32, #tpu.memory_space<vmem>>, %arg2: memref<32x16xbf16, #tpu.memory_space<vmem>>, %arg3: memref<128x256xbf16, #tpu.memory_space<vmem>>, %arg4: memref<64x256xf32, #tpu.memory_space<vmem>>) attributes {dimension_semantics = [#tpu.dimension_semantics<parallel>], iteration_bounds = array<i64: 2>, scalar_prefetch = 0 : i64, scratch_operands = 0 : i64, tpu.core_type = #tpu.core_type<tc>, window_params = [{transform_indices = @transform_0, window_bounds = array<i64: 32, 128>}, {pipeline_mode = #tpu.pipeline_mode<synchronous>, transform_indices = @transform_1, window_bounds = array<i64: 32, 16>}, {pipeline_mode = #tpu.pipeline_mode<synchronous>, transform_indices = @transform_2, window_bounds = array<i64: 128, 256>}, {transform_indices = @transform_3, window_bounds = array<i64: 64, 256>}]} {
    %c0 = arith.constant 0 : index
    %c0_0 = arith.constant 0 : index
    %0 = vector.load %arg1[%c0, %c0_0] : memref<32x128xf32, #tpu.memory_space<vmem>>, vector<32x128xf32>
    %1 = arith.truncf %0 : vector<32x128xf32> to vector<32x128xbf16>
    %c0_1 = arith.constant 0 : index
    %c0_2 = arith.constant 0 : index
    %2 = vector.load %arg3[%c0_1, %c0_2] : memref<128x256xbf16, #tpu.memory_space<vmem>>, vector<128x256xbf16>
    %cst = arith.constant dense<0.000000e+00> : vector<32x256xf32>
    %3 = tpu.matmul %1, %2, %cst {dimension_numbers = #tpu.dot_dimension_numbers<[1], [0], [0], [1], [0, 0, 1, 1], [], []>} : vector<32x128xbf16>, vector<128x256xbf16>, vector<32x256xf32> -> vector<32x256xf32>
    %4 = arith.truncf %3 : vector<32x256xf32> to vector<32x256xbf16>
    %c0_3 = arith.constant 0 : index
    %c0_4 = arith.constant 0 : index
    %5 = vector.load %arg2[%c0_3, %c0_4] : memref<32x16xbf16, #tpu.memory_space<vmem>>, vector<32x16xbf16>
    %6 = vector.extract_strided_slice %4 {offsets = [0, 0], sizes = [16, 256], strides = [1, 1]} : vector<32x256xbf16> to vector<16x256xbf16>
    %cst_5 = arith.constant dense<0.000000e+00> : vector<32x256xf32>
    %7 = tpu.matmul %5, %6, %cst_5 {dimension_numbers = #tpu.dot_dimension_numbers<[1], [0], [0], [1], [0, 0, 1, 1], [], []>} : vector<32x16xbf16>, vector<16x256xbf16>, vector<32x256xf32> -> vector<32x256xf32>
    %c0_6 = arith.constant 0 : index
    %c0_7 = arith.constant 0 : index
    %8 = vector.load %arg4[%c0_6, %c0_7] : memref<64x256xf32, #tpu.memory_space<vmem>>, vector<32x256xf32>
    tpu.vector_store %arg4[%c0_6, %c0_7], %7 {strides = array<i32>} : memref<64x256xf32, #tpu.memory_space<vmem>>, vector<32x256xf32>,
    %9 = vector.extract_strided_slice %4 {offsets = [16, 0], sizes = [16, 256], strides = [1, 1]} : vector<32x256xbf16> to vector<16x256xbf16>
    %cst_8 = arith.constant dense<0.000000e+00> : vector<32x256xf32>
    %10 = tpu.matmul %5, %9, %cst_8 {dimension_numbers = #tpu.dot_dimension_numbers<[1], [0], [0], [1], [0, 0, 1, 1], [], []>} : vector<32x16xbf16>, vector<16x256xbf16>, vector<32x256xf32> -> vector<32x256xf32>
    %c32 = arith.constant 32 : index
    %c0_9 = arith.constant 0 : index
    %11 = vector.load %arg4[%c32, %c0_9] : memref<64x256xf32, #tpu.memory_space<vmem>>, vector<32x256xf32>
    tpu.vector_store %arg4[%c32, %c0_9], %10 {strides = array<i32>} : memref<64x256xf32, #tpu.memory_space<vmem>>, vector<32x256xf32>,
    return
  }
  func.func @transform_0(%arg0: i32) -> (i32, i32) {
    %c0_i32 = arith.constant 0 : i32
    %c0_i32_0 = arith.constant 0 : i32
    return %arg0, %c0_i32 : i32, i32
  }
  func.func @transform_1(%arg0: i32) -> (i32, i32) {
    %c0_i32 = arith.constant 0 : i32
    %c0_i32_0 = arith.constant 0 : i32
    %c0_i32_1 = arith.constant 0 : i32
    return %c0_i32, %c0_i32_0 : i32, i32
  }
  func.func @transform_2(%arg0: i32) -> (i32, i32) {
    %c0_i32 = arith.constant 0 : i32
    %c0_i32_0 = arith.constant 0 : i32
    %c0_i32_1 = arith.constant 0 : i32
    return %c0_i32, %c0_i32_0 : i32, i32
  }
  func.func @transform_3(%arg0: i32) -> (i32, i32) {
    %c0_i32 = arith.constant 0 : i32
    %c0_i32_0 = arith.constant 0 : i32
    return %arg0, %c0_i32 : i32, i32
  }
}

</mosaic_0001>

<llo_original>
// kernel: aux_head_forward.2
$region0: #{aux_head_forward.2}
  #allocation0 [shape = 'u32[]', space=smem, size = 0x4, offset = 0x4, fixed_abs, tag = 'smem constant byte address 0x4 - core index']
  #allocation1 [shape = 'u32[144,128]{1,0:T(1,128)}', space=vmem, size = 0x12000, scoped, tag = 'internal scratch']
  %s0 = inlined_call_operand.vmem [shape: bf16[1024,576], index: 0, kind: input, shape index: {}]
  %s1 = inlined_call_operand.vmem [shape: bf16[576,64], index: 1, kind: input, shape index: {}]
  %s2 = inlined_call_operand.vmem [shape: f32[1,64], index: 2, kind: input, shape index: {}]
  %s3 = inlined_call_operand.vmem [shape: f32[1,64], index: 3, kind: input, shape index: {}]
  %s4 = inlined_call_operand.vmem [shape: bf16[64,8], index: 4, kind: input, shape index: {}]
  %s5 = inlined_call_operand.vmem [shape: f32[1024,8], index: 5, kind: output, shape index: {}]
  %s6 = sld [smem:[#allocation0]]
  $region53: #{aux_head_forward.2} parent=0
    _
  %s8 = ssub.s32 1, %s6
  %s9 = scalar_select 0, %s8, %s6
  loop: start=0, step=1, limit=4
  $region2: #{aux_head_forward.2} parent=0 // loop_pre_header
    _
  $region3: #{aux_head_forward.2} parent=0 // loop_header
    %s11 = sphi 0, %s15
    %p12 = scmp.ge.s32.totalorder %s11, 4
    %s21 = sphi 0, %s23
    %s24 = sphi 0, %s21
    %s25 = sphi 0, %s24
    %s41 = sphi 0, %s25
    %s45 = sphi 0, %s45
    %s47 = sphi 0, %s45
    %s48 = sphi 0, %s47
    %s62 = sphi 0, %s48
    %s66 = sphi 0, %s66
    %s68 = sphi 0, %s66
    %s69 = sphi 0, %s68
    %s83 = sphi 0, %s69
    %s87 = sphi 0, %s87
    %s89 = sphi 0, %s87
    %s90 = sphi 0, %s89
    %s104 = sphi 0, %s90
    %s108 = sphi 0, %s108
    %s110 = sphi 0, %s108
    %s111 = sphi 0, %s110
    %s125 = sphi 0, %s111
    %s131 = sphi 0, %s133
    %s134 = sphi 0, %s131
    %s135 = sphi 0, %s134
    %s151 = sphi 0, %s135
  $region4: #{aux_head_forward.2} parent=0 // loop_header_branch
    %14 = sbr.rel (%p12) target = $region8
  $region5: #{aux_head_forward.2} parent=0 // loop_body
    %s16 = ssub.s32 %s11, 1
    %s17 = ssub.s32 %s11, 2
    %s18 = sadd.s32 %s11, 1
    %s19 = ssub.s32 %s11, %s18
    %p20 = scmp.eq.s32.totalorder %s19, 0
    %s22 = sadd.s32 %s21, 1
    %s23 = scalar_select %p20, %s21, %s22
    %p26 = pneg %p20
    %p27 = scmp.eq.s32.totalorder %s11, 1
    %p28 = por %p26, %p27
    %p29 = scmp.ne.s32.totalorder %s21, %s24
    %p30 = scmp.eq.s32.totalorder %s11, 0
    %p31 = por %p29, %p30
    %p32 = scmp.ne.s32.totalorder %s21, %s24
    %p33 = scmp.eq.s32.totalorder %s16, 1
    %p34 = por %p32, %p33
    %p35 = scmp.ne.s32.totalorder %s24, %s25
    %p36 = scmp.eq.s32.totalorder %s16, 0
    %p37 = por %p35, %p36
    %p38 = scmp.ne.s32.totalorder %s24, %s25
    %p39 = scmp.eq.s32.totalorder %s17, 1
    %p40 = por %p38, %p39
    %p42 = scmp.ne.s32.totalorder %s25, %s41
    %p43 = scmp.eq.s32.totalorder %s17, 0
    %p44 = por %p42, %p43
    %s46 = sadd.s32 %s45, 1
    %p49 = scmp.eq.s32.totalorder %s11, 1
    %p50 = scmp.ne.s32.totalorder %s45, %s47
    %p51 = scmp.eq.s32.totalorder %s11, 0
    %p52 = por %p50, %p51
    %p53 = scmp.ne.s32.totalorder %s45, %s47
    %p54 = scmp.eq.s32.totalorder %s16, 1
    %p55 = por %p53, %p54
    %p56 = scmp.ne.s32.totalorder %s47, %s48
    %p57 = scmp.eq.s32.totalorder %s16, 0
    %p58 = por %p56, %p57
    %p59 = scmp.ne.s32.totalorder %s47, %s48
    %p60 = scmp.eq.s32.totalorder %s17, 1
    %p61 = por %p59, %p60
    %p63 = scmp.ne.s32.totalorder %s48, %s62
    %p64 = scmp.eq.s32.totalorder %s17, 0
    %p65 = por %p63, %p64
    %s67 = sadd.s32 %s66, 1
    %p70 = scmp.eq.s32.totalorder %s11, 1
    %p71 = scmp.ne.s32.totalorder %s66, %s68
    %p72 = scmp.eq.s32.totalorder %s11, 0
    %p73 = por %p71, %p72
    %p74 = scmp.ne.s32.totalorder %s66, %s68
    %p75 = scmp.eq.s32.totalorder %s16, 1
    %p76 = por %p74, %p75
    %p77 = scmp.ne.s32.totalorder %s68, %s69
    %p78 = scmp.eq.s32.totalorder %s16, 0
    %p79 = por %p77, %p78
    %p80 = scmp.ne.s32.totalorder %s68, %s69
    %p81 = scmp.eq.s32.totalorder %s17, 1
    %p82 = por %p80, %p81
    %p84 = scmp.ne.s32.totalorder %s69, %s83
    %p85 = scmp.eq.s32.totalorder %s17, 0
    %p86 = por %p84, %p85
    %s88 = sadd.s32 %s87, 1
    %p91 = scmp.eq.s32.totalorder %s11, 1
    %p92 = scmp.ne.s32.totalorder %s87, %s89
    %p93 = scmp.eq.s32.totalorder %s11, 0
    %p94 = por %p92, %p93
    %p95 = scmp.ne.s32.totalorder %s87, %s89
    %p96 = scmp.eq.s32.totalorder %s16, 1
    %p97 = por %p95, %p96
    %p98 = scmp.ne.s32.totalorder %s89, %s90
    %p99 = scmp.eq.s32.totalorder %s16, 0
    %p100 = por %p98, %p99
    %p101 = scmp.ne.s32.totalorder %s89, %s90
    %p102 = scmp.eq.s32.totalorder %s17, 1
    %p103 = por %p101, %p102
    %p105 = scmp.ne.s32.totalorder %s90, %s104
    %p106 = scmp.eq.s32.totalorder %s17, 0
    %p107 = por %p105, %p106
    %s109 = sadd.s32 %s108, 1
    %p112 = scmp.eq.s32.totalorder %s11, 1
    %p113 = scmp.ne.s32.totalorder %s108, %s110
    %p114 = scmp.eq.s32.totalorder %s11, 0
    %p115 = por %p113, %p114
    %p116 = scmp.ne.s32.totalorder %s108, %s110
    %p117 = scmp.eq.s32.totalorder %s16, 1
    %p118 = por %p116, %p117
    %p119 = scmp.ne.s32.totalorder %s110, %s111
    %p120 = scmp.eq.s32.totalorder %s16, 0
    %p121 = por %p119, %p120
    %p122 = scmp.ne.s32.totalorder %s110, %s111
    %p123 = scmp.eq.s32.totalorder %s17, 1
    %p124 = por %p122, %p123
    %p126 = scmp.ne.s32.totalorder %s111, %s125
    %p127 = scmp.eq.s32.totalorder %s17, 0
    %p128 = por %p126, %p127
    %s129 = ssub.s32 %s11, %s18
    %p130 = scmp.eq.s32.totalorder %s129, 0
    %s132 = sadd.s32 %s131, 1
    %s133 = scalar_select %p130, %s131, %s132
    %p136 = pneg %p130
    %p137 = scmp.eq.s32.totalorder %s11, 1
    %p138 = por %p136, %p137
    %p139 = scmp.ne.s32.totalorder %s131, %s134
    %p140 = scmp.eq.s32.totalorder %s11, 0
    %p141 = por %p139, %p140
    %p142 = scmp.ne.s32.totalorder %s131, %s134
    %p143 = scmp.eq.s32.totalorder %s16, 1
    %p144 = por %p142, %p143
    %p145 = scmp.ne.s32.totalorder %s134, %s135
    %p146 = scmp.eq.s32.totalorder %s16, 0
    %p147 = por %p145, %p146
    %p148 = scmp.ne.s32.totalorder %s134, %s135
    %p149 = scmp.eq.s32.totalorder %s17, 1
    %p150 = por %p148, %p149
    %p152 = scmp.ne.s32.totalorder %s135, %s151
    %p153 = scmp.eq.s32.totalorder %s17, 0
    %p154 = por %p152, %p153
    %p155 = scmp.le.s32.totalorder 1, %s11
    %p156 = scmp.lt.s32.totalorder %s11, 3
    %p157 = pnand %p155, %p156
    %p158 = pneg %p157
    // Predicated region
    $region9: #{aux_head_forward.2} parent=5 // pred_check
      _
    $region10: #{aux_head_forward.2} parent=5 // pred_check_branch
      %160 = sbr.rel (%p157) target = $region12
    $region11: #{aux_head_forward.2} parent=5 // pred_region
      %s161 = ssub.s32 %s11, 1
      // Predicated region
      $region13: #{aux_head_forward.2} parent=11 // pred_check
        %p162 = pneg %p58
      $region14: #{aux_head_forward.2} parent=11 // pred_check_branch
        %164 = sbr.rel (%p162) target = $region16
      $region15: #{aux_head_forward.2} parent=11 // pred_region
        _
      $region16: #{aux_head_forward.2} parent=11 // pred_fallthru
        _
      // Predicated region
      $region17: #{aux_head_forward.2} parent=11 // pred_check
        %p165 = pneg %p79
      $region18: #{aux_head_forward.2} parent=11 // pred_check_branch
        %167 = sbr.rel (%p165) target = $region20
      $region19: #{aux_head_forward.2} parent=11 // pred_region
        _
      $region20: #{aux_head_forward.2} parent=11 // pred_fallthru
        _
      // Predicated region
      $region21: #{aux_head_forward.2} parent=11 // pred_check
        %p168 = pneg %p100
      $region22: #{aux_head_forward.2} parent=11 // pred_check_branch
        %170 = sbr.rel (%p168) target = $region24
      $region23: #{aux_head_forward.2} parent=11 // pred_region
        _
      $region24: #{aux_head_forward.2} parent=11 // pred_fallthru
        _
      // Predicated region
      $region25: #{aux_head_forward.2} parent=11 // pred_check
        %p171 = pneg %p121
      $region26: #{aux_head_forward.2} parent=11 // pred_check_branch
        %173 = sbr.rel (%p171) target = $region28
      $region27: #{aux_head_forward.2} parent=11 // pred_region
        _
      $region28: #{aux_head_forward.2} parent=11 // pred_fallthru
        _
    $region12: #{aux_head_forward.2} parent=5 // pred_fallthru
      _
    %p174 = scmp.lt.s32.totalorder %s11, 2
    // Predicated region
    $region29: #{aux_head_forward.2} parent=5 // pred_check
      %p175 = pneg %p174
    $region30: #{aux_head_forward.2} parent=5 // pred_check_branch
      %177 = sbr.rel (%p175) target = $region32
    $region31: #{aux_head_forward.2} parent=5 // pred_region
      // Predicated region
      $region33: #{aux_head_forward.2} parent=31 // pred_check
        %p178 = pneg %p31
      $region34: #{aux_head_forward.2} parent=31 // pred_check_branch
        %180 = sbr.rel (%p178) target = $region36
      $region35: #{aux_head_forward.2} parent=31 // pred_region
        %s181 = smul.u32 64, %s11
        %p182 = scmp.lt.s32.totalorder %s181, 127
        %s183 = scalar_select %p182, %s181, 127
        %s184 = smul.addr %s183, 5
        %s185 = smul.addr %s184, 4
        %s186 = scalar_lea.vmem %s0, %s185
        %s187 = smul.u32 64, %s11
      $region36: #{aux_head_forward.2} parent=31 // pred_fallthru
        _
    $region32: #{aux_head_forward.2} parent=5 // pred_fallthru
      _
    %p188 = scmp.le.s32.totalorder 1, %s11
    %p189 = scmp.lt.s32.totalorder %s11, 3
    %p190 = pnand %p188, %p189
    %p191 = pneg %p190
    // Predicated region
    $region37: #{aux_head_forward.2} parent=5 // pred_check
      _
    $region38: #{aux_head_forward.2} parent=5 // pred_check_branch
      %193 = sbr.rel (%p190) target = $region40
    $region39: #{aux_head_forward.2} parent=5 // pred_region
      %s194 = ssub.s32 %s11, 1
      %s195 = smul.u32 64, %s16
      %p196 = scmp.lt.s32.totalorder %s195, 127
      %s197 = scalar_select %p196, %s195, 127
      %s198 = smul.addr %s197, 5
      %s199 = smul.addr %s198, 4
      %s200 = scalar_lea.vmem %s0, %s199
      %p201 = pneg %p37
      %p202 = pneg %p34
      %p203 = pneg %p58
      %p204 = pneg %p55
      %p205 = pneg %p79
      %p206 = pneg %p76
      %p207 = pneg %p100
      %p208 = pneg %p97
      %p209 = pneg %p121
      %p210 = pneg %p118
      %p211 = pneg %p147
      %p212 = pneg %p144
      %s213 = smul.u32 64, %s16
      %p214 = scmp.lt.s32.totalorder %s213, 127
      %s215 = scalar_select %p214, %s213, 127
      %s216 = smul.addr %s215, 8
      %s217 = scalar_lea.vmem %s5, %s216
      %s218 = smul.u32 64, %s16
      %p219 = scmp.lt.s32.totalorder %s218, 127
      %s220 = scalar_select %p219, %s218, 127
      %s221 = smul.addr %s220, 5
      %s222 = smul.addr %s221, 4
      %s223 = scalar_lea.vmem %s0, %s222
      %s224 = smul.u32 64, %s16
      %s225 = smul.u32 64, %s16
      %p226 = scmp.lt.s32.totalorder %s225, 127
      %s227 = scalar_select %p226, %s225, 127
      %s228 = smul.addr %s227, 8
      %s229 = scalar_lea.vmem %s5, %s228
      %s230 = smul.u32 64, %s16
      %v232 = vld [vmem:[%s223] sm:$0xff]
      %v233 = vld [vmem:[%s223 + $0x8] sm:$0xff]
      %v234 = vld [vmem:[%s223 + $0x10] sm:$0xf]
      %v235 = vld [vmem:[%s223 + $0x14] sm:$0xff]
      %v236 = vld [vmem:[%s223 + $0x1c] sm:$0xff]
      %v237 = vld [vmem:[%s223 + $0x24] sm:$0xf]
      %v238 = vld [vmem:[%s223 + $0x28] sm:$0xff]
      %v239 = vld [vmem:[%s223 + $0x30] sm:$0xff]
      %v240 = vld [vmem:[%s223 + $0x38] sm:$0xf]
      %v241 = vld [vmem:[%s223 + $0x3c] sm:$0xff]
      %v242 = vld [vmem:[%s223 + $0x44] sm:$0xff]
      %v243 = vld [vmem:[%s223 + $0x4c] sm:$0xf]
      %v244 = vld [vmem:[%s223 + $0x50] sm:$0xff]
      %v245 = vld [vmem:[%s223 + $0x58] sm:$0xff]
      %v246 = vld [vmem:[%s223 + $0x60] sm:$0xf]
      %v247 = vld [vmem:[%s223 + $0x64] sm:$0xff]
      %v248 = vld [vmem:[%s223 + $0x6c] sm:$0xff]
      %v249 = vld [vmem:[%s223 + $0x74] sm:$0xf]
      %v250 = vld [vmem:[%s223 + $0x78] sm:$0xff]
      %v251 = vld [vmem:[%s223 + $0x80] sm:$0xff]
      %v252 = vld [vmem:[%s223 + $0x88] sm:$0xf]
      %v253 = vld [vmem:[%s223 + $0x8c] sm:$0xff]
      %v254 = vld [vmem:[%s223 + $0x94] sm:$0xff]
      %v255 = vld [vmem:[%s223 + $0x9c] sm:$0xf]
      %v256 = vld [vmem:[%s223 + $0xa0] sm:$0xff]
      %v257 = vld [vmem:[%s223 + $0xa8] sm:$0xff]
      %v258 = vld [vmem:[%s223 + $0xb0] sm:$0xf]
      %v259 = vld [vmem:[%s223 + $0xb4] sm:$0xff]
      %v260 = vld [vmem:[%s223 + $0xbc] sm:$0xff]
      %v261 = vld [vmem:[%s223 + $0xc4] sm:$0xf]
      %v262 = vld [vmem:[%s223 + $0xc8] sm:$0xff]
      %v263 = vld [vmem:[%s223 + $0xd0] sm:$0xff]
      %v264 = vld [vmem:[%s223 + $0xd8] sm:$0xf]
      %v265 = vld [vmem:[%s223 + $0xdc] sm:$0xff]
      %v266 = vld [vmem:[%s223 + $0xe4] sm:$0xff]
      %v267 = vld [vmem:[%s223 + $0xec] sm:$0xf]
      %v268 = vld [vmem:[%s223 + $0xf0] sm:$0xff]
      %v269 = vld [vmem:[%s223 + $0xf8] sm:$0xff]
      %v270 = vld [vmem:[%s223 + $0x100] sm:$0xf]
      %v271 = vld [vmem:[%s223 + $0x104] sm:$0xff]
      %v272 = vld [vmem:[%s223 + $0x10c] sm:$0xff]
      %v273 = vld [vmem:[%s223 + $0x114] sm:$0xf]
      %v274 = vld [vmem:[%s223 + $0x118] sm:$0xff]
      %v275 = vld [vmem:[%s223 + $0x120] sm:$0xff]
      %v276 = vld [vmem:[%s223 + $0x128] sm:$0xf]
      %v277 = vld [vmem:[%s223 + $0x12c] sm:$0xff]
      %v278 = vld [vmem:[%s223 + $0x134] sm:$0xff]
      %v279 = vld [vmem:[%s223 + $0x13c] sm:$0xf]
      %v280 = vld [vmem:[%s223 + $0x140] sm:$0xff]
      %v281 = vld [vmem:[%s223 + $0x148] sm:$0xff]
      %v282 = vld [vmem:[%s223 + $0x150] sm:$0xf]
      %v283 = vld [vmem:[%s223 + $0x154] sm:$0xff]
      %v284 = vld [vmem:[%s223 + $0x15c] sm:$0xff]
      %v285 = vld [vmem:[%s223 + $0x164] sm:$0xf]
      %v286 = vld [vmem:[%s223 + $0x168] sm:$0xff]
      %v287 = vld [vmem:[%s223 + $0x170] sm:$0xff]
      %v288 = vld [vmem:[%s223 + $0x178] sm:$0xf]
      %v289 = vld [vmem:[%s223 + $0x17c] sm:$0xff]
      %v290 = vld [vmem:[%s223 + $0x184] sm:$0xff]
      %v291 = vld [vmem:[%s223 + $0x18c] sm:$0xf]
      %v292 = vld [vmem:[%s223 + $0x190] sm:$0xff]
      %v293 = vld [vmem:[%s223 + $0x198] sm:$0xff]
      %v294 = vld [vmem:[%s223 + $0x1a0] sm:$0xf]
      %v295 = vld [vmem:[%s223 + $0x1a4] sm:$0xff]
      %v296 = vld [vmem:[%s223 + $0x1ac] sm:$0xff]
      %v297 = vld [vmem:[%s223 + $0x1b4] sm:$0xf]
      %v298 = vld [vmem:[%s223 + $0x1b8] sm:$0xff]
      %v299 = vld [vmem:[%s223 + $0x1c0] sm:$0xff]
      %v300 = vld [vmem:[%s223 + $0x1c8] sm:$0xf]
      %v301 = vld [vmem:[%s223 + $0x1cc] sm:$0xff]
      %v302 = vld [vmem:[%s223 + $0x1d4] sm:$0xff]
      %v303 = vld [vmem:[%s223 + $0x1dc] sm:$0xf]
      %v304 = vld [vmem:[%s223 + $0x1e0] sm:$0xff]
      %v305 = vld [vmem:[%s223 + $0x1e8] sm:$0xff]
      %v306 = vld [vmem:[%s223 + $0x1f0] sm:$0xf]
      %v307 = vld [vmem:[%s223 + $0x1f4] sm:$0xff]
      %v308 = vld [vmem:[%s223 + $0x1fc] sm:$0xff]
      %v309 = vld [vmem:[%s223 + $0x204] sm:$0xf]
      %v310 = vld [vmem:[%s223 + $0x208] sm:$0xff]
      %v311 = vld [vmem:[%s223 + $0x210] sm:$0xff]
      %v312 = vld [vmem:[%s223 + $0x218] sm:$0xf]
      %v313 = vld [vmem:[%s223 + $0x21c] sm:$0xff]
      %v314 = vld [vmem:[%s223 + $0x224] sm:$0xff]
      %v315 = vld [vmem:[%s223 + $0x22c] sm:$0xf]
      %v316 = vld [vmem:[%s223 + $0x230] sm:$0xff]
      %v317 = vld [vmem:[%s223 + $0x238] sm:$0xff]
      %v318 = vld [vmem:[%s223 + $0x240] sm:$0xf]
      %v319 = vld [vmem:[%s223 + $0x244] sm:$0xff]
      %v320 = vld [vmem:[%s223 + $0x24c] sm:$0xff]
      %v321 = vld [vmem:[%s223 + $0x254] sm:$0xf]
      %v322 = vld [vmem:[%s223 + $0x258] sm:$0xff]
      %v323 = vld [vmem:[%s223 + $0x260] sm:$0xff]
      %v324 = vld [vmem:[%s223 + $0x268] sm:$0xf]
      %v325 = vld [vmem:[%s223 + $0x26c] sm:$0xff]
      %v326 = vld [vmem:[%s223 + $0x274] sm:$0xff]
      %v327 = vld [vmem:[%s223 + $0x27c] sm:$0xf]
      %v328 = vld [vmem:[%s223 + $0x280] sm:$0xff]
      %v329 = vld [vmem:[%s223 + $0x288] sm:$0xff]
      %v330 = vld [vmem:[%s223 + $0x290] sm:$0xf]
      %v331 = vld [vmem:[%s223 + $0x294] sm:$0xff]
      %v332 = vld [vmem:[%s223 + $0x29c] sm:$0xff]
      %v333 = vld [vmem:[%s223 + $0x2a4] sm:$0xf]
      %v334 = vld [vmem:[%s223 + $0x2a8] sm:$0xff]
      %v335 = vld [vmem:[%s223 + $0x2b0] sm:$0xff]
      %v336 = vld [vmem:[%s223 + $0x2b8] sm:$0xf]
      %v337 = vld [vmem:[%s223 + $0x2bc] sm:$0xff]
      %v338 = vld [vmem:[%s223 + $0x2c4] sm:$0xff]
      %v339 = vld [vmem:[%s223 + $0x2cc] sm:$0xf]
      %v340 = vld [vmem:[%s223 + $0x2d0] sm:$0xff]
      %v341 = vld [vmem:[%s223 + $0x2d8] sm:$0xff]
      %v342 = vld [vmem:[%s223 + $0x2e0] sm:$0xf]
      %v343 = vld [vmem:[%s223 + $0x2e4] sm:$0xff]
      %v344 = vld [vmem:[%s223 + $0x2ec] sm:$0xff]
      %v345 = vld [vmem:[%s223 + $0x2f4] sm:$0xf]
      %v346 = vld [vmem:[%s223 + $0x2f8] sm:$0xff]
      %v347 = vld [vmem:[%s223 + $0x300] sm:$0xff]
      %v348 = vld [vmem:[%s223 + $0x308] sm:$0xf]
      %v349 = vld [vmem:[%s223 + $0x30c] sm:$0xff]
      %v350 = vld [vmem:[%s223 + $0x314] sm:$0xff]
      %v351 = vld [vmem:[%s223 + $0x31c] sm:$0xf]
      %v352 = vld [vmem:[%s223 + $0x320] sm:$0xff]
      %v353 = vld [vmem:[%s223 + $0x328] sm:$0xff]
      %v354 = vld [vmem:[%s223 + $0x330] sm:$0xf]
      %v355 = vld [vmem:[%s223 + $0x334] sm:$0xff]
      %v356 = vld [vmem:[%s223 + $0x33c] sm:$0xff]
      %v357 = vld [vmem:[%s223 + $0x344] sm:$0xf]
      %v358 = vld [vmem:[%s223 + $0x348] sm:$0xff]
      %v359 = vld [vmem:[%s223 + $0x350] sm:$0xff]
      %v360 = vld [vmem:[%s223 + $0x358] sm:$0xf]
      %v361 = vld [vmem:[%s223 + $0x35c] sm:$0xff]
      %v362 = vld [vmem:[%s223 + $0x364] sm:$0xff]
      %v363 = vld [vmem:[%s223 + $0x36c] sm:$0xf]
      %v364 = vld [vmem:[%s223 + $0x370] sm:$0xff]
      %v365 = vld [vmem:[%s223 + $0x378] sm:$0xff]
      %v366 = vld [vmem:[%s223 + $0x380] sm:$0xf]
      %v367 = vld [vmem:[%s223 + $0x384] sm:$0xff]
      %v368 = vld [vmem:[%s223 + $0x38c] sm:$0xff]
      %v369 = vld [vmem:[%s223 + $0x394] sm:$0xf]
      %v370 = vld [vmem:[%s223 + $0x398] sm:$0xff]
      %v371 = vld [vmem:[%s223 + $0x3a0] sm:$0xff]
      %v372 = vld [vmem:[%s223 + $0x3a8] sm:$0xf]
      %v373 = vld [vmem:[%s223 + $0x3ac] sm:$0xff]
      %v374 = vld [vmem:[%s223 + $0x3b4] sm:$0xff]
      %v375 = vld [vmem:[%s223 + $0x3bc] sm:$0xf]
      %v376 = vld [vmem:[%s223 + $0x3c0] sm:$0xff]
      %v377 = vld [vmem:[%s223 + $0x3c8] sm:$0xff]
      %v378 = vld [vmem:[%s223 + $0x3d0] sm:$0xf]
      %v379 = vld [vmem:[%s223 + $0x3d4] sm:$0xff]
      %v380 = vld [vmem:[%s223 + $0x3dc] sm:$0xff]
      %v381 = vld [vmem:[%s223 + $0x3e4] sm:$0xf]
      %v382 = vld [vmem:[%s223 + $0x3e8] sm:$0xff]
      %v383 = vld [vmem:[%s223 + $0x3f0] sm:$0xff]
      %v384 = vld [vmem:[%s223 + $0x3f8] sm:$0xf]
      %v385 = vld [vmem:[%s223 + $0x3fc] sm:$0xff]
      %v386 = vld [vmem:[%s223 + $0x404] sm:$0xff]
      %v387 = vld [vmem:[%s223 + $0x40c] sm:$0xf]
      %v388 = vld [vmem:[%s223 + $0x410] sm:$0xff]
      %v389 = vld [vmem:[%s223 + $0x418] sm:$0xff]
      %v390 = vld [vmem:[%s223 + $0x420] sm:$0xf]
      %v391 = vld [vmem:[%s223 + $0x424] sm:$0xff]
      %v392 = vld [vmem:[%s223 + $0x42c] sm:$0xff]
      %v393 = vld [vmem:[%s223 + $0x434] sm:$0xf]
      %v394 = vld [vmem:[%s223 + $0x438] sm:$0xff]
      %v395 = vld [vmem:[%s223 + $0x440] sm:$0xff]
      %v396 = vld [vmem:[%s223 + $0x448] sm:$0xf]
      %v397 = vld [vmem:[%s223 + $0x44c] sm:$0xff]
      %v398 = vld [vmem:[%s223 + $0x454] sm:$0xff]
      %v399 = vld [vmem:[%s223 + $0x45c] sm:$0xf]
      %v400 = vld [vmem:[%s223 + $0x460] sm:$0xff]
      %v401 = vld [vmem:[%s223 + $0x468] sm:$0xff]
      %v402 = vld [vmem:[%s223 + $0x470] sm:$0xf]
      %v403 = vld [vmem:[%s223 + $0x474] sm:$0xff]
      %v404 = vld [vmem:[%s223 + $0x47c] sm:$0xff]
      %v405 = vld [vmem:[%s223 + $0x484] sm:$0xf]
      %v406 = vld [vmem:[%s223 + $0x488] sm:$0xff]
      %v407 = vld [vmem:[%s223 + $0x490] sm:$0xff]
      %v408 = vld [vmem:[%s223 + $0x498] sm:$0xf]
      %v409 = vld [vmem:[%s223 + $0x49c] sm:$0xff]
      %v410 = vld [vmem:[%s223 + $0x4a4] sm:$0xff]
      %v411 = vld [vmem:[%s223 + $0x4ac] sm:$0xf]
      %v412 = vld [vmem:[%s223 + $0x4b0] sm:$0xff]
      %v413 = vld [vmem:[%s223 + $0x4b8] sm:$0xff]
      %v414 = vld [vmem:[%s223 + $0x4c0] sm:$0xf]
      %v415 = vld [vmem:[%s223 + $0x4c4] sm:$0xff]
      %v416 = vld [vmem:[%s223 + $0x4cc] sm:$0xff]
      %v417 = vld [vmem:[%s223 + $0x4d4] sm:$0xf]
      %v418 = vld [vmem:[%s223 + $0x4d8] sm:$0xff]
      %v419 = vld [vmem:[%s223 + $0x4e0] sm:$0xff]
      %v420 = vld [vmem:[%s223 + $0x4e8] sm:$0xf]
      %v421 = vld [vmem:[%s223 + $0x4ec] sm:$0xff]
      %v422 = vld [vmem:[%s223 + $0x4f4] sm:$0xff]
      %v423 = vld [vmem:[%s223 + $0x4fc] sm:$0xf]
      %v424 = vld [vmem:[%s1] sm:$0xf]
      %v425 = vld [vmem:[%s1 + $0x4] sm:$0xf]
      %v426 = vld [vmem:[%s1 + $0x8] sm:$0xf]
      %v427 = vld [vmem:[%s1 + $0xc] sm:$0xf]
      %v428 = vld [vmem:[%s1 + $0x10] sm:$0xf]
      %v429 = vld [vmem:[%s1 + $0x14] sm:$0xf]
      %v430 = vld [vmem:[%s1 + $0x18] sm:$0xf]
      %v431 = vld [vmem:[%s1 + $0x1c] sm:$0xf]
      %v432 = vld [vmem:[%s1 + $0x20] sm:$0xf]
      %v433 = vld [vmem:[%s1 + $0x24] sm:$0xf]
      %v434 = vld [vmem:[%s1 + $0x28] sm:$0xf]
      %v435 = vld [vmem:[%s1 + $0x2c] sm:$0xf]
      %v436 = vld [vmem:[%s1 + $0x30] sm:$0xf]
      %v437 = vld [vmem:[%s1 + $0x34] sm:$0xf]
      %v438 = vld [vmem:[%s1 + $0x38] sm:$0xf]
      %v439 = vld [vmem:[%s1 + $0x3c] sm:$0xf]
      %v440 = vld [vmem:[%s1 + $0x40] sm:$0xf]
      %v441 = vld [vmem:[%s1 + $0x44] sm:$0xf]
      %v442 = vld [vmem:[%s1 + $0x48] sm:$0xf]
      %v443 = vld [vmem:[%s1 + $0x4c] sm:$0xf]
      %v444 = vld [vmem:[%s1 + $0x50] sm:$0xf]
      %v445 = vld [vmem:[%s1 + $0x54] sm:$0xf]
      %v446 = vld [vmem:[%s1 + $0x58] sm:$0xf]
      %v447 = vld [vmem:[%s1 + $0x5c] sm:$0xf]
      %v448 = vld [vmem:[%s1 + $0x60] sm:$0xf]
      %v449 = vld [vmem:[%s1 + $0x64] sm:$0xf]
      %v450 = vld [vmem:[%s1 + $0x68] sm:$0xf]
      %v451 = vld [vmem:[%s1 + $0x6c] sm:$0xf]
      %v452 = vld [vmem:[%s1 + $0x70] sm:$0xf]
      %v453 = vld [vmem:[%s1 + $0x74] sm:$0xf]
      %v454 = vld [vmem:[%s1 + $0x78] sm:$0xf]
      %v455 = vld [vmem:[%s1 + $0x7c] sm:$0xf]
      %v456 = vld [vmem:[%s1 + $0x80] sm:$0xf]
      %v457 = vld [vmem:[%s1 + $0x84] sm:$0xf]
      %v458 = vld [vmem:[%s1 + $0x88] sm:$0xf]
      %v459 = vld [vmem:[%s1 + $0x8c] sm:$0xf]
      %v460 = vld [vmem:[%s1 + $0x90] sm:$0xf]
      %v461 = vld [vmem:[%s1 + $0x94] sm:$0xf]
      %v462 = vld [vmem:[%s1 + $0x98] sm:$0xf]
      %v463 = vld [vmem:[%s1 + $0x9c] sm:$0xf]
      %v464 = vld [vmem:[%s1 + $0xa0] sm:$0xf]
      %v465 = vld [vmem:[%s1 + $0xa4] sm:$0xf]
      %v466 = vld [vmem:[%s1 + $0xa8] sm:$0xf]
      %v467 = vld [vmem:[%s1 + $0xac] sm:$0xf]
      %v468 = vld [vmem:[%s1 + $0xb0] sm:$0xf]
      %v469 = vld [vmem:[%s1 + $0xb4] sm:$0xf]
      %v470 = vld [vmem:[%s1 + $0xb8] sm:$0xf]
      %v471 = vld [vmem:[%s1 + $0xbc] sm:$0xf]
      %v472 = vld [vmem:[%s1 + $0xc0] sm:$0xf]
      %v473 = vld [vmem:[%s1 + $0xc4] sm:$0xf]
      %v474 = vld [vmem:[%s1 + $0xc8] sm:$0xf]
      %v475 = vld [vmem:[%s1 + $0xcc] sm:$0xf]
      %v476 = vld [vmem:[%s1 + $0xd0] sm:$0xf]
      %v477 = vld [vmem:[%s1 + $0xd4] sm:$0xf]
      %v478 = vld [vmem:[%s1 + $0xd8] sm:$0xf]
      %v479 = vld [vmem:[%s1 + $0xdc] sm:$0xf]
      %v480 = vld [vmem:[%s1 + $0xe0] sm:$0xf]
      %v481 = vld [vmem:[%s1 + $0xe4] sm:$0xf]
      %v482 = vld [vmem:[%s1 + $0xe8] sm:$0xf]
      %v483 = vld [vmem:[%s1 + $0xec] sm:$0xf]
      %v484 = vld [vmem:[%s1 + $0xf0] sm:$0xf]
      %v485 = vld [vmem:[%s1 + $0xf4] sm:$0xf]
      %v486 = vld [vmem:[%s1 + $0xf8] sm:$0xf]
      %v487 = vld [vmem:[%s1 + $0xfc] sm:$0xf]
      %v488 = vld [vmem:[%s1 + $0x100] sm:$0xf]
      %v489 = vld [vmem:[%s1 + $0x104] sm:$0xf]
      %v490 = vld [vmem:[%s1 + $0x108] sm:$0xf]
      %v491 = vld [vmem:[%s1 + $0x10c] sm:$0xf]
      %v492 = vld [vmem:[%s1 + $0x110] sm:$0xf]
      %v493 = vld [vmem:[%s1 + $0x114] sm:$0xf]
      %v494 = vld [vmem:[%s1 + $0x118] sm:$0xf]
      %v495 = vld [vmem:[%s1 + $0x11c] sm:$0xf]
      %v688 = vunpack.c.l.b16 %v232
      %v689 = vunpack.c.h.b16 %v232
      %v690 = vunpack.c.l.b16 %v233
      %v691 = vunpack.c.h.b16 %v233
      %v692 = vunpack.c.l.b16 %v234
      %v693 = vunpack.c.l.b16 %v235
      %v694 = vunpack.c.h.b16 %v235
      %v695 = vunpack.c.l.b16 %v236
      %v696 = vunpack.c.h.b16 %v236
      %v697 = vunpack.c.l.b16 %v237
      %v698 = vunpack.c.l.b16 %v238
      %v699 = vunpack.c.h.b16 %v238
      %v700 = vunpack.c.l.b16 %v239
      %v701 = vunpack.c.h.b16 %v239
      %v702 = vunpack.c.l.b16 %v240
      %v703 = vunpack.c.l.b16 %v241
      %v704 = vunpack.c.h.b16 %v241
      %v705 = vunpack.c.l.b16 %v242
      %v706 = vunpack.c.h.b16 %v242
      %v707 = vunpack.c.l.b16 %v243
      %v708 = vunpack.c.l.b16 %v244
      %v709 = vunpack.c.h.b16 %v244
      %v710 = vunpack.c.l.b16 %v245
      %v711 = vunpack.c.h.b16 %v245
      %v712 = vunpack.c.l.b16 %v246
      %v713 = vunpack.c.l.b16 %v247
      %v714 = vunpack.c.h.b16 %v247
      %v715 = vunpack.c.l.b16 %v248
      %v716 = vunpack.c.h.b16 %v248
      %v717 = vunpack.c.l.b16 %v249
      %v718 = vunpack.c.l.b16 %v250
      %v719 = vunpack.c.h.b16 %v250
      %v720 = vunpack.c.l.b16 %v251
      %v721 = vunpack.c.h.b16 %v251
      %v722 = vunpack.c.l.b16 %v252
      %v723 = vunpack.c.l.b16 %v253
      %v724 = vunpack.c.h.b16 %v253
      %v725 = vunpack.c.l.b16 %v254
      %v726 = vunpack.c.h.b16 %v254
      %v727 = vunpack.c.l.b16 %v255
      %v728 = vunpack.c.l.b16 %v256
      %v729 = vunpack.c.h.b16 %v256
      %v730 = vunpack.c.l.b16 %v257
      %v731 = vunpack.c.h.b16 %v257
      %v732 = vunpack.c.l.b16 %v258
      %v733 = vunpack.c.l.b16 %v259
      %v734 = vunpack.c.h.b16 %v259
      %v735 = vunpack.c.l.b16 %v260
      %v736 = vunpack.c.h.b16 %v260
      %v737 = vunpack.c.l.b16 %v261
      %v738 = vunpack.c.l.b16 %v262
      %v739 = vunpack.c.h.b16 %v262
      %v740 = vunpack.c.l.b16 %v263
      %v741 = vunpack.c.h.b16 %v263
      %v742 = vunpack.c.l.b16 %v264
      %v743 = vunpack.c.l.b16 %v265
      %v744 = vunpack.c.h.b16 %v265
      %v745 = vunpack.c.l.b16 %v266
      %v746 = vunpack.c.h.b16 %v266
      %v747 = vunpack.c.l.b16 %v267
      %v748 = vunpack.c.l.b16 %v268
      %v749 = vunpack.c.h.b16 %v268
      %v750 = vunpack.c.l.b16 %v269
      %v751 = vunpack.c.h.b16 %v269
      %v752 = vunpack.c.l.b16 %v270
      %v753 = vunpack.c.l.b16 %v271
      %v754 = vunpack.c.h.b16 %v271
      %v755 = vunpack.c.l.b16 %v272
      %v756 = vunpack.c.h.b16 %v272
      %v757 = vunpack.c.l.b16 %v273
      %v758 = vunpack.c.l.b16 %v274
      %v759 = vunpack.c.h.b16 %v274
      %v760 = vunpack.c.l.b16 %v275
      %v761 = vunpack.c.h.b16 %v275
      %v762 = vunpack.c.l.b16 %v276
      %v763 = vunpack.c.l.b16 %v277
      %v764 = vunpack.c.h.b16 %v277
      %v765 = vunpack.c.l.b16 %v278
      %v766 = vunpack.c.h.b16 %v278
      %v767 = vunpack.c.l.b16 %v279
      %v768 = vunpack.c.l.b16 %v280
      %v769 = vunpack.c.h.b16 %v280
      %v770 = vunpack.c.l.b16 %v281
      %v771 = vunpack.c.h.b16 %v281
      %v772 = vunpack.c.l.b16 %v282
      %v773 = vunpack.c.l.b16 %v283
      %v774 = vunpack.c.h.b16 %v283
      %v775 = vunpack.c.l.b16 %v284
      %v776 = vunpack.c.h.b16 %v284
      %v777 = vunpack.c.l.b16 %v285
      %v778 = vunpack.c.l.b16 %v286
      %v779 = vunpack.c.h.b16 %v286
      %v780 = vunpack.c.l.b16 %v287
      %v781 = vunpack.c.h.b16 %v287
      %v782 = vunpack.c.l.b16 %v288
      %v783 = vunpack.c.l.b16 %v289
      %v784 = vunpack.c.h.b16 %v289
      %v785 = vunpack.c.l.b16 %v290
      %v786 = vunpack.c.h.b16 %v290
      %v787 = vunpack.c.l.b16 %v291
      %v788 = vunpack.c.l.b16 %v292
      %v789 = vunpack.c.h.b16 %v292
      %v790 = vunpack.c.l.b16 %v293
      %v791 = vunpack.c.h.b16 %v293
      %v792 = vunpack.c.l.b16 %v294
      %v793 = vunpack.c.l.b16 %v295
      %v794 = vunpack.c.h.b16 %v295
      %v795 = vunpack.c.l.b16 %v296
      %v796 = vunpack.c.h.b16 %v296
      %v797 = vunpack.c.l.b16 %v297
      %v798 = vunpack.c.l.b16 %v298
      %v799 = vunpack.c.h.b16 %v298
      %v800 = vunpack.c.l.b16 %v299
      %v801 = vunpack.c.h.b16 %v299
      %v802 = vunpack.c.l.b16 %v300
      %v803 = vunpack.c.l.b16 %v301
      %v804 = vunpack.c.h.b16 %v301
      %v805 = vunpack.c.l.b16 %v302
      %v806 = vunpack.c.h.b16 %v302
      %v807 = vunpack.c.l.b16 %v303
      %v808 = vunpack.c.l.b16 %v304
      %v809 = vunpack.c.h.b16 %v304
      %v810 = vunpack.c.l.b16 %v305
      %v811 = vunpack.c.h.b16 %v305
      %v812 = vunpack.c.l.b16 %v306
      %v813 = vunpack.c.l.b16 %v307
      %v814 = vunpack.c.h.b16 %v307
      %v815 = vunpack.c.l.b16 %v308
      %v816 = vunpack.c.h.b16 %v308
      %v817 = vunpack.c.l.b16 %v309
      %v818 = vunpack.c.l.b16 %v310
      %v819 = vunpack.c.h.b16 %v310
      %v820 = vunpack.c.l.b16 %v311
      %v821 = vunpack.c.h.b16 %v311
      %v822 = vunpack.c.l.b16 %v312
      %v823 = vunpack.c.l.b16 %v313
      %v824 = vunpack.c.h.b16 %v313
      %v825 = vunpack.c.l.b16 %v314
      %v826 = vunpack.c.h.b16 %v314
      %v827 = vunpack.c.l.b16 %v315
      %v828 = vunpack.c.l.b16 %v316
      %v829 = vunpack.c.h.b16 %v316
      %v830 = vunpack.c.l.b16 %v317
      %v831 = vunpack.c.h.b16 %v317
      %v832 = vunpack.c.l.b16 %v318
      %v833 = vunpack.c.l.b16 %v319
      %v834 = vunpack.c.h.b16 %v319
      %v835 = vunpack.c.l.b16 %v320
      %v836 = vunpack.c.h.b16 %v320
      %v837 = vunpack.c.l.b16 %v321
      %v838 = vunpack.c.l.b16 %v322
      %v839 = vunpack.c.h.b16 %v322
      %v840 = vunpack.c.l.b16 %v323
      %v841 = vunpack.c.h.b16 %v323
      %v842 = vunpack.c.l.b16 %v324
      %v843 = vunpack.c.l.b16 %v325
      %v844 = vunpack.c.h.b16 %v325
      %v845 = vunpack.c.l.b16 %v326
      %v846 = vunpack.c.h.b16 %v326
      %v847 = vunpack.c.l.b16 %v327
      %v848 = vunpack.c.l.b16 %v328
      %v849 = vunpack.c.h.b16 %v328
      %v850 = vunpack.c.l.b16 %v329
      %v851 = vunpack.c.h.b16 %v329
      %v852 = vunpack.c.l.b16 %v330
      %v853 = vunpack.c.l.b16 %v331
      %v854 = vunpack.c.h.b16 %v331
      %v855 = vunpack.c.l.b16 %v332
      %v856 = vunpack.c.h.b16 %v332
      %v857 = vunpack.c.l.b16 %v333
      %v858 = vunpack.c.l.b16 %v334
      %v859 = vunpack.c.h.b16 %v334
      %v860 = vunpack.c.l.b16 %v335
      %v861 = vunpack.c.h.b16 %v335
      %v862 = vunpack.c.l.b16 %v336
      %v863 = vunpack.c.l.b16 %v337
      %v864 = vunpack.c.h.b16 %v337
      %v865 = vunpack.c.l.b16 %v338
      %v866 = vunpack.c.h.b16 %v338
      %v867 = vunpack.c.l.b16 %v339
      %v868 = vunpack.c.l.b16 %v340
      %v869 = vunpack.c.h.b16 %v340
      %v870 = vunpack.c.l.b16 %v341
      %v871 = vunpack.c.h.b16 %v341
      %v872 = vunpack.c.l.b16 %v342
      %v873 = vunpack.c.l.b16 %v343
      %v874 = vunpack.c.h.b16 %v343
      %v875 = vunpack.c.l.b16 %v344
      %v876 = vunpack.c.h.b16 %v344
      %v877 = vunpack.c.l.b16 %v345
      %v878 = vunpack.c.l.b16 %v346
      %v879 = vunpack.c.h.b16 %v346
      %v880 = vunpack.c.l.b16 %v347
      %v881 = vunpack.c.h.b16 %v347
      %v882 = vunpack.c.l.b16 %v348
      %v883 = vunpack.c.l.b16 %v349
      %v884 = vunpack.c.h.b16 %v349
      %v885 = vunpack.c.l.b16 %v350
      %v886 = vunpack.c.h.b16 %v350
      %v887 = vunpack.c.l.b16 %v351
      %v888 = vunpack.c.l.b16 %v352
      %v889 = vunpack.c.h.b16 %v352
      %v890 = vunpack.c.l.b16 %v353
      %v891 = vunpack.c.h.b16 %v353
      %v892 = vunpack.c.l.b16 %v354
      %v893 = vunpack.c.l.b16 %v355
      %v894 = vunpack.c.h.b16 %v355
      %v895 = vunpack.c.l.b16 %v356
      %v896 = vunpack.c.h.b16 %v356
      %v897 = vunpack.c.l.b16 %v357
      %v898 = vunpack.c.l.b16 %v358
      %v899 = vunpack.c.h.b16 %v358
      %v900 = vunpack.c.l.b16 %v359
      %v901 = vunpack.c.h.b16 %v359
      %v902 = vunpack.c.l.b16 %v360
      %v903 = vunpack.c.l.b16 %v361
      %v904 = vunpack.c.h.b16 %v361
      %v905 = vunpack.c.l.b16 %v362
      %v906 = vunpack.c.h.b16 %v362
      %v907 = vunpack.c.l.b16 %v363
      %v908 = vunpack.c.l.b16 %v364
      %v909 = vunpack.c.h.b16 %v364
      %v910 = vunpack.c.l.b16 %v365
      %v911 = vunpack.c.h.b16 %v365
      %v912 = vunpack.c.l.b16 %v366
      %v913 = vunpack.c.l.b16 %v367
      %v914 = vunpack.c.h.b16 %v367
      %v915 = vunpack.c.l.b16 %v368
      %v916 = vunpack.c.h.b16 %v368
      %v917 = vunpack.c.l.b16 %v369
      %v918 = vunpack.c.l.b16 %v370
      %v919 = vunpack.c.h.b16 %v370
      %v920 = vunpack.c.l.b16 %v371
      %v921 = vunpack.c.h.b16 %v371
      %v922 = vunpack.c.l.b16 %v372
      %v923 = vunpack.c.l.b16 %v373
      %v924 = vunpack.c.h.b16 %v373
      %v925 = vunpack.c.l.b16 %v374
      %v926 = vunpack.c.h.b16 %v374
      %v927 = vunpack.c.l.b16 %v375
      %v928 = vunpack.c.l.b16 %v376
      %v929 = vunpack.c.h.b16 %v376
      %v930 = vunpack.c.l.b16 %v377
      %v931 = vunpack.c.h.b16 %v377
      %v932 = vunpack.c.l.b16 %v378
      %v933 = vunpack.c.l.b16 %v379
      %v934 = vunpack.c.h.b16 %v379
      %v935 = vunpack.c.l.b16 %v380
      %v936 = vunpack.c.h.b16 %v380
      %v937 = vunpack.c.l.b16 %v381
      %v938 = vunpack.c.l.b16 %v382
      %v939 = vunpack.c.h.b16 %v382
      %v940 = vunpack.c.l.b16 %v383
      %v941 = vunpack.c.h.b16 %v383
      %v942 = vunpack.c.l.b16 %v384
      %v943 = vunpack.c.l.b16 %v385
      %v944 = vunpack.c.h.b16 %v385
      %v945 = vunpack.c.l.b16 %v386
      %v946 = vunpack.c.h.b16 %v386
      %v947 = vunpack.c.l.b16 %v387
      %v948 = vunpack.c.l.b16 %v388
      %v949 = vunpack.c.h.b16 %v388
      %v950 = vunpack.c.l.b16 %v389
      %v951 = vunpack.c.h.b16 %v389
      %v952 = vunpack.c.l.b16 %v390
      %v953 = vunpack.c.l.b16 %v391
      %v954 = vunpack.c.h.b16 %v391
      %v955 = vunpack.c.l.b16 %v392
      %v956 = vunpack.c.h.b16 %v392
      %v957 = vunpack.c.l.b16 %v393
      %v958 = vunpack.c.l.b16 %v394
      %v959 = vunpack.c.h.b16 %v394
      %v960 = vunpack.c.l.b16 %v395
      %v961 = vunpack.c.h.b16 %v395
      %v962 = vunpack.c.l.b16 %v396
      %v963 = vunpack.c.l.b16 %v397
      %v964 = vunpack.c.h.b16 %v397
      %v965 = vunpack.c.l.b16 %v398
      %v966 = vunpack.c.h.b16 %v398
      %v967 = vunpack.c.l.b16 %v399
      %v968 = vunpack.c.l.b16 %v400
      %v969 = vunpack.c.h.b16 %v400
      %v970 = vunpack.c.l.b16 %v401
      %v971 = vunpack.c.h.b16 %v401
      %v972 = vunpack.c.l.b16 %v402
      %v973 = vunpack.c.l.b16 %v403
      %v974 = vunpack.c.h.b16 %v403
      %v975 = vunpack.c.l.b16 %v404
      %v976 = vunpack.c.h.b16 %v404
      %v977 = vunpack.c.l.b16 %v405
      %v978 = vunpack.c.l.b16 %v406
      %v979 = vunpack.c.h.b16 %v406
      %v980 = vunpack.c.l.b16 %v407
      %v981 = vunpack.c.h.b16 %v407
      %v982 = vunpack.c.l.b16 %v408
      %v983 = vunpack.c.l.b16 %v409
      %v984 = vunpack.c.h.b16 %v409
      %v985 = vunpack.c.l.b16 %v410
      %v986 = vunpack.c.h.b16 %v410
      %v987 = vunpack.c.l.b16 %v411
      %v988 = vunpack.c.l.b16 %v412
      %v989 = vunpack.c.h.b16 %v412
      %v990 = vunpack.c.l.b16 %v413
      %v991 = vunpack.c.h.b16 %v413
      %v992 = vunpack.c.l.b16 %v414
      %v993 = vunpack.c.l.b16 %v415
      %v994 = vunpack.c.h.b16 %v415
      %v995 = vunpack.c.l.b16 %v416
      %v996 = vunpack.c.h.b16 %v416
      %v997 = vunpack.c.l.b16 %v417
      %v998 = vunpack.c.l.b16 %v418
      %v999 = vunpack.c.h.b16 %v418
      %v1000 = vunpack.c.l.b16 %v419
      %v1001 = vunpack.c.h.b16 %v419
      %v1002 = vunpack.c.l.b16 %v420
      %v1003 = vunpack.c.l.b16 %v421
      %v1004 = vunpack.c.h.b16 %v421
      %v1005 = vunpack.c.l.b16 %v422
      %v1006 = vunpack.c.h.b16 %v422
      %v1007 = vunpack.c.l.b16 %v423
      %v1008 = vpack.c.b16 %v693, %v688
      %v1009 = vpack.c.b16 %v694, %v689
      %v1010 = vpack.c.b16 %v695, %v690
      %v1011 = vpack.c.b16 %v696, %v691
      %v1012 = vpack.c.b16 %v697, %v692
      %v1013 = vpack.c.b16 %v703, %v698
      %v1014 = vpack.c.b16 %v704, %v699
      %v1015 = vpack.c.b16 %v705, %v700
      %v1016 = vpack.c.b16 %v706, %v701
      %v1017 = vpack.c.b16 %v707, %v702
      %v1018 = vpack.c.b16 %v713, %v708
      %v1019 = vpack.c.b16 %v714, %v709
      %v1020 = vpack.c.b16 %v715, %v710
      %v1021 = vpack.c.b16 %v716, %v711
      %v1022 = vpack.c.b16 %v717, %v712
      %v1023 = vpack.c.b16 %v723, %v718
      %v1024 = vpack.c.b16 %v724, %v719
      %v1025 = vpack.c.b16 %v725, %v720
      %v1026 = vpack.c.b16 %v726, %v721
      %v1027 = vpack.c.b16 %v727, %v722
      %v1028 = vpack.c.b16 %v733, %v728
      %v1029 = vpack.c.b16 %v734, %v729
      %v1030 = vpack.c.b16 %v735, %v730
      %v1031 = vpack.c.b16 %v736, %v731
      %v1032 = vpack.c.b16 %v737, %v732
      %v1033 = vpack.c.b16 %v743, %v738
      %v1034 = vpack.c.b16 %v744, %v739
      %v1035 = vpack.c.b16 %v745, %v740
      %v1036 = vpack.c.b16 %v746, %v741
      %v1037 = vpack.c.b16 %v747, %v742
      %v1038 = vpack.c.b16 %v753, %v748
      %v1039 = vpack.c.b16 %v754, %v749
      %v1040 = vpack.c.b16 %v755, %v750
      %v1041 = vpack.c.b16 %v756, %v751
      %v1042 = vpack.c.b16 %v757, %v752
      %v1043 = vpack.c.b16 %v763, %v758
      %v1044 = vpack.c.b16 %v764, %v759
      %v1045 = vpack.c.b16 %v765, %v760
      %v1046 = vpack.c.b16 %v766, %v761
      %v1047 = vpack.c.b16 %v767, %v762
      %v1048 = vpack.c.b16 %v773, %v768
      %v1049 = vpack.c.b16 %v774, %v769
      %v1050 = vpack.c.b16 %v775, %v770
      %v1051 = vpack.c.b16 %v776, %v771
      %v1052 = vpack.c.b16 %v777, %v772
      %v1053 = vpack.c.b16 %v783, %v778
      %v1054 = vpack.c.b16 %v784, %v779
      %v1055 = vpack.c.b16 %v785, %v780
      %v1056 = vpack.c.b16 %v786, %v781
      %v1057 = vpack.c.b16 %v787, %v782
      %v1058 = vpack.c.b16 %v793, %v788
      %v1059 = vpack.c.b16 %v794, %v789
      %v1060 = vpack.c.b16 %v795, %v790
      %v1061 = vpack.c.b16 %v796, %v791
      %v1062 = vpack.c.b16 %v797, %v792
      %v1063 = vpack.c.b16 %v803, %v798
      %v1064 = vpack.c.b16 %v804, %v799
      %v1065 = vpack.c.b16 %v805, %v800
      %v1066 = vpack.c.b16 %v806, %v801
      %v1067 = vpack.c.b16 %v807, %v802
      %v1068 = vpack.c.b16 %v813, %v808
      %v1069 = vpack.c.b16 %v814, %v809
      %v1070 = vpack.c.b16 %v815, %v810
      %v1071 = vpack.c.b16 %v816, %v811
      %v1072 = vpack.c.b16 %v817, %v812
      %v1073 = vpack.c.b16 %v823, %v818
      %v1074 = vpack.c.b16 %v824, %v819
      %v1075 = vpack.c.b16 %v825, %v820
      %v1076 = vpack.c.b16 %v826, %v821
      %v1077 = vpack.c.b16 %v827, %v822
      %v1078 = vpack.c.b16 %v833, %v828
      %v1079 = vpack.c.b16 %v834, %v829
      %v1080 = vpack.c.b16 %v835, %v830
      %v1081 = vpack.c.b16 %v836, %v831
      %v1082 = vpack.c.b16 %v837, %v832
      %v1083 = vpack.c.b16 %v843, %v838
      %v1084 = vpack.c.b16 %v844, %v839
      %v1085 = vpack.c.b16 %v845, %v840
      %v1086 = vpack.c.b16 %v846, %v841
      %v1087 = vpack.c.b16 %v847, %v842
      %v1088 = vpack.c.b16 %v853, %v848
      %v1089 = vpack.c.b16 %v854, %v849
      %v1090 = vpack.c.b16 %v855, %v850
      %v1091 = vpack.c.b16 %v856, %v851
      %v1092 = vpack.c.b16 %v857, %v852
      %v1093 = vpack.c.b16 %v863, %v858
      %v1094 = vpack.c.b16 %v864, %v859
      %v1095 = vpack.c.b16 %v865, %v860
      %v1096 = vpack.c.b16 %v866, %v861
      %v1097 = vpack.c.b16 %v867, %v862
      %v1098 = vpack.c.b16 %v873, %v868
      %v1099 = vpack.c.b16 %v874, %v869
      %v1100 = vpack.c.b16 %v875, %v870
      %v1101 = vpack.c.b16 %v876, %v871
      %v1102 = vpack.c.b16 %v877, %v872
      %v1103 = vpack.c.b16 %v883, %v878
      %v1104 = vpack.c.b16 %v884, %v879
      %v1105 = vpack.c.b16 %v885, %v880
      %v1106 = vpack.c.b16 %v886, %v881
      %v1107 = vpack.c.b16 %v887, %v882
      %v1108 = vpack.c.b16 %v893, %v888
      %v1109 = vpack.c.b16 %v894, %v889
      %v1110 = vpack.c.b16 %v895, %v890
      %v1111 = vpack.c.b16 %v896, %v891
      %v1112 = vpack.c.b16 %v897, %v892
      %v1113 = vpack.c.b16 %v903, %v898
      %v1114 = vpack.c.b16 %v904, %v899
      %v1115 = vpack.c.b16 %v905, %v900
      %v1116 = vpack.c.b16 %v906, %v901
      %v1117 = vpack.c.b16 %v907, %v902
      %v1118 = vpack.c.b16 %v913, %v908
      %v1119 = vpack.c.b16 %v914, %v909
      %v1120 = vpack.c.b16 %v915, %v910
      %v1121 = vpack.c.b16 %v916, %v911
      %v1122 = vpack.c.b16 %v917, %v912
      %v1123 = vpack.c.b16 %v923, %v918
      %v1124 = vpack.c.b16 %v924, %v919
      %v1125 = vpack.c.b16 %v925, %v920
      %v1126 = vpack.c.b16 %v926, %v921
      %v1127 = vpack.c.b16 %v927, %v922
      %v1128 = vpack.c.b16 %v933, %v928
      %v1129 = vpack.c.b16 %v934, %v929
      %v1130 = vpack.c.b16 %v935, %v930
      %v1131 = vpack.c.b16 %v936, %v931
      %v1132 = vpack.c.b16 %v937, %v932
      %v1133 = vpack.c.b16 %v943, %v938
      %v1134 = vpack.c.b16 %v944, %v939
      %v1135 = vpack.c.b16 %v945, %v940
      %v1136 = vpack.c.b16 %v946, %v941
      %v1137 = vpack.c.b16 %v947, %v942
      %v1138 = vpack.c.b16 %v953, %v948
      %v1139 = vpack.c.b16 %v954, %v949
      %v1140 = vpack.c.b16 %v955, %v950
      %v1141 = vpack.c.b16 %v956, %v951
      %v1142 = vpack.c.b16 %v957, %v952
      %v1143 = vpack.c.b16 %v963, %v958
      %v1144 = vpack.c.b16 %v964, %v959
      %v1145 = vpack.c.b16 %v965, %v960
      %v1146 = vpack.c.b16 %v966, %v961
      %v1147 = vpack.c.b16 %v967, %v962
      %v1148 = vpack.c.b16 %v973, %v968
      %v1149 = vpack.c.b16 %v974, %v969
      %v1150 = vpack.c.b16 %v975, %v970
      %v1151 = vpack.c.b16 %v976, %v971
      %v1152 = vpack.c.b16 %v977, %v972
      %v1153 = vpack.c.b16 %v983, %v978
      %v1154 = vpack.c.b16 %v984, %v979
      %v1155 = vpack.c.b16 %v985, %v980
      %v1156 = vpack.c.b16 %v986, %v981
      %v1157 = vpack.c.b16 %v987, %v982
      %v1158 = vpack.c.b16 %v993, %v988
      %v1159 = vpack.c.b16 %v994, %v989
      %v1160 = vpack.c.b16 %v995, %v990
      %v1161 = vpack.c.b16 %v996, %v991
      %v1162 = vpack.c.b16 %v997, %v992
      %v1163 = vpack.c.b16 %v1003, %v998
      %v1164 = vpack.c.b16 %v1004, %v999
      %v1165 = vpack.c.b16 %v1005, %v1000
      %v1166 = vpack.c.b16 %v1006, %v1001
      %v1167 = vpack.c.b16 %v1007, %v1002
      %v1368 = vunpack.c.l.b16 %v424
      %v1369 = vunpack.c.l.b16 %v425
      %v1370 = vunpack.c.l.b16 %v426
      %v1371 = vunpack.c.l.b16 %v427
      %v1372 = vunpack.c.l.b16 %v428
      %v1373 = vunpack.c.l.b16 %v429
      %v1374 = vunpack.c.l.b16 %v430
      %v1375 = vunpack.c.l.b16 %v431
      %v1376 = vunpack.c.l.b16 %v432
      %v1377 = vunpack.c.l.b16 %v433
      %v1378 = vunpack.c.l.b16 %v434
      %v1379 = vunpack.c.l.b16 %v435
      %v1380 = vunpack.c.l.b16 %v436
      %v1381 = vunpack.c.l.b16 %v437
      %v1382 = vunpack.c.l.b16 %v438
      %v1383 = vunpack.c.l.b16 %v439
      %v1384 = vunpack.c.l.b16 %v440
      %v1385 = vunpack.c.l.b16 %v441
      %v1386 = vunpack.c.l.b16 %v442
      %v1387 = vunpack.c.l.b16 %v443
      %v1388 = vunpack.c.l.b16 %v444
      %v1389 = vunpack.c.l.b16 %v445
      %v1390 = vunpack.c.l.b16 %v446
      %v1391 = vunpack.c.l.b16 %v447
      %v1392 = vunpack.c.l.b16 %v448
      %v1393 = vunpack.c.l.b16 %v449
      %v1394 = vunpack.c.l.b16 %v450
      %v1395 = vunpack.c.l.b16 %v451
      %v1396 = vunpack.c.l.b16 %v452
      %v1397 = vunpack.c.l.b16 %v453
      %v1398 = vunpack.c.l.b16 %v454
      %v1399 = vunpack.c.l.b16 %v455
      %v1400 = vunpack.c.l.b16 %v456
      %v1401 = vunpack.c.l.b16 %v457
      %v1402 = vunpack.c.l.b16 %v458
      %v1403 = vunpack.c.l.b16 %v459
      %v1404 = vunpack.c.l.b16 %v460
      %v1405 = vunpack.c.l.b16 %v461
      %v1406 = vunpack.c.l.b16 %v462
      %v1407 = vunpack.c.l.b16 %v463
      %v1408 = vunpack.c.l.b16 %v464
      %v1409 = vunpack.c.l.b16 %v465
      %v1410 = vunpack.c.l.b16 %v466
      %v1411 = vunpack.c.l.b16 %v467
      %v1412 = vunpack.c.l.b16 %v468
      %v1413 = vunpack.c.l.b16 %v469
      %v1414 = vunpack.c.l.b16 %v470
      %v1415 = vunpack.c.l.b16 %v471
      %v1416 = vunpack.c.l.b16 %v472
      %v1417 = vunpack.c.l.b16 %v473
      %v1418 = vunpack.c.l.b16 %v474
      %v1419 = vunpack.c.l.b16 %v475
      %v1420 = vunpack.c.l.b16 %v476
      %v1421 = vunpack.c.l.b16 %v477
      %v1422 = vunpack.c.l.b16 %v478
      %v1423 = vunpack.c.l.b16 %v479
      %v1424 = vunpack.c.l.b16 %v480
      %v1425 = vunpack.c.l.b16 %v481
      %v1426 = vunpack.c.l.b16 %v482
      %v1427 = vunpack.c.l.b16 %v483
      %v1428 = vunpack.c.l.b16 %v484
      %v1429 = vunpack.c.l.b16 %v485
      %v1430 = vunpack.c.l.b16 %v486
      %v1431 = vunpack.c.l.b16 %v487
      %v1432 = vunpack.c.l.b16 %v488
      %v1433 = vunpack.c.l.b16 %v489
      %v1434 = vunpack.c.l.b16 %v490
      %v1435 = vunpack.c.l.b16 %v491
      %v1436 = vunpack.c.l.b16 %v492
      %v1437 = vunpack.c.l.b16 %v493
      %v1438 = vunpack.c.l.b16 %v494
      %v1439 = vunpack.c.l.b16 %v495
      %v1440 = vpack.c.b16 %v1369, %v1368
      %v1441 = vpack.c.b16 %v1371, %v1370
      %v1442 = vpack.c.b16 %v1373, %v1372
      %v1443 = vpack.c.b16 %v1375, %v1374
      %v1444 = vpack.c.b16 %v1377, %v1376
      %v1445 = vpack.c.b16 %v1379, %v1378
      %v1446 = vpack.c.b16 %v1381, %v1380
      %v1447 = vpack.c.b16 %v1383, %v1382
      %v1448 = vpack.c.b16 %v1385, %v1384
      %v1449 = vpack.c.b16 %v1387, %v1386
      %v1450 = vpack.c.b16 %v1389, %v1388
      %v1451 = vpack.c.b16 %v1391, %v1390
      %v1452 = vpack.c.b16 %v1393, %v1392
      %v1453 = vpack.c.b16 %v1395, %v1394
      %v1454 = vpack.c.b16 %v1397, %v1396
      %v1455 = vpack.c.b16 %v1399, %v1398
      %v1456 = vpack.c.b16 %v1401, %v1400
      %v1457 = vpack.c.b16 %v1403, %v1402
      %v1458 = vpack.c.b16 %v1405, %v1404
      %v1459 = vpack.c.b16 %v1407, %v1406
      %v1460 = vpack.c.b16 %v1409, %v1408
      %v1461 = vpack.c.b16 %v1411, %v1410
      %v1462 = vpack.c.b16 %v1413, %v1412
      %v1463 = vpack.c.b16 %v1415, %v1414
      %v1464 = vpack.c.b16 %v1417, %v1416
      %v1465 = vpack.c.b16 %v1419, %v1418
      %v1466 = vpack.c.b16 %v1421, %v1420
      %v1467 = vpack.c.b16 %v1423, %v1422
      %v1468 = vpack.c.b16 %v1425, %v1424
      %v1469 = vpack.c.b16 %v1427, %v1426
      %v1470 = vpack.c.b16 %v1429, %v1428
      %v1471 = vpack.c.b16 %v1431, %v1430
      %v1472 = vpack.c.b16 %v1433, %v1432
      %v1473 = vpack.c.b16 %v1435, %v1434
      %v1474 = vpack.c.b16 %v1437, %v1436
      %v1475 = vpack.c.b16 %v1439, %v1438
      %vm1512 = vcmask 523264
      %v1514 = vsel %vm1512, %v1012, 0
      %v1517 = vsel %vm1512, %v1017, 0
      %v1520 = vsel %vm1512, %v1022, 0
      %v1523 = vsel %vm1512, %v1027, 0
      %v1526 = vsel %vm1512, %v1032, 0
      %v1529 = vsel %vm1512, %v1037, 0
      %v1532 = vsel %vm1512, %v1042, 0
      %v1535 = vsel %vm1512, %v1047, 0
      %v1538 = vsel %vm1512, %v1052, 0
      %v1541 = vsel %vm1512, %v1057, 0
      %v1544 = vsel %vm1512, %v1062, 0
      %v1547 = vsel %vm1512, %v1067, 0
      %v1550 = vsel %vm1512, %v1072, 0
      %v1553 = vsel %vm1512, %v1077, 0
      %v1556 = vsel %vm1512, %v1082, 0
      %v1559 = vsel %vm1512, %v1087, 0
      %v1562 = vsel %vm1512, %v1092, 0
      %v1565 = vsel %vm1512, %v1097, 0
      %v1568 = vsel %vm1512, %v1102, 0
      %v1571 = vsel %vm1512, %v1107, 0
      %v1574 = vsel %vm1512, %v1112, 0
      %v1577 = vsel %vm1512, %v1117, 0
      %v1580 = vsel %vm1512, %v1122, 0
      %v1583 = vsel %vm1512, %v1127, 0
      %v1586 = vsel %vm1512, %v1132, 0
      %v1589 = vsel %vm1512, %v1137, 0
      %v1592 = vsel %vm1512, %v1142, 0
      %v1595 = vsel %vm1512, %v1147, 0
      %v1598 = vsel %vm1512, %v1152, 0
      %v1601 = vsel %vm1512, %v1157, 0
      %v1604 = vsel %vm1512, %v1162, 0
      %v1607 = vsel %vm1512, %v1167, 0
      %1609 = vmatprep.subr.bf16.mxu0 0
      %1610 = vmatpush1.bf16.msra.mxu0 %v1440
      %1611 = vmatprep.subr.bf16.mxu0 0
      %1612 = vmatpush1.bf16.msra.mxu0 %v1441
      %1613 = vmatprep.subr.bf16.mxu0 0
      %1614 = vmatpush1.bf16.msra.mxu0 %v1442
      %1615 = vmatprep.subr.bf16.mxu0 0
      %1616 = vmatpush1.bf16.msra.mxu0 %v1443
      %1617 = vmatprep.subr.bf16.mxu0 0
      %1618 = vmatpush1.bf16.msra.mxu0 %v1444
      %1619 = vmatprep.subr.bf16.mxu0 0
      %1620 = vmatpush1.bf16.msra.mxu0 %v1445
      %1621 = vmatprep.subr.bf16.mxu0 0
      %1622 = vmatpush1.bf16.msra.mxu0 %v1446
      %1623 = vmatprep.subr.bf16.mxu0 0
      %1624 = vmatpush1.bf16.msra.mxu0 %v1447
      %1625 = vmatprep.subr.bf16.mxu0 0
      %1626 = vmatpush1.bf16.msra.mxu0 %v1448
      %1627 = vmatprep.subr.bf16.mxu0 0
      %1628 = vmatpush1.bf16.msra.mxu0 %v1449
      %1629 = vmatprep.subr.bf16.mxu0 0
      %1630 = vmatpush1.bf16.msra.mxu0 %v1450
      %1631 = vmatprep.subr.bf16.mxu0 0
      %1632 = vmatpush1.bf16.msra.mxu0 %v1451
      %1633 = vmatprep.subr.bf16.mxu0 0
      %1634 = vmatpush1.bf16.msra.mxu0 %v1452
      %1635 = vmatprep.subr.bf16.mxu0 0
      %1636 = vmatpush1.bf16.msra.mxu0 %v1453
      %1637 = vmatprep.subr.bf16.mxu0 0
      %1638 = vmatpush1.bf16.msra.mxu0 %v1454
      %1639 = vmatprep.subr.bf16.mxu0 0
      %1640 = vmatpush1.bf16.msra.mxu0 %v1455
      %1641 = vmatprep.mubr.bf16.mxu0 %v1009
      %1642 = vmatmul.mubr.bf16.gmra.mrb[0].mxu0 %v1008
      %v1643 = vpop.f32.mrb[0].mxu0
      %v1644 = vadd.f32 0.0, %v1643
      %v1645 = vpop.f32.mrb[0].mxu0
      %v1646 = vpop.f32.mrb[0].mxu0
      %v1647 = vadd.f32 0.0, %v1646
      %v1648 = vpop.f32.mrb[0].mxu0
      %1649 = vmatprep.mubr.bf16.mxu0 %v1014
      %1650 = vmatmul.mubr.bf16.gmra.mrb[0].mxu0 %v1013
      %v1651 = vpop.f32.mrb[0].mxu0
      %v1652 = vadd.f32 0.0, %v1651
      %v1653 = vpop.f32.mrb[0].mxu0
      %v1654 = vpop.f32.mrb[0].mxu0
      %v1655 = vadd.f32 0.0, %v1654
      %v1656 = vpop.f32.mrb[0].mxu0
      %1657 = vmatprep.mubr.bf16.mxu0 %v1019
      %1658 = vmatmul.mubr.bf16.gmra.mrb[0].mxu0 %v1018
      %v1659 = vpop.f32.mrb[0].mxu0
      %v1660 = vadd.f32 0.0, %v1659
      %v1661 = vpop.f32.mrb[0].mxu0
      %v1662 = vpop.f32.mrb[0].mxu0
      %v1663 = vadd.f32 0.0, %v1662
      %v1664 = vpop.f32.mrb[0].mxu0
      %1665 = vmatprep.mubr.bf16.mxu0 %v1024
      %1666 = vmatmul.mubr.bf16.gmra.mrb[0].mxu0 %v1023
      %v1667 = vpop.f32.mrb[0].mxu0
      %v1668 = vadd.f32 0.0, %v1667
      %v1669 = vpop.f32.mrb[0].mxu0
      %v1670 = vpop.f32.mrb[0].mxu0
      %v1671 = vadd.f32 0.0, %v1670
      %v1672 = vpop.f32.mrb[0].mxu0
      %1673 = vmatprep.mubr.bf16.mxu0 %v1029
      %1674 = vmatmul.mubr.bf16.gmra.mrb[0].mxu0 %v1028
      %v1675 = vpop.f32.mrb[0].mxu0
      %v1676 = vadd.f32 0.0, %v1675
      %v1677 = vpop.f32.mrb[0].mxu0
      %v1678 = vpop.f32.mrb[0].mxu0
      %v1679 = vadd.f32 0.0, %v1678
      %v1680 = vpop.f32.mrb[0].mxu0
      %1681 = vmatprep.mubr.bf16.mxu0 %v1034
      %1682 = vmatmul.mubr.bf16.gmra.mrb[0].mxu0 %v1033
      %v1683 = vpop.f32.mrb[0].mxu0
      %v1684 = vadd.f32 0.0, %v1683
      %v1685 = vpop.f32.mrb[0].mxu0
      %v1686 = vpop.f32.mrb[0].mxu0
      %v1687 = vadd.f32 0.0, %v1686
      %v1688 = vpop.f32.mrb[0].mxu0
      %1689 = vmatprep.mubr.bf16.mxu0 %v1039
      %1690 = vmatmul.mubr.bf16.gmra.mrb[0].mxu0 %v1038
      %v1691 = vpop.f32.mrb[0].mxu0
      %v1692 = vadd.f32 0.0, %v1691
      %v1693 = vpop.f32.mrb[0].mxu0
      %v1694 = vpop.f32.mrb[0].mxu0
      %v1695 = vadd.f32 0.0, %v1694
      %v1696 = vpop.f32.mrb[0].mxu0
      %1697 = vmatprep.mubr.bf16.mxu0 %v1044
      %1698 = vmatmul.mubr.bf16.gmra.mrb[0].mxu0 %v1043
      %v1699 = vpop.f32.mrb[0].mxu0
      %v1700 = vadd.f32 0.0, %v1699
      %v1701 = vpop.f32.mrb[0].mxu0
      %v1702 = vpop.f32.mrb[0].mxu0
      %v1703 = vadd.f32 0.0, %v1702
      %v1704 = vpop.f32.mrb[0].mxu0
      %1705 = vmatprep.mubr.bf16.mxu0 %v1049
      %1706 = vmatmul.mubr.bf16.gmra.mrb[0].mxu0 %v1048
      %v1707 = vpop.f32.mrb[0].mxu0
      %v1708 = vadd.f32 0.0, %v1707
      %v1709 = vpop.f32.mrb[0].mxu0
      %v1710 = vpop.f32.mrb[0].mxu0
      %v1711 = vadd.f32 0.0, %v1710
      %v1712 = vpop.f32.mrb[0].mxu0
      %1713 = vmatprep.mubr.bf16.mxu0 %v1054
      %1714 = vmatmul.mubr.bf16.gmra.mrb[0].mxu0 %v1053
      %v1715 = vpop.f32.mrb[0].mxu0
      %v1716 = vadd.f32 0.0, %v1715
      %v1717 = vpop.f32.mrb[0].mxu0
      %v1718 = vpop.f32.mrb[0].mxu0
      %v1719 = vadd.f32 0.0, %v1718
      %v1720 = vpop.f32.mrb[0].mxu0
      %1721 = vmatprep.mubr.bf16.mxu0 %v1059
      %1722 = vmatmul.mubr.bf16.gmra.mrb[0].mxu0 %v1058
      %v1723 = vpop.f32.mrb[0].mxu0
      %v1724 = vadd.f32 0.0, %v1723
      %v1725 = vpop.f32.mrb[0].mxu0
      %v1726 = vpop.f32.mrb[0].mxu0
      %v1727 = vadd.f32 0.0, %v1726
      %v1728 = vpop.f32.mrb[0].mxu0
      %1729 = vmatprep.mubr.bf16.mxu0 %v1064
      %1730 = vmatmul.mubr.bf16.gmra.mrb[0].mxu0 %v1063
      %v1731 = vpop.f32.mrb[0].mxu0
      %v1732 = vadd.f32 0.0, %v1731
      %v1733 = vpop.f32.mrb[0].mxu0
      %v1734 = vpop.f32.mrb[0].mxu0
      %v1735 = vadd.f32 0.0, %v1734
      %v1736 = vpop.f32.mrb[0].mxu0
      %1737 = vmatprep.mubr.bf16.mxu0 %v1069
      %1738 = vmatmul.mubr.bf16.gmra.mrb[0].mxu0 %v1068
      %v1739 = vpop.f32.mrb[0].mxu0
      %v1740 = vadd.f32 0.0, %v1739
      %v1741 = vpop.f32.mrb[0].mxu0
      %v1742 = vpop.f32.mrb[0].mxu0
      %v1743 = vadd.f32 0.0, %v1742
      %v1744 = vpop.f32.mrb[0].mxu0
      %1745 = vmatprep.mubr.bf16.mxu0 %v1074
      %1746 = vmatmul.mubr.bf16.gmra.mrb[0].mxu0 %v1073
      %v1747 = vpop.f32.mrb[0].mxu0
      %v1748 = vadd.f32 0.0, %v1747
      %v1749 = vpop.f32.mrb[0].mxu0
      %v1750 = vpop.f32.mrb[0].mxu0
      %v1751 = vadd.f32 0.0, %v1750
      %v1752 = vpop.f32.mrb[0].mxu0
      %1753 = vmatprep.mubr.bf16.mxu0 %v1079
      %1754 = vmatmul.mubr.bf16.gmra.mrb[0].mxu0 %v1078
      %v1755 = vpop.f32.mrb[0].mxu0
      %v1756 = vadd.f32 0.0, %v1755
      %v1757 = vpop.f32.mrb[0].mxu0
      %v1758 = vpop.f32.mrb[0].mxu0
      %v1759 = vadd.f32 0.0, %v1758
      %v1760 = vpop.f32.mrb[0].mxu0
      %1761 = vmatprep.mubr.bf16.mxu0 %v1084
      %1762 = vmatmul.mubr.bf16.gmra.mrb[0].mxu0 %v1083
      %v1763 = vpop.f32.mrb[0].mxu0
      %v1764 = vadd.f32 0.0, %v1763
      %v1765 = vpop.f32.mrb[0].mxu0
      %v1766 = vpop.f32.mrb[0].mxu0
      %v1767 = vadd.f32 0.0, %v1766
      %v1768 = vpop.f32.mrb[0].mxu0
      %1769 = vmatprep.mubr.bf16.mxu0 %v1089
      %1770 = vmatmul.mubr.bf16.gmra.mrb[0].mxu0 %v1088
      %v1771 = vpop.f32.mrb[0].mxu0
      %v1772 = vadd.f32 0.0, %v1771
      %v1773 = vpop.f32.mrb[0].mxu0
      %v1774 = vpop.f32.mrb[0].mxu0
      %v1775 = vadd.f32 0.0, %v1774
      %v1776 = vpop.f32.mrb[0].mxu0
      %1777 = vmatprep.mubr.bf16.mxu0 %v1094
      %1778 = vmatmul.mubr.bf16.gmra.mrb[0].mxu0 %v1093
      %v1779 = vpop.f32.mrb[0].mxu0
      %v1780 = vadd.f32 0.0, %v1779
      %v1781 = vpop.f32.mrb[0].mxu0
      %v1782 = vpop.f32.mrb[0].mxu0
      %v1783 = vadd.f32 0.0, %v1782
      %v1784 = vpop.f32.mrb[0].mxu0
      %1785 = vmatprep.mubr.bf16.mxu0 %v1099
      %1786 = vmatmul.mubr.bf16.gmra.mrb[0].mxu0 %v1098
      %v1787 = vpop.f32.mrb[0].mxu0
      %v1788 = vadd.f32 0.0, %v1787
      %v1789 = vpop.f32.mrb[0].mxu0
      %v1790 = vpop.f32.mrb[0].mxu0
      %v1791 = vadd.f32 0.0, %v1790
      %v1792 = vpop.f32.mrb[0].mxu0
      %1793 = vmatprep.mubr.bf16.mxu0 %v1104
      %1794 = vmatmul.mubr.bf16.gmra.mrb[0].mxu0 %v1103
      %v1795 = vpop.f32.mrb[0].mxu0
      %v1796 = vadd.f32 0.0, %v1795
      %v1797 = vpop.f32.mrb[0].mxu0
      %v1798 = vpop.f32.mrb[0].mxu0
      %v1799 = vadd.f32 0.0, %v1798
      %v1800 = vpop.f32.mrb[0].mxu0
      %1801 = vmatprep.mubr.bf16.mxu0 %v1109
      %1802 = vmatmul.mubr.bf16.gmra.mrb[0].mxu0 %v1108
      %v1803 = vpop.f32.mrb[0].mxu0
      %v1804 = vadd.f32 0.0, %v1803
      %v1805 = vpop.f32.mrb[0].mxu0
      %v1806 = vpop.f32.mrb[0].mxu0
      %v1807 = vadd.f32 0.0, %v1806
      %v1808 = vpop.f32.mrb[0].mxu0
      %1809 = vmatprep.mubr.bf16.mxu0 %v1114
      %1810 = vmatmul.mubr.bf16.gmra.mrb[0].mxu0 %v1113
      %v1811 = vpop.f32.mrb[0].mxu0
      %v1812 = vadd.f32 0.0, %v1811
      %v1813 = vpop.f32.mrb[0].mxu0
      %v1814 = vpop.f32.mrb[0].mxu0
      %v1815 = vadd.f32 0.0, %v1814
      %v1816 = vpop.f32.mrb[0].mxu0
      %1817 = vmatprep.mubr.bf16.mxu0 %v1119
      %1818 = vmatmul.mubr.bf16.gmra.mrb[0].mxu0 %v1118
      %v1819 = vpop.f32.mrb[0].mxu0
      %v1820 = vadd.f32 0.0, %v1819
      %v1821 = vpop.f32.mrb[0].mxu0
      %v1822 = vpop.f32.mrb[0].mxu0
      %v1823 = vadd.f32 0.0, %v1822
      %v1824 = vpop.f32.mrb[0].mxu0
      %1825 = vmatprep.mubr.bf16.mxu0 %v1124
      %1826 = vmatmul.mubr.bf16.gmra.mrb[0].mxu0 %v1123
      %v1827 = vpop.f32.mrb[0].mxu0
      %v1828 = vadd.f32 0.0, %v1827
      %v1829 = vpop.f32.mrb[0].mxu0
      %v1830 = vpop.f32.mrb[0].mxu0
      %v1831 = vadd.f32 0.0, %v1830
      %v1832 = vpop.f32.mrb[0].mxu0
      %1833 = vmatprep.mubr.bf16.mxu0 %v1129
      %1834 = vmatmul.mubr.bf16.gmra.mrb[0].mxu0 %v1128
      %v1835 = vpop.f32.mrb[0].mxu0
      %v1836 = vadd.f32 0.0, %v1835
      %v1837 = vpop.f32.mrb[0].mxu0
      %v1838 = vpop.f32.mrb[0].mxu0
      %v1839 = vadd.f32 0.0, %v1838
      %v1840 = vpop.f32.mrb[0].mxu0
      %1841 = vmatprep.mubr.bf16.mxu0 %v1134
      %1842 = vmatmul.mubr.bf16.gmra.mrb[0].mxu0 %v1133
      %v1843 = vpop.f32.mrb[0].mxu0
      %v1844 = vadd.f32 0.0, %v1843
      %v1845 = vpop.f32.mrb[0].mxu0
      %v1846 = vpop.f32.mrb[0].mxu0
      %v1847 = vadd.f32 0.0, %v1846
      %v1848 = vpop.f32.mrb[0].mxu0
      %1849 = vmatprep.mubr.bf16.mxu0 %v1139
      %1850 = vmatmul.mubr.bf16.gmra.mrb[0].mxu0 %v1138
      %v1851 = vpop.f32.mrb[0].mxu0
      %v1852 = vadd.f32 0.0, %v1851
      %v1853 = vpop.f32.mrb[0].mxu0
      %v1854 = vpop.f32.mrb[0].mxu0
      %v1855 = vadd.f32 0.0, %v1854
      %v1856 = vpop.f32.mrb[0].mxu0
      %1857 = vmatprep.mubr.bf16.mxu0 %v1144
      %1858 = vmatmul.mubr.bf16.gmra.mrb[0].mxu0 %v1143
      %v1859 = vpop.f32.mrb[0].mxu0
      %v1860 = vadd.f32 0.0, %v1859
      %v1861 = vpop.f32.mrb[0].mxu0
      %v1862 = vpop.f32.mrb[0].mxu0
      %v1863 = vadd.f32 0.0, %v1862
      %v1864 = vpop.f32.mrb[0].mxu0
      %1865 = vmatprep.mubr.bf16.mxu0 %v1149
      %1866 = vmatmul.mubr.bf16.gmra.mrb[0].mxu0 %v1148
      %v1867 = vpop.f32.mrb[0].mxu0
      %v1868 = vadd.f32 0.0, %v1867
      %v1869 = vpop.f32.mrb[0].mxu0
      %v1870 = vpop.f32.mrb[0].mxu0
      %v1871 = vadd.f32 0.0, %v1870
      %v1872 = vpop.f32.mrb[0].mxu0
      %1873 = vmatprep.mubr.bf16.mxu0 %v1154
      %1874 = vmatmul.mubr.bf16.gmra.mrb[0].mxu0 %v1153
      %v1875 = vpop.f32.mrb[0].mxu0
      %v1876 = vadd.f32 0.0, %v1875
      %v1877 = vpop.f32.mrb[0].mxu0
      %v1878 = vpop.f32.mrb[0].mxu0
      %v1879 = vadd.f32 0.0, %v1878
      %v1880 = vpop.f32.mrb[0].mxu0
      %1881 = vmatprep.mubr.bf16.mxu0 %v1159
      %1882 = vmatmul.mubr.bf16.gmra.mrb[0].mxu0 %v1158
      %v1883 = vpop.f32.mrb[0].mxu0
      %v1884 = vadd.f32 0.0, %v1883
      %v1885 = vpop.f32.mrb[0].mxu0
      %v1886 = vpop.f32.mrb[0].mxu0
      %v1887 = vadd.f32 0.0, %v1886
      %v1888 = vpop.f32.mrb[0].mxu0
      %1889 = vmatprep.mubr.bf16.mxu0 %v1164
      %1890 = vmatmul.mubr.bf16.gmra.mrb[0].mxu0 %v1163
      %v1891 = vpop.f32.mrb[0].mxu0
      %v1892 = vadd.f32 0.0, %v1891
      %v1893 = vpop.f32.mrb[0].mxu0
      %v1894 = vpop.f32.mrb[0].mxu0
      %v1895 = vadd.f32 0.0, %v1894
      %v1896 = vpop.f32.mrb[0].mxu0
      %1897 = vdwg.mxu0
      %1898 = vmatprep.subr.bf16.mxu0 0
      %1899 = vmatpush1.bf16.msra.mxu0 %v1456
      %1900 = vmatprep.subr.bf16.mxu0 0
      %1901 = vmatpush1.bf16.msra.mxu0 %v1457
      %1902 = vmatprep.subr.bf16.mxu0 0
      %1903 = vmatpush1.bf16.msra.mxu0 %v1458
      %1904 = vmatprep.subr.bf16.mxu0 0
      %1905 = vmatpush1.bf16.msra.mxu0 %v1459
      %1906 = vmatprep.subr.bf16.mxu0 0
      %1907 = vmatpush1.bf16.msra.mxu0 %v1460
      %1908 = vmatprep.subr.bf16.mxu0 0
      %1909 = vmatpush1.bf16.msra.mxu0 %v1461
      %1910 = vmatprep.subr.bf16.mxu0 0
      %1911 = vmatpush1.bf16.msra.mxu0 %v1462
      %1912 = vmatprep.subr.bf16.mxu0 0
      %1913 = vmatpush1.bf16.msra.mxu0 %v1463
      %1914 = vmatprep.subr.bf16.mxu0 0
      %1915 = vmatpush1.bf16.msra.mxu0 %v1464
      %1916 = vmatprep.subr.bf16.mxu0 0
      %1917 = vmatpush1.bf16.msra.mxu0 %v1465
      %1918 = vmatprep.subr.bf16.mxu0 0
      %1919 = vmatpush1.bf16.msra.mxu0 %v1466
      %1920 = vmatprep.subr.bf16.mxu0 0
      %1921 = vmatpush1.bf16.msra.mxu0 %v1467
      %1922 = vmatprep.subr.bf16.mxu0 0
      %1923 = vmatpush1.bf16.msra.mxu0 %v1468
      %1924 = vmatprep.subr.bf16.mxu0 0
      %1925 = vmatpush1.bf16.msra.mxu0 %v1469
      %1926 = vmatprep.subr.bf16.mxu0 0
      %1927 = vmatpush1.bf16.msra.mxu0 %v1470
      %1928 = vmatprep.subr.bf16.mxu0 0
      %1929 = vmatpush1.bf16.msra.mxu0 %v1471
      %1930 = vmatprep.mubr.bf16.mxu0 %v1011
      %1931 = vmatmul.mubr.bf16.gmra.mrb[0].mxu0 %v1010
      %v1932 = vpop.f32.mrb[0].mxu0
      %v1933 = vadd.f32 %v1644, %v1932
      %v1934 = vpop.f32.mrb[0].mxu0
      %v1935 = vpop.f32.mrb[0].mxu0
      %v1936 = vadd.f32 %v1647, %v1935
      %v1937 = vpop.f32.mrb[0].mxu0
      %1938 = vmatprep.mubr.bf16.mxu0 %v1016
      %1939 = vmatmul.mubr.bf16.gmra.mrb[0].mxu0 %v1015
      %v1940 = vpop.f32.mrb[0].mxu0
      %v1941 = vadd.f32 %v1652, %v1940
      %v1942 = vpop.f32.mrb[0].mxu0
      %v1943 = vpop.f32.mrb[0].mxu0
      %v1944 = vadd.f32 %v1655, %v1943
      %v1945 = vpop.f32.mrb[0].mxu0
      %1946 = vmatprep.mubr.bf16.mxu0 %v1021
      %1947 = vmatmul.mubr.bf16.gmra.mrb[0].mxu0 %v1020
      %v1948 = vpop.f32.mrb[0].mxu0
      %v1949 = vadd.f32 %v1660, %v1948
      %v1950 = vpop.f32.mrb[0].mxu0
      %v1951 = vpop.f32.mrb[0].mxu0
      %v1952 = vadd.f32 %v1663, %v1951
      %v1953 = vpop.f32.mrb[0].mxu0
      %1954 = vmatprep.mubr.bf16.mxu0 %v1026
      %1955 = vmatmul.mubr.bf16.gmra.mrb[0].mxu0 %v1025
      %v1956 = vpop.f32.mrb[0].mxu0
      %v1957 = vadd.f32 %v1668, %v1956
      %v1958 = vpop.f32.mrb[0].mxu0
      %v1959 = vpop.f32.mrb[0].mxu0
      %v1960 = vadd.f32 %v1671, %v1959
      %v1961 = vpop.f32.mrb[0].mxu0
      %1962 = vmatprep.mubr.bf16.mxu0 %v1031
      %1963 = vmatmul.mubr.bf16.gmra.mrb[0].mxu0 %v1030
      %v1964 = vpop.f32.mrb[0].mxu0
      %v1965 = vadd.f32 %v1676, %v1964
      %v1966 = vpop.f32.mrb[0].mxu0
      %v1967 = vpop.f32.mrb[0].mxu0
      %v1968 = vadd.f32 %v1679, %v1967
      %v1969 = vpop.f32.mrb[0].mxu0
      %1970 = vmatprep.mubr.bf16.mxu0 %v1036
      %1971 = vmatmul.mubr.bf16.gmra.mrb[0].mxu0 %v1035
      %v1972 = vpop.f32.mrb[0].mxu0
      %v1973 = vadd.f32 %v1684, %v1972
      %v1974 = vpop.f32.mrb[0].mxu0
      %v1975 = vpop.f32.mrb[0].mxu0
      %v1976 = vadd.f32 %v1687, %v1975
      %v1977 = vpop.f32.mrb[0].mxu0
      %1978 = vmatprep.mubr.bf16.mxu0 %v1041
      %1979 = vmatmul.mubr.bf16.gmra.mrb[0].mxu0 %v1040
      %v1980 = vpop.f32.mrb[0].mxu0
      %v1981 = vadd.f32 %v1692, %v1980
      %v1982 = vpop.f32.mrb[0].mxu0
      %v1983 = vpop.f32.mrb[0].mxu0
      %v1984 = vadd.f32 %v1695, %v1983
      %v1985 = vpop.f32.mrb[0].mxu0
      %1986 = vmatprep.mubr.bf16.mxu0 %v1046
      %1987 = vmatmul.mubr.bf16.gmra.mrb[0].mxu0 %v1045
      %v1988 = vpop.f32.mrb[0].mxu0
      %v1989 = vadd.f32 %v1700, %v1988
      %v1990 = vpop.f32.mrb[0].mxu0
      %v1991 = vpop.f32.mrb[0].mxu0
      %v1992 = vadd.f32 %v1703, %v1991
      %v1993 = vpop.f32.mrb[0].mxu0
      %1994 = vmatprep.mubr.bf16.mxu0 %v1051
      %1995 = vmatmul.mubr.bf16.gmra.mrb[0].mxu0 %v1050
      %v1996 = vpop.f32.mrb[0].mxu0
      %v1997 = vadd.f32 %v1708, %v1996
      %v1998 = vpop.f32.mrb[0].mxu0
      %v1999 = vpop.f32.mrb[0].mxu0
      %v2000 = vadd.f32 %v1711, %v1999
      %v2001 = vpop.f32.mrb[0].mxu0
      %2002 = vmatprep.mubr.bf16.mxu0 %v1056
      %2003 = vmatmul.mubr.bf16.gmra.mrb[0].mxu0 %v1055
      %v2004 = vpop.f32.mrb[0].mxu0
      %v2005 = vadd.f32 %v1716, %v2004
      %v2006 = vpop.f32.mrb[0].mxu0
      %v2007 = vpop.f32.mrb[0].mxu0
      %v2008 = vadd.f32 %v1719, %v2007
      %v2009 = vpop.f32.mrb[0].mxu0
      %2010 = vmatprep.mubr.bf16.mxu0 %v1061
      %2011 = vmatmul.mubr.bf16.gmra.mrb[0].mxu0 %v1060
      %v2012 = vpop.f32.mrb[0].mxu0
      %v2013 = vadd.f32 %v1724, %v2012
      %v2014 = vpop.f32.mrb[0].mxu0
      %v2015 = vpop.f32.mrb[0].mxu0
      %v2016 = vadd.f32 %v1727, %v2015
      %v2017 = vpop.f32.mrb[0].mxu0
      %2018 = vmatprep.mubr.bf16.mxu0 %v1066
      %2019 = vmatmul.mubr.bf16.gmra.mrb[0].mxu0 %v1065
      %v2020 = vpop.f32.mrb[0].mxu0
      %v2021 = vadd.f32 %v1732, %v2020
      %v2022 = vpop.f32.mrb[0].mxu0
      %v2023 = vpop.f32.mrb[0].mxu0
      %v2024 = vadd.f32 %v1735, %v2023
      %v2025 = vpop.f32.mrb[0].mxu0
      %2026 = vmatprep.mubr.bf16.mxu0 %v1071
      %2027 = vmatmul.mubr.bf16.gmra.mrb[0].mxu0 %v1070
      %v2028 = vpop.f32.mrb[0].mxu0
      %v2029 = vadd.f32 %v1740, %v2028
      %v2030 = vpop.f32.mrb[0].mxu0
      %v2031 = vpop.f32.mrb[0].mxu0
      %v2032 = vadd.f32 %v1743, %v2031
      %v2033 = vpop.f32.mrb[0].mxu0
      %2034 = vmatprep.mubr.bf16.mxu0 %v1076
      %2035 = vmatmul.mubr.bf16.gmra.mrb[0].mxu0 %v1075
      %v2036 = vpop.f32.mrb[0].mxu0
      %v2037 = vadd.f32 %v1748, %v2036
      %v2038 = vpop.f32.mrb[0].mxu0
      %v2039 = vpop.f32.mrb[0].mxu0
      %v2040 = vadd.f32 %v1751, %v2039
      %v2041 = vpop.f32.mrb[0].mxu0
      %2042 = vmatprep.mubr.bf16.mxu0 %v1081
      %2043 = vmatmul.mubr.bf16.gmra.mrb[0].mxu0 %v1080
      %v2044 = vpop.f32.mrb[0].mxu0
      %v2045 = vadd.f32 %v1756, %v2044
      %v2046 = vpop.f32.mrb[0].mxu0
      %v2047 = vpop.f32.mrb[0].mxu0
      %v2048 = vadd.f32 %v1759, %v2047
      %v2049 = vpop.f32.mrb[0].mxu0
      %2050 = vmatprep.mubr.bf16.mxu0 %v1086
      %2051 = vmatmul.mubr.bf16.gmra.mrb[0].mxu0 %v1085
      %v2052 = vpop.f32.mrb[0].mxu0
      %v2053 = vadd.f32 %v1764, %v2052
      %v2054 = vpop.f32.mrb[0].mxu0
      %v2055 = vpop.f32.mrb[0].mxu0
      %v2056 = vadd.f32 %v1767, %v2055
      %v2057 = vpop.f32.mrb[0].mxu0
      %2058 = vmatprep.mubr.bf16.mxu0 %v1091
      %2059 = vmatmul.mubr.bf16.gmra.mrb[0].mxu0 %v1090
      %v2060 = vpop.f32.mrb[0].mxu0
      %v2061 = vadd.f32 %v1772, %v2060
      %v2062 = vpop.f32.mrb[0].mxu0
      %v2063 = vpop.f32.mrb[0].mxu0
      %v2064 = vadd.f32 %v1775, %v2063
      %v2065 = vpop.f32.mrb[0].mxu0
      %2066 = vmatprep.mubr.bf16.mxu0 %v1096
      %2067 = vmatmul.mubr.bf16.gmra.mrb[0].mxu0 %v1095
      %v2068 = vpop.f32.mrb[0].mxu0
      %v2069 = vadd.f32 %v1780, %v2068
      %v2070 = vpop.f32.mrb[0].mxu0
      %v2071 = vpop.f32.mrb[0].mxu0
      %v2072 = vadd.f32 %v1783, %v2071
      %v2073 = vpop.f32.mrb[0].mxu0
      %2074 = vmatprep.mubr.bf16.mxu0 %v1101
      %2075 = vmatmul.mubr.bf16.gmra.mrb[0].mxu0 %v1100
      %v2076 = vpop.f32.mrb[0].mxu0
      %v2077 = vadd.f32 %v1788, %v2076
      %v2078 = vpop.f32.mrb[0].mxu0
      %v2079 = vpop.f32.mrb[0].mxu0
      %v2080 = vadd.f32 %v1791, %v2079
      %v2081 = vpop.f32.mrb[0].mxu0
      %2082 = vmatprep.mubr.bf16.mxu0 %v1106
      %2083 = vmatmul.mubr.bf16.gmra.mrb[0].mxu0 %v1105
      %v2084 = vpop.f32.mrb[0].mxu0
      %v2085 = vadd.f32 %v1796, %v2084
      %v2086 = vpop.f32.mrb[0].mxu0
      %v2087 = vpop.f32.mrb[0].mxu0
      %v2088 = vadd.f32 %v1799, %v2087
      %v2089 = vpop.f32.mrb[0].mxu0
      %2090 = vmatprep.mubr.bf16.mxu0 %v1111
      %2091 = vmatmul.mubr.bf16.gmra.mrb[0].mxu0 %v1110
      %v2092 = vpop.f32.mrb[0].mxu0
      %v2093 = vadd.f32 %v1804, %v2092
      %v2094 = vpop.f32.mrb[0].mxu0
      %v2095 = vpop.f32.mrb[0].mxu0
      %v2096 = vadd.f32 %v1807, %v2095
      %v2097 = vpop.f32.mrb[0].mxu0
      %2098 = vmatprep.mubr.bf16.mxu0 %v1116
      %2099 = vmatmul.mubr.bf16.gmra.mrb[0].mxu0 %v1115
      %v2100 = vpop.f32.mrb[0].mxu0
      %v2101 = vadd.f32 %v1812, %v2100
      %v2102 = vpop.f32.mrb[0].mxu0
      %v2103 = vpop.f32.mrb[0].mxu0
      %v2104 = vadd.f32 %v1815, %v2103
      %v2105 = vpop.f32.mrb[0].mxu0
      %2106 = vmatprep.mubr.bf16.mxu0 %v1121
      %2107 = vmatmul.mubr.bf16.gmra.mrb[0].mxu0 %v1120
      %v2108 = vpop.f32.mrb[0].mxu0
      %v2109 = vadd.f32 %v1820, %v2108
      %v2110 = vpop.f32.mrb[0].mxu0
      %v2111 = vpop.f32.mrb[0].mxu0
      %v2112 = vadd.f32 %v1823, %v2111
      %v2113 = vpop.f32.mrb[0].mxu0
      %2114 = vmatprep.mubr.bf16.mxu0 %v1126
      %2115 = vmatmul.mubr.bf16.gmra.mrb[0].mxu0 %v1125
      %v2116 = vpop.f32.mrb[0].mxu0
      %v2117 = vadd.f32 %v1828, %v2116
      %v2118 = vpop.f32.mrb[0].mxu0
      %v2119 = vpop.f32.mrb[0].mxu0
      %v2120 = vadd.f32 %v1831, %v2119
      %v2121 = vpop.f32.mrb[0].mxu0
      %2122 = vmatprep.mubr.bf16.mxu0 %v1131
      %2123 = vmatmul.mubr.bf16.gmra.mrb[0].mxu0 %v1130
      %v2124 = vpop.f32.mrb[0].mxu0
      %v2125 = vadd.f32 %v1836, %v2124
      %v2126 = vpop.f32.mrb[0].mxu0
      %v2127 = vpop.f32.mrb[0].mxu0
      %v2128 = vadd.f32 %v1839, %v2127
      %v2129 = vpop.f32.mrb[0].mxu0
      %2130 = vmatprep.mubr.bf16.mxu0 %v1136
      %2131 = vmatmul.mubr.bf16.gmra.mrb[0].mxu0 %v1135
      %v2132 = vpop.f32.mrb[0].mxu0
      %v2133 = vadd.f32 %v1844, %v2132
      %v2134 = vpop.f32.mrb[0].mxu0
      %v2135 = vpop.f32.mrb[0].mxu0
      %v2136 = vadd.f32 %v1847, %v2135
      %v2137 = vpop.f32.mrb[0].mxu0
      %2138 = vmatprep.mubr.bf16.mxu0 %v1141
      %2139 = vmatmul.mubr.bf16.gmra.mrb[0].mxu0 %v1140
      %v2140 = vpop.f32.mrb[0].mxu0
      %v2141 = vadd.f32 %v1852, %v2140
      %v2142 = vpop.f32.mrb[0].mxu0
      %v2143 = vpop.f32.mrb[0].mxu0
      %v2144 = vadd.f32 %v1855, %v2143
      %v2145 = vpop.f32.mrb[0].mxu0
      %2146 = vmatprep.mubr.bf16.mxu0 %v1146
      %2147 = vmatmul.mubr.bf16.gmra.mrb[0].mxu0 %v1145
      %v2148 = vpop.f32.mrb[0].mxu0
      %v2149 = vadd.f32 %v1860, %v2148
      %v2150 = vpop.f32.mrb[0].mxu0
      %v2151 = vpop.f32.mrb[0].mxu0
      %v2152 = vadd.f32 %v1863, %v2151
      %v2153 = vpop.f32.mrb[0].mxu0
      %2154 = vmatprep.mubr.bf16.mxu0 %v1151
      %2155 = vmatmul.mubr.bf16.gmra.mrb[0].mxu0 %v1150
      %v2156 = vpop.f32.mrb[0].mxu0
      %v2157 = vadd.f32 %v1868, %v2156
      %v2158 = vpop.f32.mrb[0].mxu0
      %v2159 = vpop.f32.mrb[0].mxu0
      %v2160 = vadd.f32 %v1871, %v2159
      %v2161 = vpop.f32.mrb[0].mxu0
      %2162 = vmatprep.mubr.bf16.mxu0 %v1156
      %2163 = vmatmul.mubr.bf16.gmra.mrb[0].mxu0 %v1155
      %v2164 = vpop.f32.mrb[0].mxu0
      %v2165 = vadd.f32 %v1876, %v2164
      %v2166 = vpop.f32.mrb[0].mxu0
      %v2167 = vpop.f32.mrb[0].mxu0
      %v2168 = vadd.f32 %v1879, %v2167
      %v2169 = vpop.f32.mrb[0].mxu0
      %2170 = vmatprep.mubr.bf16.mxu0 %v1161
      %2171 = vmatmul.mubr.bf16.gmra.mrb[0].mxu0 %v1160
      %v2172 = vpop.f32.mrb[0].mxu0
      %v2173 = vadd.f32 %v1884, %v2172
      %v2174 = vpop.f32.mrb[0].mxu0
      %v2175 = vpop.f32.mrb[0].mxu0
      %v2176 = vadd.f32 %v1887, %v2175
      %v2177 = vpop.f32.mrb[0].mxu0
      %2178 = vmatprep.mubr.bf16.mxu0 %v1166
      %2179 = vmatmul.mubr.bf16.gmra.mrb[0].mxu0 %v1165
      %v2180 = vpop.f32.mrb[0].mxu0
      %v2181 = vadd.f32 %v1892, %v2180
      %v2182 = vpop.f32.mrb[0].mxu0
      %v2183 = vpop.f32.mrb[0].mxu0
      %v2184 = vadd.f32 %v1895, %v2183
      %v2185 = vpop.f32.mrb[0].mxu0
      %2186 = vdwg.mxu0
      %2187 = vmatprep.subr.bf16.mxu0 0
      %2188 = vmatpush1.bf16.msra.mxu0 %v1472
      %2189 = vmatprep.subr.bf16.mxu0 0
      %2190 = vmatpush1.bf16.msra.mxu0 %v1473
      %2191 = vmatprep.subr.bf16.mxu0 0
      %2192 = vmatpush1.bf16.msra.mxu0 %v1474
      %2193 = vmatprep.subr.bf16.mxu0 0
      %2194 = vmatpush1.bf16.msra.mxu0 %v1475
      %2195 = vmatprep.subr.bf16.mxu0 0
      %2196 = vmatpush1.bf16.msra.mxu0 0
      %2197 = vmatprep.subr.bf16.mxu0 0
      %2198 = vmatpush1.bf16.msra.mxu0 0
      %2199 = vmatprep.subr.bf16.mxu0 0
      %2200 = vmatpush1.bf16.msra.mxu0 0
      %2201 = vmatprep.subr.bf16.mxu0 0
      %2202 = vmatpush1.bf16.msra.mxu0 0
      %2203 = vmatprep.subr.bf16.mxu0 0
      %2204 = vmatpush1.bf16.msra.mxu0 0
      %2205 = vmatprep.subr.bf16.mxu0 0
      %2206 = vmatpush1.bf16.msra.mxu0 0
      %2207 = vmatprep.subr.bf16.mxu0 0
      %2208 = vmatpush1.bf16.msra.mxu0 0
      %2209 = vmatprep.subr.bf16.mxu0 0
      %2210 = vmatpush1.bf16.msra.mxu0 0
      %2211 = vmatprep.subr.bf16.mxu0 0
      %2212 = vmatpush1.bf16.msra.mxu0 0
      %2213 = vmatprep.subr.bf16.mxu0 0
      %2214 = vmatpush1.bf16.msra.mxu0 0
      %2215 = vmatprep.subr.bf16.mxu0 0
      %2216 = vmatpush1.bf16.msra.mxu0 0
      %2217 = vmatprep.subr.bf16.mxu0 0
      %2218 = vmatpush1.bf16.msra.mxu0 0
      %2219 = vmatprep.mubr.bf16.mxu0 0
      %2220 = vmatmul.mubr.bf16.gmra.mrb[0].mxu0 %v1514
      %v2221 = vpop.f32.mrb[0].mxu0
      %v2222 = vadd.f32 %v1933, %v2221
      %v2223 = vpop.f32.mrb[0].mxu0
      %v2224 = vpop.f32.mrb[0].mxu0
      %v2225 = vadd.f32 %v1936, %v2224
      %v2226 = vpop.f32.mrb[0].mxu0
      %2227 = vmatprep.mubr.bf16.mxu0 0
      %2228 = vmatmul.mubr.bf16.gmra.mrb[0].mxu0 %v1517
      %v2229 = vpop.f32.mrb[0].mxu0
      %v2230 = vadd.f32 %v1941, %v2229
      %v2231 = vpop.f32.mrb[0].mxu0
      %v2232 = vpop.f32.mrb[0].mxu0
      %v2233 = vadd.f32 %v1944, %v2232
      %v2234 = vpop.f32.mrb[0].mxu0
      %2235 = vmatprep.mubr.bf16.mxu0 0
      %2236 = vmatmul.mubr.bf16.gmra.mrb[0].mxu0 %v1520
      %v2237 = vpop.f32.mrb[0].mxu0
      %v2238 = vadd.f32 %v1949, %v2237
      %v2239 = vpop.f32.mrb[0].mxu0
      %v2240 = vpop.f32.mrb[0].mxu0
      %v2241 = vadd.f32 %v1952, %v2240
      %v2242 = vpop.f32.mrb[0].mxu0
      %2243 = vmatprep.mubr.bf16.mxu0 0
      %2244 = vmatmul.mubr.bf16.gmra.mrb[0].mxu0 %v1523
      %v2245 = vpop.f32.mrb[0].mxu0
      %v2246 = vadd.f32 %v1957, %v2245
      %v2247 = vpop.f32.mrb[0].mxu0
      %v2248 = vpop.f32.mrb[0].mxu0
      %v2249 = vadd.f32 %v1960, %v2248
      %v2250 = vpop.f32.mrb[0].mxu0
      %2251 = vmatprep.mubr.bf16.mxu0 0
      %2252 = vmatmul.mubr.bf16.gmra.mrb[0].mxu0 %v1526
      %v2253 = vpop.f32.mrb[0].mxu0
      %v2254 = vadd.f32 %v1965, %v2253
      %v2255 = vpop.f32.mrb[0].mxu0
      %v2256 = vpop.f32.mrb[0].mxu0
      %v2257 = vadd.f32 %v1968, %v2256
      %v2258 = vpop.f32.mrb[0].mxu0
      %2259 = vmatprep.mubr.bf16.mxu0 0
      %2260 = vmatmul.mubr.bf16.gmra.mrb[0].mxu0 %v1529
      %v2261 = vpop.f32.mrb[0].mxu0
      %v2262 = vadd.f32 %v1973, %v2261
      %v2263 = vpop.f32.mrb[0].mxu0
      %v2264 = vpop.f32.mrb[0].mxu0
      %v2265 = vadd.f32 %v1976, %v2264
      %v2266 = vpop.f32.mrb[0].mxu0
      %2267 = vmatprep.mubr.bf16.mxu0 0
      %2268 = vmatmul.mubr.bf16.gmra.mrb[0].mxu0 %v1532
      %v2269 = vpop.f32.mrb[0].mxu0
      %v2270 = vadd.f32 %v1981, %v2269
      %v2271 = vpop.f32.mrb[0].mxu0
      %v2272 = vpop.f32.mrb[0].mxu0
      %v2273 = vadd.f32 %v1984, %v2272
      %v2274 = vpop.f32.mrb[0].mxu0
      %2275 = vmatprep.mubr.bf16.mxu0 0
      %2276 = vmatmul.mubr.bf16.gmra.mrb[0].mxu0 %v1535
      %v2277 = vpop.f32.mrb[0].mxu0
      %v2278 = vadd.f32 %v1989, %v2277
      %v2279 = vpop.f32.mrb[0].mxu0
      %v2280 = vpop.f32.mrb[0].mxu0
      %v2281 = vadd.f32 %v1992, %v2280
      %v2282 = vpop.f32.mrb[0].mxu0
      %2283 = vmatprep.mubr.bf16.mxu0 0
      %2284 = vmatmul.mubr.bf16.gmra.mrb[0].mxu0 %v1538
      %v2285 = vpop.f32.mrb[0].mxu0
      %v2286 = vadd.f32 %v1997, %v2285
      %v2287 = vpop.f32.mrb[0].mxu0
      %v2288 = vpop.f32.mrb[0].mxu0
      %v2289 = vadd.f32 %v2000, %v2288
      %v2290 = vpop.f32.mrb[0].mxu0
      %2291 = vmatprep.mubr.bf16.mxu0 0
      %2292 = vmatmul.mubr.bf16.gmra.mrb[0].mxu0 %v1541
      %v2293 = vpop.f32.mrb[0].mxu0
      %v2294 = vadd.f32 %v2005, %v2293
      %v2295 = vpop.f32.mrb[0].mxu0
      %v2296 = vpop.f32.mrb[0].mxu0
      %v2297 = vadd.f32 %v2008, %v2296
      %v2298 = vpop.f32.mrb[0].mxu0
      %2299 = vmatprep.mubr.bf16.mxu0 0
      %2300 = vmatmul.mubr.bf16.gmra.mrb[0].mxu0 %v1544
      %v2301 = vpop.f32.mrb[0].mxu0
      %v2302 = vadd.f32 %v2013, %v2301
      %v2303 = vpop.f32.mrb[0].mxu0
      %v2304 = vpop.f32.mrb[0].mxu0
      %v2305 = vadd.f32 %v2016, %v2304
      %v2306 = vpop.f32.mrb[0].mxu0
      %2307 = vmatprep.mubr.bf16.mxu0 0
      %2308 = vmatmul.mubr.bf16.gmra.mrb[0].mxu0 %v1547
      %v2309 = vpop.f32.mrb[0].mxu0
      %v2310 = vadd.f32 %v2021, %v2309
      %v2311 = vpop.f32.mrb[0].mxu0
      %v2312 = vpop.f32.mrb[0].mxu0
      %v2313 = vadd.f32 %v2024, %v2312
      %v2314 = vpop.f32.mrb[0].mxu0
      %2315 = vmatprep.mubr.bf16.mxu0 0
      %2316 = vmatmul.mubr.bf16.gmra.mrb[0].mxu0 %v1550
      %v2317 = vpop.f32.mrb[0].mxu0
      %v2318 = vadd.f32 %v2029, %v2317
      %v2319 = vpop.f32.mrb[0].mxu0
      %v2320 = vpop.f32.mrb[0].mxu0
      %v2321 = vadd.f32 %v2032, %v2320
      %v2322 = vpop.f32.mrb[0].mxu0
      %2323 = vmatprep.mubr.bf16.mxu0 0
      %2324 = vmatmul.mubr.bf16.gmra.mrb[0].mxu0 %v1553
      %v2325 = vpop.f32.mrb[0].mxu0
      %v2326 = vadd.f32 %v2037, %v2325
      %v2327 = vpop.f32.mrb[0].mxu0
      %v2328 = vpop.f32.mrb[0].mxu0
      %v2329 = vadd.f32 %v2040, %v2328
      %v2330 = vpop.f32.mrb[0].mxu0
      %2331 = vmatprep.mubr.bf16.mxu0 0
      %2332 = vmatmul.mubr.bf16.gmra.mrb[0].mxu0 %v1556
      %v2333 = vpop.f32.mrb[0].mxu0
      %v2334 = vadd.f32 %v2045, %v2333
      %v2335 = vpop.f32.mrb[0].mxu0
      %v2336 = vpop.f32.mrb[0].mxu0
      %v2337 = vadd.f32 %v2048, %v2336
      %v2338 = vpop.f32.mrb[0].mxu0
      %2339 = vmatprep.mubr.bf16.mxu0 0
      %2340 = vmatmul.mubr.bf16.gmra.mrb[0].mxu0 %v1559
      %v2341 = vpop.f32.mrb[0].mxu0
      %v2342 = vadd.f32 %v2053, %v2341
      %v2343 = vpop.f32.mrb[0].mxu0
      %v2344 = vpop.f32.mrb[0].mxu0
      %v2345 = vadd.f32 %v2056, %v2344
      %v2346 = vpop.f32.mrb[0].mxu0
      %2347 = vmatprep.mubr.bf16.mxu0 0
      %2348 = vmatmul.mubr.bf16.gmra.mrb[0].mxu0 %v1562
      %v2349 = vpop.f32.mrb[0].mxu0
      %v2350 = vadd.f32 %v2061, %v2349
      %v2351 = vpop.f32.mrb[0].mxu0
      %v2352 = vpop.f32.mrb[0].mxu0
      %v2353 = vadd.f32 %v2064, %v2352
      %v2354 = vpop.f32.mrb[0].mxu0
      %2355 = vmatprep.mubr.bf16.mxu0 0
      %2356 = vmatmul.mubr.bf16.gmra.mrb[0].mxu0 %v1565
      %v2357 = vpop.f32.mrb[0].mxu0
      %v2358 = vadd.f32 %v2069, %v2357
      %v2359 = vpop.f32.mrb[0].mxu0
      %v2360 = vpop.f32.mrb[0].mxu0
      %v2361 = vadd.f32 %v2072, %v2360
      %v2362 = vpop.f32.mrb[0].mxu0
      %2363 = vmatprep.mubr.bf16.mxu0 0
      %2364 = vmatmul.mubr.bf16.gmra.mrb[0].mxu0 %v1568
      %v2365 = vpop.f32.mrb[0].mxu0
      %v2366 = vadd.f32 %v2077, %v2365
      %v2367 = vpop.f32.mrb[0].mxu0
      %v2368 = vpop.f32.mrb[0].mxu0
      %v2369 = vadd.f32 %v2080, %v2368
      %v2370 = vpop.f32.mrb[0].mxu0
      %2371 = vmatprep.mubr.bf16.mxu0 0
      %2372 = vmatmul.mubr.bf16.gmra.mrb[0].mxu0 %v1571
      %v2373 = vpop.f32.mrb[0].mxu0
      %v2374 = vadd.f32 %v2085, %v2373
      %v2375 = vpop.f32.mrb[0].mxu0
      %v2376 = vpop.f32.mrb[0].mxu0
      %v2377 = vadd.f32 %v2088, %v2376
      %v2378 = vpop.f32.mrb[0].mxu0
      %2379 = vmatprep.mubr.bf16.mxu0 0
      %2380 = vmatmul.mubr.bf16.gmra.mrb[0].mxu0 %v1574
      %v2381 = vpop.f32.mrb[0].mxu0
      %v2382 = vadd.f32 %v2093, %v2381
      %v2383 = vpop.f32.mrb[0].mxu0
      %v2384 = vpop.f32.mrb[0].mxu0
      %v2385 = vadd.f32 %v2096, %v2384
      %v2386 = vpop.f32.mrb[0].mxu0
      %2387 = vmatprep.mubr.bf16.mxu0 0
      %2388 = vmatmul.mubr.bf16.gmra.mrb[0].mxu0 %v1577
      %v2389 = vpop.f32.mrb[0].mxu0
      %v2390 = vadd.f32 %v2101, %v2389
      %v2391 = vpop.f32.mrb[0].mxu0
      %v2392 = vpop.f32.mrb[0].mxu0
      %v2393 = vadd.f32 %v2104, %v2392
      %v2394 = vpop.f32.mrb[0].mxu0
      %2395 = vmatprep.mubr.bf16.mxu0 0
      %2396 = vmatmul.mubr.bf16.gmra.mrb[0].mxu0 %v1580
      %v2397 = vpop.f32.mrb[0].mxu0
      %v2398 = vadd.f32 %v2109, %v2397
      %v2399 = vpop.f32.mrb[0].mxu0
      %v2400 = vpop.f32.mrb[0].mxu0
      %v2401 = vadd.f32 %v2112, %v2400
      %v2402 = vpop.f32.mrb[0].mxu0
      %2403 = vmatprep.mubr.bf16.mxu0 0
      %2404 = vmatmul.mubr.bf16.gmra.mrb[0].mxu0 %v1583
      %v2405 = vpop.f32.mrb[0].mxu0
      %v2406 = vadd.f32 %v2117, %v2405
      %v2407 = vpop.f32.mrb[0].mxu0
      %v2408 = vpop.f32.mrb[0].mxu0
      %v2409 = vadd.f32 %v2120, %v2408
      %v2410 = vpop.f32.mrb[0].mxu0
      %2411 = vmatprep.mubr.bf16.mxu0 0
      %2412 = vmatmul.mubr.bf16.gmra.mrb[0].mxu0 %v1586
      %v2413 = vpop.f32.mrb[0].mxu0
      %v2414 = vadd.f32 %v2125, %v2413
      %v2415 = vpop.f32.mrb[0].mxu0
      %v2416 = vpop.f32.mrb[0].mxu0
      %v2417 = vadd.f32 %v2128, %v2416
      %v2418 = vpop.f32.mrb[0].mxu0
      %2419 = vmatprep.mubr.bf16.mxu0 0
      %2420 = vmatmul.mubr.bf16.gmra.mrb[0].mxu0 %v1589
      %v2421 = vpop.f32.mrb[0].mxu0
      %v2422 = vadd.f32 %v2133, %v2421
      %v2423 = vpop.f32.mrb[0].mxu0
      %v2424 = vpop.f32.mrb[0].mxu0
      %v2425 = vadd.f32 %v2136, %v2424
      %v2426 = vpop.f32.mrb[0].mxu0
      %2427 = vmatprep.mubr.bf16.mxu0 0
      %2428 = vmatmul.mubr.bf16.gmra.mrb[0].mxu0 %v1592
      %v2429 = vpop.f32.mrb[0].mxu0
      %v2430 = vadd.f32 %v2141, %v2429
      %v2431 = vpop.f32.mrb[0].mxu0
      %v2432 = vpop.f32.mrb[0].mxu0
      %v2433 = vadd.f32 %v2144, %v2432
      %v2434 = vpop.f32.mrb[0].mxu0
      %2435 = vmatprep.mubr.bf16.mxu0 0
      %2436 = vmatmul.mubr.bf16.gmra.mrb[0].mxu0 %v1595
      %v2437 = vpop.f32.mrb[0].mxu0
      %v2438 = vadd.f32 %v2149, %v2437
      %v2439 = vpop.f32.mrb[0].mxu0
      %v2440 = vpop.f32.mrb[0].mxu0
      %v2441 = vadd.f32 %v2152, %v2440
      %v2442 = vpop.f32.mrb[0].mxu0
      %2443 = vmatprep.mubr.bf16.mxu0 0
      %2444 = vmatmul.mubr.bf16.gmra.mrb[0].mxu0 %v1598
      %v2445 = vpop.f32.mrb[0].mxu0
      %v2446 = vadd.f32 %v2157, %v2445
      %v2447 = vpop.f32.mrb[0].mxu0
      %v2448 = vpop.f32.mrb[0].mxu0
      %v2449 = vadd.f32 %v2160, %v2448
      %v2450 = vpop.f32.mrb[0].mxu0
      %2451 = vmatprep.mubr.bf16.mxu0 0
      %2452 = vmatmul.mubr.bf16.gmra.mrb[0].mxu0 %v1601
      %v2453 = vpop.f32.mrb[0].mxu0
      %v2454 = vadd.f32 %v2165, %v2453
      %v2455 = vpop.f32.mrb[0].mxu0
      %v2456 = vpop.f32.mrb[0].mxu0
      %v2457 = vadd.f32 %v2168, %v2456
      %v2458 = vpop.f32.mrb[0].mxu0
      %2459 = vmatprep.mubr.bf16.mxu0 0
      %2460 = vmatmul.mubr.bf16.gmra.mrb[0].mxu0 %v1604
      %v2461 = vpop.f32.mrb[0].mxu0
      %v2462 = vadd.f32 %v2173, %v2461
      %v2463 = vpop.f32.mrb[0].mxu0
      %v2464 = vpop.f32.mrb[0].mxu0
      %v2465 = vadd.f32 %v2176, %v2464
      %v2466 = vpop.f32.mrb[0].mxu0
      %2467 = vmatprep.mubr.bf16.mxu0 0
      %2468 = vmatmul.mubr.bf16.gmra.mrb[0].mxu0 %v1607
      %v2469 = vpop.f32.mrb[0].mxu0
      %v2470 = vadd.f32 %v2181, %v2469
      %v2471 = vpop.f32.mrb[0].mxu0
      %v2472 = vpop.f32.mrb[0].mxu0
      %v2473 = vadd.f32 %v2184, %v2472
      %v2474 = vpop.f32.mrb[0].mxu0
      %2475 = vdwg.mxu0
      %v2476 = vld [vmem:[%s2] sm:$0x1]
      %v2478 = vlaneseq
      %v2479 = vshrl.u32 %v2478, 7
      %v2480 = vsub.s32 0, %v2479
      %v2481 = vrot.slane %v2476, %v2480
      %v2483 = vmul.f32 %v2222, %v2481
      %v2484 = vmul.f32 %v2225, %v2481
      %v2485 = vmul.f32 %v2230, %v2481
      %v2486 = vmul.f32 %v2233, %v2481
      %v2487 = vmul.f32 %v2238, %v2481
      %v2488 = vmul.f32 %v2241, %v2481
      %v2489 = vmul.f32 %v2246, %v2481
      %v2490 = vmul.f32 %v2249, %v2481
      %v2491 = vmul.f32 %v2254, %v2481
      %v2492 = vmul.f32 %v2257, %v2481
      %v2493 = vmul.f32 %v2262, %v2481
      %v2494 = vmul.f32 %v2265, %v2481
      %v2495 = vmul.f32 %v2270, %v2481
      %v2496 = vmul.f32 %v2273, %v2481
      %v2497 = vmul.f32 %v2278, %v2481
      %v2498 = vmul.f32 %v2281, %v2481
      %v2499 = vmul.f32 %v2286, %v2481
      %v2500 = vmul.f32 %v2289, %v2481
      %v2501 = vmul.f32 %v2294, %v2481
      %v2502 = vmul.f32 %v2297, %v2481
      %v2503 = vmul.f32 %v2302, %v2481
      %v2504 = vmul.f32 %v2305, %v2481
      %v2505 = vmul.f32 %v2310, %v2481
      %v2506 = vmul.f32 %v2313, %v2481
      %v2507 = vmul.f32 %v2318, %v2481
      %v2508 = vmul.f32 %v2321, %v2481
      %v2509 = vmul.f32 %v2326, %v2481
      %v2510 = vmul.f32 %v2329, %v2481
      %v2511 = vmul.f32 %v2334, %v2481
      %v2512 = vmul.f32 %v2337, %v2481
      %v2513 = vmul.f32 %v2342, %v2481
      %v2514 = vmul.f32 %v2345, %v2481
      %v2515 = vmul.f32 %v2350, %v2481
      %v2516 = vmul.f32 %v2353, %v2481
      %v2517 = vmul.f32 %v2358, %v2481
      %v2518 = vmul.f32 %v2361, %v2481
      %v2519 = vmul.f32 %v2366, %v2481
      %v2520 = vmul.f32 %v2369, %v2481
      %v2521 = vmul.f32 %v2374, %v2481
      %v2522 = vmul.f32 %v2377, %v2481
      %v2523 = vmul.f32 %v2382, %v2481
      %v2524 = vmul.f32 %v2385, %v2481
      %v2525 = vmul.f32 %v2390, %v2481
      %v2526 = vmul.f32 %v2393, %v2481
      %v2527 = vmul.f32 %v2398, %v2481
      %v2528 = vmul.f32 %v2401, %v2481
      %v2529 = vmul.f32 %v2406, %v2481
      %v2530 = vmul.f32 %v2409, %v2481
      %v2531 = vmul.f32 %v2414, %v2481
      %v2532 = vmul.f32 %v2417, %v2481
      %v2533 = vmul.f32 %v2422, %v2481
      %v2534 = vmul.f32 %v2425, %v2481
      %v2535 = vmul.f32 %v2430, %v2481
      %v2536 = vmul.f32 %v2433, %v2481
      %v2537 = vmul.f32 %v2438, %v2481
      %v2538 = vmul.f32 %v2441, %v2481
      %v2539 = vmul.f32 %v2446, %v2481
      %v2540 = vmul.f32 %v2449, %v2481
      %v2541 = vmul.f32 %v2454, %v2481
      %v2542 = vmul.f32 %v2457, %v2481
      %v2543 = vmul.f32 %v2462, %v2481
      %v2544 = vmul.f32 %v2465, %v2481
      %v2545 = vmul.f32 %v2470, %v2481
      %v2546 = vmul.f32 %v2473, %v2481
      %v2547 = vld [vmem:[%s3] sm:$0x1]
      %v2549 = vlaneseq
      %v2550 = vshrl.u32 %v2549, 7
      %v2551 = vsub.s32 0, %v2550
      %v2552 = vrot.slane %v2547, %v2551
      %v2554 = vadd.f32 %v2483, %v2552
      %v2555 = vadd.f32 %v2484, %v2552
      %v2556 = vadd.f32 %v2485, %v2552
      %v2557 = vadd.f32 %v2486, %v2552
      %v2558 = vadd.f32 %v2487, %v2552
      %v2559 = vadd.f32 %v2488, %v2552
      %v2560 = vadd.f32 %v2489, %v2552
      %v2561 = vadd.f32 %v2490, %v2552
      %v2562 = vadd.f32 %v2491, %v2552
      %v2563 = vadd.f32 %v2492, %v2552
      %v2564 = vadd.f32 %v2493, %v2552
      %v2565 = vadd.f32 %v2494, %v2552
      %v2566 = vadd.f32 %v2495, %v2552
      %v2567 = vadd.f32 %v2496, %v2552
      %v2568 = vadd.f32 %v2497, %v2552
      %v2569 = vadd.f32 %v2498, %v2552
      %v2570 = vadd.f32 %v2499, %v2552
      %v2571 = vadd.f32 %v2500, %v2552
      %v2572 = vadd.f32 %v2501, %v2552
      %v2573 = vadd.f32 %v2502, %v2552
      %v2574 = vadd.f32 %v2503, %v2552
      %v2575 = vadd.f32 %v2504, %v2552
      %v2576 = vadd.f32 %v2505, %v2552
      %v2577 = vadd.f32 %v2506, %v2552
      %v2578 = vadd.f32 %v2507, %v2552
      %v2579 = vadd.f32 %v2508, %v2552
      %v2580 = vadd.f32 %v2509, %v2552
      %v2581 = vadd.f32 %v2510, %v2552
      %v2582 = vadd.f32 %v2511, %v2552
      %v2583 = vadd.f32 %v2512, %v2552
      %v2584 = vadd.f32 %v2513, %v2552
      %v2585 = vadd.f32 %v2514, %v2552
      %v2586 = vadd.f32 %v2515, %v2552
      %v2587 = vadd.f32 %v2516, %v2552
      %v2588 = vadd.f32 %v2517, %v2552
      %v2589 = vadd.f32 %v2518, %v2552
      %v2590 = vadd.f32 %v2519, %v2552
      %v2591 = vadd.f32 %v2520, %v2552
      %v2592 = vadd.f32 %v2521, %v2552
      %v2593 = vadd.f32 %v2522, %v2552
      %v2594 = vadd.f32 %v2523, %v2552
      %v2595 = vadd.f32 %v2524, %v2552
      %v2596 = vadd.f32 %v2525, %v2552
      %v2597 = vadd.f32 %v2526, %v2552
      %v2598 = vadd.f32 %v2527, %v2552
      %v2599 = vadd.f32 %v2528, %v2552
      %v2600 = vadd.f32 %v2529, %v2552
      %v2601 = vadd.f32 %v2530, %v2552
      %v2602 = vadd.f32 %v2531, %v2552
      %v2603 = vadd.f32 %v2532, %v2552
      %v2604 = vadd.f32 %v2533, %v2552
      %v2605 = vadd.f32 %v2534, %v2552
      %v2606 = vadd.f32 %v2535, %v2552
      %v2607 = vadd.f32 %v2536, %v2552
      %v2608 = vadd.f32 %v2537, %v2552
      %v2609 = vadd.f32 %v2538, %v2552
      %v2610 = vadd.f32 %v2539, %v2552
      %v2611 = vadd.f32 %v2540, %v2552
      %v2612 = vadd.f32 %v2541, %v2552
      %v2613 = vadd.f32 %v2542, %v2552
      %v2614 = vadd.f32 %v2543, %v2552
      %v2615 = vadd.f32 %v2544, %v2552
      %v2616 = vadd.f32 %v2545, %v2552
      %v2617 = vadd.f32 %v2546, %v2552
      %v2618 = vmax.f32 %v2554, 0.0
      %v2619 = vmax.f32 %v2555, 0.0
      %v2620 = vmax.f32 %v2556, 0.0
      %v2621 = vmax.f32 %v2557, 0.0
      %v2622 = vmax.f32 %v2558, 0.0
      %v2623 = vmax.f32 %v2559, 0.0
      %v2624 = vmax.f32 %v2560, 0.0
      %v2625 = vmax.f32 %v2561, 0.0
      %v2626 = vmax.f32 %v2562, 0.0
      %v2627 = vmax.f32 %v2563, 0.0
      %v2628 = vmax.f32 %v2564, 0.0
      %v2629 = vmax.f32 %v2565, 0.0
      %v2630 = vmax.f32 %v2566, 0.0
      %v2631 = vmax.f32 %v2567, 0.0
      %v2632 = vmax.f32 %v2568, 0.0
      %v2633 = vmax.f32 %v2569, 0.0
      %v2634 = vmax.f32 %v2570, 0.0
      %v2635 = vmax.f32 %v2571, 0.0
      %v2636 = vmax.f32 %v2572, 0.0
      %v2637 = vmax.f32 %v2573, 0.0
      %v2638 = vmax.f32 %v2574, 0.0
      %v2639 = vmax.f32 %v2575, 0.0
      %v2640 = vmax.f32 %v2576, 0.0
      %v2641 = vmax.f32 %v2577, 0.0
      %v2642 = vmax.f32 %v2578, 0.0
      %v2643 = vmax.f32 %v2579, 0.0
      %v2644 = vmax.f32 %v2580, 0.0
      %v2645 = vmax.f32 %v2581, 0.0
      %v2646 = vmax.f32 %v2582, 0.0
      %v2647 = vmax.f32 %v2583, 0.0
      %v2648 = vmax.f32 %v2584, 0.0
      %v2649 = vmax.f32 %v2585, 0.0
      %v2650 = vmax.f32 %v2586, 0.0
      %v2651 = vmax.f32 %v2587, 0.0
      %v2652 = vmax.f32 %v2588, 0.0
      %v2653 = vmax.f32 %v2589, 0.0
      %v2654 = vmax.f32 %v2590, 0.0
      %v2655 = vmax.f32 %v2591, 0.0
      %v2656 = vmax.f32 %v2592, 0.0
      %v2657 = vmax.f32 %v2593, 0.0
      %v2658 = vmax.f32 %v2594, 0.0
      %v2659 = vmax.f32 %v2595, 0.0
      %v2660 = vmax.f32 %v2596, 0.0
      %v2661 = vmax.f32 %v2597, 0.0
      %v2662 = vmax.f32 %v2598, 0.0
      %v2663 = vmax.f32 %v2599, 0.0
      %v2664 = vmax.f32 %v2600, 0.0
      %v2665 = vmax.f32 %v2601, 0.0
      %v2666 = vmax.f32 %v2602, 0.0
      %v2667 = vmax.f32 %v2603, 0.0
      %v2668 = vmax.f32 %v2604, 0.0
      %v2669 = vmax.f32 %v2605, 0.0
      %v2670 = vmax.f32 %v2606, 0.0
      %v2671 = vmax.f32 %v2607, 0.0
      %v2672 = vmax.f32 %v2608, 0.0
      %v2673 = vmax.f32 %v2609, 0.0
      %v2674 = vmax.f32 %v2610, 0.0
      %v2675 = vmax.f32 %v2611, 0.0
      %v2676 = vmax.f32 %v2612, 0.0
      %v2677 = vmax.f32 %v2613, 0.0
      %v2678 = vmax.f32 %v2614, 0.0
      %v2679 = vmax.f32 %v2615, 0.0
      %v2680 = vmax.f32 %v2616, 0.0
      %v2681 = vmax.f32 %v2617, 0.0
      %v2682 = vmin.f32 %v2618, 6.0
      %v2683 = vmin.f32 %v2619, 6.0
      %v2684 = vmin.f32 %v2620, 6.0
      %v2685 = vmin.f32 %v2621, 6.0
      %v2686 = vmin.f32 %v2622, 6.0
      %v2687 = vmin.f32 %v2623, 6.0
      %v2688 = vmin.f32 %v2624, 6.0
      %v2689 = vmin.f32 %v2625, 6.0
      %v2690 = vmin.f32 %v2626, 6.0
      %v2691 = vmin.f32 %v2627, 6.0
      %v2692 = vmin.f32 %v2628, 6.0
      %v2693 = vmin.f32 %v2629, 6.0
      %v2694 = vmin.f32 %v2630, 6.0
      %v2695 = vmin.f32 %v2631, 6.0
      %v2696 = vmin.f32 %v2632, 6.0
      %v2697 = vmin.f32 %v2633, 6.0
      %v2698 = vmin.f32 %v2634, 6.0
      %v2699 = vmin.f32 %v2635, 6.0
      %v2700 = vmin.f32 %v2636, 6.0
      %v2701 = vmin.f32 %v2637, 6.0
      %v2702 = vmin.f32 %v2638, 6.0
      %v2703 = vmin.f32 %v2639, 6.0
      %v2704 = vmin.f32 %v2640, 6.0
      %v2705 = vmin.f32 %v2641, 6.0
      %v2706 = vmin.f32 %v2642, 6.0
      %v2707 = vmin.f32 %v2643, 6.0
      %v2708 = vmin.f32 %v2644, 6.0
      %v2709 = vmin.f32 %v2645, 6.0
      %v2710 = vmin.f32 %v2646, 6.0
      %v2711 = vmin.f32 %v2647, 6.0
      %v2712 = vmin.f32 %v2648, 6.0
      %v2713 = vmin.f32 %v2649, 6.0
      %v2714 = vmin.f32 %v2650, 6.0
      %v2715 = vmin.f32 %v2651, 6.0
      %v2716 = vmin.f32 %v2652, 6.0
      %v2717 = vmin.f32 %v2653, 6.0
      %v2718 = vmin.f32 %v2654, 6.0
      %v2719 = vmin.f32 %v2655, 6.0
      %v2720 = vmin.f32 %v2656, 6.0
      %v2721 = vmin.f32 %v2657, 6.0
      %v2722 = vmin.f32 %v2658, 6.0
      %v2723 = vmin.f32 %v2659, 6.0
      %v2724 = vmin.f32 %v2660, 6.0
      %v2725 = vmin.f32 %v2661, 6.0
      %v2726 = vmin.f32 %v2662, 6.0
      %v2727 = vmin.f32 %v2663, 6.0
      %v2728 = vmin.f32 %v2664, 6.0
      %v2729 = vmin.f32 %v2665, 6.0
      %v2730 = vmin.f32 %v2666, 6.0
      %v2731 = vmin.f32 %v2667, 6.0
      %v2732 = vmin.f32 %v2668, 6.0
      %v2733 = vmin.f32 %v2669, 6.0
      %v2734 = vmin.f32 %v2670, 6.0
      %v2735 = vmin.f32 %v2671, 6.0
      %v2736 = vmin.f32 %v2672, 6.0
      %v2737 = vmin.f32 %v2673, 6.0
      %v2738 = vmin.f32 %v2674, 6.0
      %v2739 = vmin.f32 %v2675, 6.0
      %v2740 = vmin.f32 %v2676, 6.0
      %v2741 = vmin.f32 %v2677, 6.0
      %v2742 = vmin.f32 %v2678, 6.0
      %v2743 = vmin.f32 %v2679, 6.0
      %v2744 = vmin.f32 %v2680, 6.0
      %v2745 = vmin.f32 %v2681, 6.0
      %v2746 = vpack.c.bf16 %v2683, %v2682
      %v2747 = vpack.c.bf16 %v2685, %v2684
      %v2748 = vpack.c.bf16 %v2687, %v2686
      %v2749 = vpack.c.bf16 %v2689, %v2688
      %v2750 = vpack.c.bf16 %v2691, %v2690
      %v2751 = vpack.c.bf16 %v2693, %v2692
      %v2752 = vpack.c.bf16 %v2695, %v2694
      %v2753 = vpack.c.bf16 %v2697, %v2696
      %v2754 = vpack.c.bf16 %v2699, %v2698
      %v2755 = vpack.c.bf16 %v2701, %v2700
      %v2756 = vpack.c.bf16 %v2703, %v2702
      %v2757 = vpack.c.bf16 %v2705, %v2704
      %v2758 = vpack.c.bf16 %v2707, %v2706
      %v2759 = vpack.c.bf16 %v2709, %v2708
      %v2760 = vpack.c.bf16 %v2711, %v2710
      %v2761 = vpack.c.bf16 %v2713, %v2712
      %v2762 = vpack.c.bf16 %v2715, %v2714
      %v2763 = vpack.c.bf16 %v2717, %v2716
      %v2764 = vpack.c.bf16 %v2719, %v2718
      %v2765 = vpack.c.bf16 %v2721, %v2720
      %v2766 = vpack.c.bf16 %v2723, %v2722
      %v2767 = vpack.c.bf16 %v2725, %v2724
      %v2768 = vpack.c.bf16 %v2727, %v2726
      %v2769 = vpack.c.bf16 %v2729, %v2728
      %v2770 = vpack.c.bf16 %v2731, %v2730
      %v2771 = vpack.c.bf16 %v2733, %v2732
      %v2772 = vpack.c.bf16 %v2735, %v2734
      %v2773 = vpack.c.bf16 %v2737, %v2736
      %v2774 = vpack.c.bf16 %v2739, %v2738
      %v2775 = vpack.c.bf16 %v2741, %v2740
      %v2776 = vpack.c.bf16 %v2743, %v2742
      %v2777 = vpack.c.bf16 %v2745, %v2744
      %v2778 = vld [vmem:[%s4] sm:$0xf]
      %v2779 = vld [vmem:[%s4 + $0x4] sm:$0xf]
      %v2780 = vld [vmem:[%s4 + $0x8] sm:$0xf]
      %v2781 = vld [vmem:[%s4 + $0xc] sm:$0xf]
      %v2782 = vld [vmem:[%s4 + $0x10] sm:$0xf]
      %v2783 = vld [vmem:[%s4 + $0x14] sm:$0xf]
      %v2784 = vld [vmem:[%s4 + $0x18] sm:$0xf]
      %v2785 = vld [vmem:[%s4 + $0x1c] sm:$0xf]
      %v2794 = vunpack.c.l.b16 %v2778
      %v2795 = vunpack.c.l.b16 %v2779
      %v2796 = vunpack.c.l.b16 %v2780
      %v2797 = vunpack.c.l.b16 %v2781
      %v2798 = vunpack.c.l.b16 %v2782
      %v2799 = vunpack.c.l.b16 %v2783
      %v2800 = vunpack.c.l.b16 %v2784
      %v2801 = vunpack.c.l.b16 %v2785
      %v2802 = vpack.c.b16 %v2795, %v2794
      %v2803 = vpack.c.b16 %v2797, %v2796
      %v2804 = vpack.c.b16 %v2799, %v2798
      %v2805 = vpack.c.b16 %v2801, %v2800
      %v2811 = vsel %vm1512, %v2746, 0
      %v2814 = vsel %vm1512, %v2747, 0
      %v2817 = vsel %vm1512, %v2748, 0
      %v2820 = vsel %vm1512, %v2749, 0
      %v2823 = vsel %vm1512, %v2750, 0
      %v2826 = vsel %vm1512, %v2751, 0
      %v2829 = vsel %vm1512, %v2752, 0
      %v2832 = vsel %vm1512, %v2753, 0
      %v2835 = vsel %vm1512, %v2754, 0
      %v2838 = vsel %vm1512, %v2755, 0
      %v2841 = vsel %vm1512, %v2756, 0
      %v2844 = vsel %vm1512, %v2757, 0
      %v2847 = vsel %vm1512, %v2758, 0
      %v2850 = vsel %vm1512, %v2759, 0
      %v2853 = vsel %vm1512, %v2760, 0
      %v2856 = vsel %vm1512, %v2761, 0
      %v2859 = vsel %vm1512, %v2762, 0
      %v2862 = vsel %vm1512, %v2763, 0
      %v2865 = vsel %vm1512, %v2764, 0
      %v2868 = vsel %vm1512, %v2765, 0
      %v2871 = vsel %vm1512, %v2766, 0
      %v2874 = vsel %vm1512, %v2767, 0
      %v2877 = vsel %vm1512, %v2768, 0
      %v2880 = vsel %vm1512, %v2769, 0
      %v2883 = vsel %vm1512, %v2770, 0
      %v2886 = vsel %vm1512, %v2771, 0
      %v2889 = vsel %vm1512, %v2772, 0
      %v2892 = vsel %vm1512, %v2773, 0
      %v2895 = vsel %vm1512, %v2774, 0
      %v2898 = vsel %vm1512, %v2775, 0
      %v2901 = vsel %vm1512, %v2776, 0
      %v2904 = vsel %vm1512, %v2777, 0
      %2906 = vmatprep.subr.bf16.mxu0 0
      %2907 = vmatpush1.bf16.msra.mxu0 %v2802
      %2908 = vmatprep.subr.bf16.mxu0 0
      %2909 = vmatpush1.bf16.msra.mxu0 %v2803
      %2910 = vmatprep.subr.bf16.mxu0 0
      %2911 = vmatpush1.bf16.msra.mxu0 %v2804
      %2912 = vmatprep.subr.bf16.mxu0 0
      %2913 = vmatpush1.bf16.msra.mxu0 %v2805
      %2914 = vmatprep.subr.bf16.mxu0 0
      %2915 = vmatpush1.bf16.msra.mxu0 0
      %2916 = vmatprep.subr.bf16.mxu0 0
      %2917 = vmatpush1.bf16.msra.mxu0 0
      %2918 = vmatprep.subr.bf16.mxu0 0
      %2919 = vmatpush1.bf16.msra.mxu0 0
      %2920 = vmatprep.subr.bf16.mxu0 0
      %2921 = vmatpush1.bf16.msra.mxu0 0
      %2922 = vmatprep.subr.bf16.mxu0 0
      %2923 = vmatpush1.bf16.msra.mxu0 0
      %2924 = vmatprep.subr.bf16.mxu0 0
      %2925 = vmatpush1.bf16.msra.mxu0 0
      %2926 = vmatprep.subr.bf16.mxu0 0
      %2927 = vmatpush1.bf16.msra.mxu0 0
      %2928 = vmatprep.subr.bf16.mxu0 0
      %2929 = vmatpush1.bf16.msra.mxu0 0
      %2930 = vmatprep.subr.bf16.mxu0 0
      %2931 = vmatpush1.bf16.msra.mxu0 0
      %2932 = vmatprep.subr.bf16.mxu0 0
      %2933 = vmatpush1.bf16.msra.mxu0 0
      %2934 = vmatprep.subr.bf16.mxu0 0
      %2935 = vmatpush1.bf16.msra.mxu0 0
      %2936 = vmatprep.subr.bf16.mxu0 0
      %2937 = vmatpush1.bf16.msra.mxu0 0
      %2938 = vmatprep.mubr.bf16.mxu0 0
      %2939 = vmatmul.mubr.bf16.gmra.mrb[0].mxu0 %v2811
      %v2940 = vpop.f32.mrb[0].mxu0
      %v2941 = vadd.f32 0.0, %v2940
      %v2942 = vpop.f32.mrb[0].mxu0
      %v2943 = vpop.f32.mrb[0].mxu0
      %v2944 = vadd.f32 0.0, %v2943
      %v2945 = vpop.f32.mrb[0].mxu0
      %2946 = vmatprep.mubr.bf16.mxu0 0
      %2947 = vmatmul.mubr.bf16.gmra.mrb[0].mxu0 %v2814
      %v2948 = vpop.f32.mrb[0].mxu0
      %v2949 = vadd.f32 0.0, %v2948
      %v2950 = vpop.f32.mrb[0].mxu0
      %v2951 = vpop.f32.mrb[0].mxu0
      %v2952 = vadd.f32 0.0, %v2951
      %v2953 = vpop.f32.mrb[0].mxu0
      %2954 = vmatprep.mubr.bf16.mxu0 0
      %2955 = vmatmul.mubr.bf16.gmra.mrb[0].mxu0 %v2817
      %v2956 = vpop.f32.mrb[0].mxu0
      %v2957 = vadd.f32 0.0, %v2956
      %v2958 = vpop.f32.mrb[0].mxu0
      %v2959 = vpop.f32.mrb[0].mxu0
      %v2960 = vadd.f32 0.0, %v2959
      %v2961 = vpop.f32.mrb[0].mxu0
      %2962 = vmatprep.mubr.bf16.mxu0 0
      %2963 = vmatmul.mubr.bf16.gmra.mrb[0].mxu0 %v2820
      %v2964 = vpop.f32.mrb[0].mxu0
      %v2965 = vadd.f32 0.0, %v2964
      %v2966 = vpop.f32.mrb[0].mxu0
      %v2967 = vpop.f32.mrb[0].mxu0
      %v2968 = vadd.f32 0.0, %v2967
      %v2969 = vpop.f32.mrb[0].mxu0
      %2970 = vmatprep.mubr.bf16.mxu0 0
      %2971 = vmatmul.mubr.bf16.gmra.mrb[0].mxu0 %v2823
      %v2972 = vpop.f32.mrb[0].mxu0
      %v2973 = vadd.f32 0.0, %v2972
      %v2974 = vpop.f32.mrb[0].mxu0
      %v2975 = vpop.f32.mrb[0].mxu0
      %v2976 = vadd.f32 0.0, %v2975
      %v2977 = vpop.f32.mrb[0].mxu0
      %2978 = vmatprep.mubr.bf16.mxu0 0
      %2979 = vmatmul.mubr.bf16.gmra.mrb[0].mxu0 %v2826
      %v2980 = vpop.f32.mrb[0].mxu0
      %v2981 = vadd.f32 0.0, %v2980
      %v2982 = vpop.f32.mrb[0].mxu0
      %v2983 = vpop.f32.mrb[0].mxu0
      %v2984 = vadd.f32 0.0, %v2983
      %v2985 = vpop.f32.mrb[0].mxu0
      %2986 = vmatprep.mubr.bf16.mxu0 0
      %2987 = vmatmul.mubr.bf16.gmra.mrb[0].mxu0 %v2829
      %v2988 = vpop.f32.mrb[0].mxu0
      %v2989 = vadd.f32 0.0, %v2988
      %v2990 = vpop.f32.mrb[0].mxu0
      %v2991 = vpop.f32.mrb[0].mxu0
      %v2992 = vadd.f32 0.0, %v2991
      %v2993 = vpop.f32.mrb[0].mxu0
      %2994 = vmatprep.mubr.bf16.mxu0 0
      %2995 = vmatmul.mubr.bf16.gmra.mrb[0].mxu0 %v2832
      %v2996 = vpop.f32.mrb[0].mxu0
      %v2997 = vadd.f32 0.0, %v2996
      %v2998 = vpop.f32.mrb[0].mxu0
      %v2999 = vpop.f32.mrb[0].mxu0
      %v3000 = vadd.f32 0.0, %v2999
      %v3001 = vpop.f32.mrb[0].mxu0
      %3002 = vmatprep.mubr.bf16.mxu0 0
      %3003 = vmatmul.mubr.bf16.gmra.mrb[0].mxu0 %v2835
      %v3004 = vpop.f32.mrb[0].mxu0
      %v3005 = vadd.f32 0.0, %v3004
      %v3006 = vpop.f32.mrb[0].mxu0
      %v3007 = vpop.f32.mrb[0].mxu0
      %v3008 = vadd.f32 0.0, %v3007
      %v3009 = vpop.f32.mrb[0].mxu0
      %3010 = vmatprep.mubr.bf16.mxu0 0
      %3011 = vmatmul.mubr.bf16.gmra.mrb[0].mxu0 %v2838
      %v3012 = vpop.f32.mrb[0].mxu0
      %v3013 = vadd.f32 0.0, %v3012
      %v3014 = vpop.f32.mrb[0].mxu0
      %v3015 = vpop.f32.mrb[0].mxu0
      %v3016 = vadd.f32 0.0, %v3015
      %v3017 = vpop.f32.mrb[0].mxu0
      %3018 = vmatprep.mubr.bf16.mxu0 0
      %3019 = vmatmul.mubr.bf16.gmra.mrb[0].mxu0 %v2841
      %v3020 = vpop.f32.mrb[0].mxu0
      %v3021 = vadd.f32 0.0, %v3020
      %v3022 = vpop.f32.mrb[0].mxu0
      %v3023 = vpop.f32.mrb[0].mxu0
      %v3024 = vadd.f32 0.0, %v3023
      %v3025 = vpop.f32.mrb[0].mxu0
      %3026 = vmatprep.mubr.bf16.mxu0 0
      %3027 = vmatmul.mubr.bf16.gmra.mrb[0].mxu0 %v2844
      %v3028 = vpop.f32.mrb[0].mxu0
      %v3029 = vadd.f32 0.0, %v3028
      %v3030 = vpop.f32.mrb[0].mxu0
      %v3031 = vpop.f32.mrb[0].mxu0
      %v3032 = vadd.f32 0.0, %v3031
      %v3033 = vpop.f32.mrb[0].mxu0
      %3034 = vmatprep.mubr.bf16.mxu0 0
      %3035 = vmatmul.mubr.bf16.gmra.mrb[0].mxu0 %v2847
      %v3036 = vpop.f32.mrb[0].mxu0
      %v3037 = vadd.f32 0.0, %v3036
      %v3038 = vpop.f32.mrb[0].mxu0
      %v3039 = vpop.f32.mrb[0].mxu0
      %v3040 = vadd.f32 0.0, %v3039
      %v3041 = vpop.f32.mrb[0].mxu0
      %3042 = vmatprep.mubr.bf16.mxu0 0
      %3043 = vmatmul.mubr.bf16.gmra.mrb[0].mxu0 %v2850
      %v3044 = vpop.f32.mrb[0].mxu0
      %v3045 = vadd.f32 0.0, %v3044
      %v3046 = vpop.f32.mrb[0].mxu0
      %v3047 = vpop.f32.mrb[0].mxu0
      %v3048 = vadd.f32 0.0, %v3047
      %v3049 = vpop.f32.mrb[0].mxu0
      %3050 = vmatprep.mubr.bf16.mxu0 0
      %3051 = vmatmul.mubr.bf16.gmra.mrb[0].mxu0 %v2853
      %v3052 = vpop.f32.mrb[0].mxu0
      %v3053 = vadd.f32 0.0, %v3052
      %v3054 = vpop.f32.mrb[0].mxu0
      %v3055 = vpop.f32.mrb[0].mxu0
      %v3056 = vadd.f32 0.0, %v3055
      %v3057 = vpop.f32.mrb[0].mxu0
      %3058 = vmatprep.mubr.bf16.mxu0 0
      %3059 = vmatmul.mubr.bf16.gmra.mrb[0].mxu0 %v2856
      %v3060 = vpop.f32.mrb[0].mxu0
      %v3061 = vadd.f32 0.0, %v3060
      %v3062 = vpop.f32.mrb[0].mxu0
      %v3063 = vpop.f32.mrb[0].mxu0
      %v3064 = vadd.f32 0.0, %v3063
      %v3065 = vpop.f32.mrb[0].mxu0
      %3066 = vmatprep.mubr.bf16.mxu0 0
      %3067 = vmatmul.mubr.bf16.gmra.mrb[0].mxu0 %v2859
      %v3068 = vpop.f32.mrb[0].mxu0
      %v3069 = vadd.f32 0.0, %v3068
      %v3070 = vpop.f32.mrb[0].mxu0
      %v3071 = vpop.f32.mrb[0].mxu0
      %v3072 = vadd.f32 0.0, %v3071
      %v3073 = vpop.f32.mrb[0].mxu0
      %3074 = vmatprep.mubr.bf16.mxu0 0
      %3075 = vmatmul.mubr.bf16.gmra.mrb[0].mxu0 %v2862
      %v3076 = vpop.f32.mrb[0].mxu0
      %v3077 = vadd.f32 0.0, %v3076
      %v3078 = vpop.f32.mrb[0].mxu0
      %v3079 = vpop.f32.mrb[0].mxu0
      %v3080 = vadd.f32 0.0, %v3079
      %v3081 = vpop.f32.mrb[0].mxu0
      %3082 = vmatprep.mubr.bf16.mxu0 0
      %3083 = vmatmul.mubr.bf16.gmra.mrb[0].mxu0 %v2865
      %v3084 = vpop.f32.mrb[0].mxu0
      %v3085 = vadd.f32 0.0, %v3084
      %v3086 = vpop.f32.mrb[0].mxu0
      %v3087 = vpop.f32.mrb[0].mxu0
      %v3088 = vadd.f32 0.0, %v3087
      %v3089 = vpop.f32.mrb[0].mxu0
      %3090 = vmatprep.mubr.bf16.mxu0 0
      %3091 = vmatmul.mubr.bf16.gmra.mrb[0].mxu0 %v2868
      %v3092 = vpop.f32.mrb[0].mxu0
      %v3093 = vadd.f32 0.0, %v3092
      %v3094 = vpop.f32.mrb[0].mxu0
      %v3095 = vpop.f32.mrb[0].mxu0
      %v3096 = vadd.f32 0.0, %v3095
      %v3097 = vpop.f32.mrb[0].mxu0
      %3098 = vmatprep.mubr.bf16.mxu0 0
      %3099 = vmatmul.mubr.bf16.gmra.mrb[0].mxu0 %v2871
      %v3100 = vpop.f32.mrb[0].mxu0
      %v3101 = vadd.f32 0.0, %v3100
      %v3102 = vpop.f32.mrb[0].mxu0
      %v3103 = vpop.f32.mrb[0].mxu0
      %v3104 = vadd.f32 0.0, %v3103
      %v3105 = vpop.f32.mrb[0].mxu0
      %3106 = vmatprep.mubr.bf16.mxu0 0
      %3107 = vmatmul.mubr.bf16.gmra.mrb[0].mxu0 %v2874
      %v3108 = vpop.f32.mrb[0].mxu0
      %v3109 = vadd.f32 0.0, %v3108
      %v3110 = vpop.f32.mrb[0].mxu0
      %v3111 = vpop.f32.mrb[0].mxu0
      %v3112 = vadd.f32 0.0, %v3111
      %v3113 = vpop.f32.mrb[0].mxu0
      %3114 = vmatprep.mubr.bf16.mxu0 0
      %3115 = vmatmul.mubr.bf16.gmra.mrb[0].mxu0 %v2877
      %v3116 = vpop.f32.mrb[0].mxu0
      %v3117 = vadd.f32 0.0, %v3116
      %v3118 = vpop.f32.mrb[0].mxu0
      %v3119 = vpop.f32.mrb[0].mxu0
      %v3120 = vadd.f32 0.0, %v3119
      %v3121 = vpop.f32.mrb[0].mxu0
      %3122 = vmatprep.mubr.bf16.mxu0 0
      %3123 = vmatmul.mubr.bf16.gmra.mrb[0].mxu0 %v2880
      %v3124 = vpop.f32.mrb[0].mxu0
      %v3125 = vadd.f32 0.0, %v3124
      %v3126 = vpop.f32.mrb[0].mxu0
      %v3127 = vpop.f32.mrb[0].mxu0
      %v3128 = vadd.f32 0.0, %v3127
      %v3129 = vpop.f32.mrb[0].mxu0
      %3130 = vmatprep.mubr.bf16.mxu0 0
      %3131 = vmatmul.mubr.bf16.gmra.mrb[0].mxu0 %v2883
      %v3132 = vpop.f32.mrb[0].mxu0
      %v3133 = vadd.f32 0.0, %v3132
      %v3134 = vpop.f32.mrb[0].mxu0
      %v3135 = vpop.f32.mrb[0].mxu0
      %v3136 = vadd.f32 0.0, %v3135
      %v3137 = vpop.f32.mrb[0].mxu0
      %3138 = vmatprep.mubr.bf16.mxu0 0
      %3139 = vmatmul.mubr.bf16.gmra.mrb[0].mxu0 %v2886
      %v3140 = vpop.f32.mrb[0].mxu0
      %v3141 = vadd.f32 0.0, %v3140
      %v3142 = vpop.f32.mrb[0].mxu0
      %v3143 = vpop.f32.mrb[0].mxu0
      %v3144 = vadd.f32 0.0, %v3143
      %v3145 = vpop.f32.mrb[0].mxu0
      %3146 = vmatprep.mubr.bf16.mxu0 0
      %3147 = vmatmul.mubr.bf16.gmra.mrb[0].mxu0 %v2889
      %v3148 = vpop.f32.mrb[0].mxu0
      %v3149 = vadd.f32 0.0, %v3148
      %v3150 = vpop.f32.mrb[0].mxu0
      %v3151 = vpop.f32.mrb[0].mxu0
      %v3152 = vadd.f32 0.0, %v3151
      %v3153 = vpop.f32.mrb[0].mxu0
      %3154 = vmatprep.mubr.bf16.mxu0 0
      %3155 = vmatmul.mubr.bf16.gmra.mrb[0].mxu0 %v2892
      %v3156 = vpop.f32.mrb[0].mxu0
      %v3157 = vadd.f32 0.0, %v3156
      %v3158 = vpop.f32.mrb[0].mxu0
      %v3159 = vpop.f32.mrb[0].mxu0
      %v3160 = vadd.f32 0.0, %v3159
      %v3161 = vpop.f32.mrb[0].mxu0
      %3162 = vmatprep.mubr.bf16.mxu0 0
      %3163 = vmatmul.mubr.bf16.gmra.mrb[0].mxu0 %v2895
      %v3164 = vpop.f32.mrb[0].mxu0
      %v3165 = vadd.f32 0.0, %v3164
      %v3166 = vpop.f32.mrb[0].mxu0
      %v3167 = vpop.f32.mrb[0].mxu0
      %v3168 = vadd.f32 0.0, %v3167
      %v3169 = vpop.f32.mrb[0].mxu0
      %3170 = vmatprep.mubr.bf16.mxu0 0
      %3171 = vmatmul.mubr.bf16.gmra.mrb[0].mxu0 %v2898
      %v3172 = vpop.f32.mrb[0].mxu0
      %v3173 = vadd.f32 0.0, %v3172
      %v3174 = vpop.f32.mrb[0].mxu0
      %v3175 = vpop.f32.mrb[0].mxu0
      %v3176 = vadd.f32 0.0, %v3175
      %v3177 = vpop.f32.mrb[0].mxu0
      %3178 = vmatprep.mubr.bf16.mxu0 0
      %3179 = vmatmul.mubr.bf16.gmra.mrb[0].mxu0 %v2901
      %v3180 = vpop.f32.mrb[0].mxu0
      %v3181 = vadd.f32 0.0, %v3180
      %v3182 = vpop.f32.mrb[0].mxu0
      %v3183 = vpop.f32.mrb[0].mxu0
      %v3184 = vadd.f32 0.0, %v3183
      %v3185 = vpop.f32.mrb[0].mxu0
      %3186 = vmatprep.mubr.bf16.mxu0 0
      %3187 = vmatmul.mubr.bf16.gmra.mrb[0].mxu0 %v2904
      %v3188 = vpop.f32.mrb[0].mxu0
      %v3189 = vadd.f32 0.0, %v3188
      %v3190 = vpop.f32.mrb[0].mxu0
      %v3191 = vpop.f32.mrb[0].mxu0
      %v3192 = vadd.f32 0.0, %v3191
      %v3193 = vpop.f32.mrb[0].mxu0
      %3194 = vdwg.mxu0
      %vm3195 = vcmask 64512
      %3196 = vst.msk [vmem:[%s229] sm:$0xff] %vm3195, %v2941
      %3197 = vst.msk [vmem:[%s229 + $0x8] sm:$0xff] %vm3195, %v2944
      %3198 = vst.msk [vmem:[%s229 + $0x10] sm:$0xff] %vm3195, %v2949
      %3199 = vst.msk [vmem:[%s229 + $0x18] sm:$0xff] %vm3195, %v2952
      %3200 = vst.msk [vmem:[%s229 + $0x20] sm:$0xff] %vm3195, %v2957
      %3201 = vst.msk [vmem:[%s229 + $0x28] sm:$0xff] %vm3195, %v2960
      %3202 = vst.msk [vmem:[%s229 + $0x30] sm:$0xff] %vm3195, %v2965
      %3203 = vst.msk [vmem:[%s229 + $0x38] sm:$0xff] %vm3195, %v2968
      %3204 = vst.msk [vmem:[%s229 + $0x40] sm:$0xff] %vm3195, %v2973
      %3205 = vst.msk [vmem:[%s229 + $0x48] sm:$0xff] %vm3195, %v2976
      %3206 = vst.msk [vmem:[%s229 + $0x50] sm:$0xff] %vm3195, %v2981
      %3207 = vst.msk [vmem:[%s229 + $0x58] sm:$0xff] %vm3195, %v2984
      %3208 = vst.msk [vmem:[%s229 + $0x60] sm:$0xff] %vm3195, %v2989
      %3209 = vst.msk [vmem:[%s229 + $0x68] sm:$0xff] %vm3195, %v2992
      %3210 = vst.msk [vmem:[%s229 + $0x70] sm:$0xff] %vm3195, %v2997
      %3211 = vst.msk [vmem:[%s229 + $0x78] sm:$0xff] %vm3195, %v3000
      %3212 = vst.msk [vmem:[%s229 + $0x80] sm:$0xff] %vm3195, %v3005
      %3213 = vst.msk [vmem:[%s229 + $0x88] sm:$0xff] %vm3195, %v3008
      %3214 = vst.msk [vmem:[%s229 + $0x90] sm:$0xff] %vm3195, %v3013
      %3215 = vst.msk [vmem:[%s229 + $0x98] sm:$0xff] %vm3195, %v3016
      %3216 = vst.msk [vmem:[%s229 + $0xa0] sm:$0xff] %vm3195, %v3021
      %3217 = vst.msk [vmem:[%s229 + $0xa8] sm:$0xff] %vm3195, %v3024
      %3218 = vst.msk [vmem:[%s229 + $0xb0] sm:$0xff] %vm3195, %v3029
      %3219 = vst.msk [vmem:[%s229 + $0xb8] sm:$0xff] %vm3195, %v3032
      %3220 = vst.msk [vmem:[%s229 + $0xc0] sm:$0xff] %vm3195, %v3037
      %3221 = vst.msk [vmem:[%s229 + $0xc8] sm:$0xff] %vm3195, %v3040
      %3222 = vst.msk [vmem:[%s229 + $0xd0] sm:$0xff] %vm3195, %v3045
      %3223 = vst.msk [vmem:[%s229 + $0xd8] sm:$0xff] %vm3195, %v3048
      %3224 = vst.msk [vmem:[%s229 + $0xe0] sm:$0xff] %vm3195, %v3053
      %3225 = vst.msk [vmem:[%s229 + $0xe8] sm:$0xff] %vm3195, %v3056
      %3226 = vst.msk [vmem:[%s229 + $0xf0] sm:$0xff] %vm3195, %v3061
      %3227 = vst.msk [vmem:[%s229 + $0xf8] sm:$0xff] %vm3195, %v3064
      %3228 = vst.msk [vmem:[%s229 + $0x100] sm:$0xff] %vm3195, %v3069
      %3229 = vst.msk [vmem:[%s229 + $0x108] sm:$0xff] %vm3195, %v3072
      %3230 = vst.msk [vmem:[%s229 + $0x110] sm:$0xff] %vm3195, %v3077
      %3231 = vst.msk [vmem:[%s229 + $0x118] sm:$0xff] %vm3195, %v3080
      %3232 = vst.msk [vmem:[%s229 + $0x120] sm:$0xff] %vm3195, %v3085
      %3233 = vst.msk [vmem:[%s229 + $0x128] sm:$0xff] %vm3195, %v3088
      %3234 = vst.msk [vmem:[%s229 + $0x130] sm:$0xff] %vm3195, %v3093
      %3235 = vst.msk [vmem:[%s229 + $0x138] sm:$0xff] %vm3195, %v3096
      %3236 = vst.msk [vmem:[%s229 + $0x140] sm:$0xff] %vm3195, %v3101
      %3237 = vst.msk [vmem:[%s229 + $0x148] sm:$0xff] %vm3195, %v3104
      %3238 = vst.msk [vmem:[%s229 + $0x150] sm:$0xff] %vm3195, %v3109
      %3239 = vst.msk [vmem:[%s229 + $0x158] sm:$0xff] %vm3195, %v3112
      %3240 = vst.msk [vmem:[%s229 + $0x160] sm:$0xff] %vm3195, %v3117
      %3241 = vst.msk [vmem:[%s229 + $0x168] sm:$0xff] %vm3195, %v3120
      %3242 = vst.msk [vmem:[%s229 + $0x170] sm:$0xff] %vm3195, %v3125
      %3243 = vst.msk [vmem:[%s229 + $0x178] sm:$0xff] %vm3195, %v3128
      %3244 = vst.msk [vmem:[%s229 + $0x180] sm:$0xff] %vm3195, %v3133
      %3245 = vst.msk [vmem:[%s229 + $0x188] sm:$0xff] %vm3195, %v3136
      %3246 = vst.msk [vmem:[%s229 + $0x190] sm:$0xff] %vm3195, %v3141
      %3247 = vst.msk [vmem:[%s229 + $0x198] sm:$0xff] %vm3195, %v3144
      %3248 = vst.msk [vmem:[%s229 + $0x1a0] sm:$0xff] %vm3195, %v3149
      %3249 = vst.msk [vmem:[%s229 + $0x1a8] sm:$0xff] %vm3195, %v3152
      %3250 = vst.msk [vmem:[%s229 + $0x1b0] sm:$0xff] %vm3195, %v3157
      %3251 = vst.msk [vmem:[%s229 + $0x1b8] sm:$0xff] %vm3195, %v3160
      %3252 = vst.msk [vmem:[%s229 + $0x1c0] sm:$0xff] %vm3195, %v3165
      %3253 = vst.msk [vmem:[%s229 + $0x1c8] sm:$0xff] %vm3195, %v3168
      %3254 = vst.msk [vmem:[%s229 + $0x1d0] sm:$0xff] %vm3195, %v3173
      %3255 = vst.msk [vmem:[%s229 + $0x1d8] sm:$0xff] %vm3195, %v3176
      %3256 = vst.msk [vmem:[%s229 + $0x1e0] sm:$0xff] %vm3195, %v3181
      %3257 = vst.msk [vmem:[%s229 + $0x1e8] sm:$0xff] %vm3195, %v3184
      %3258 = vst.msk [vmem:[%s229 + $0x1f0] sm:$0xff] %vm3195, %v3189
      %3259 = vst.msk [vmem:[%s229 + $0x1f8] sm:$0xff] %vm3195, %v3192
      %s3260 = smul.u32 64, %s16
      %p3261 = scmp.lt.s32.totalorder %s3260, 127
      %s3262 = scalar_select %p3261, %s3260, 127
      %s3263 = smul.addr %s3262, 8
      %s3264 = scalar_lea.vmem %s5, %s3263
      // Predicated region
      $region41: #{aux_head_forward.2} parent=39 // pred_check
        %p3265 = pneg %p144
      $region42: #{aux_head_forward.2} parent=39 // pred_check_branch
        %3267 = sbr.rel (%p3265) target = $region44
      $region43: #{aux_head_forward.2} parent=39 // pred_region
        %s3268 = smul.u32 64, %s16
      $region44: #{aux_head_forward.2} parent=39 // pred_fallthru
        _
    $region40: #{aux_head_forward.2} parent=5 // pred_fallthru
      _
    %p3269 = scmp.le.s32.totalorder 2, %s11
    // Predicated region
    $region45: #{aux_head_forward.2} parent=5 // pred_check
      %p3270 = pneg %p3269
    $region46: #{aux_head_forward.2} parent=5 // pred_check_branch
      %3272 = sbr.rel (%p3270) target = $region48
    $region47: #{aux_head_forward.2} parent=5 // pred_region
      %s3273 = ssub.s32 %s11, 2
      // Predicated region
      $region49: #{aux_head_forward.2} parent=47 // pred_check
        %p3274 = pneg %p150
      $region50: #{aux_head_forward.2} parent=47 // pred_check_branch
        %3276 = sbr.rel (%p3274) target = $region52
      $region51: #{aux_head_forward.2} parent=47 // pred_region
        %s3277 = smul.u32 64, %s17
        %p3278 = scmp.lt.s32.totalorder %s3277, 127
        %s3279 = scalar_select %p3278, %s3277, 127
        %s3280 = smul.addr %s3279, 8
        %s3281 = scalar_lea.vmem %s5, %s3280
      $region52: #{aux_head_forward.2} parent=47 // pred_fallthru
        _
    $region48: #{aux_head_forward.2} parent=5 // pred_fallthru
      _
  $region6: #{aux_head_forward.2} parent=0 // loop_footer
    %s15 = sadd.s32 1, %s11
  $region7: #{aux_head_forward.2} parent=0 // loop_footer_branch
    %10 = sbr.rel target = $region3
  $region8: #{aux_head_forward.2} parent=0 // loop_exit
    _

// kernel: aux_head_forward.3
$region0: #{aux_head_forward.3}
  #allocation0 [shape = 'u32[]', space=smem, size = 0x4, offset = 0x4, fixed_abs, tag = 'smem constant byte address 0x4 - core index']
  #allocation1 [shape = 'u32[144,128]{1,0:T(1,128)}', space=vmem, size = 0x12000, scoped, tag = 'internal scratch']
  %s0 = inlined_call_operand.vmem [shape: f32[64,128], index: 0, kind: input, shape index: {}]
  %s1 = inlined_call_operand.vmem [shape: bf16[32,16], index: 1, kind: input, shape index: {}]
  %s2 = inlined_call_operand.vmem [shape: bf16[128,256], index: 2, kind: input, shape index: {}]
  %s3 = inlined_call_operand.vmem [shape: f32[128,256], index: 3, kind: output, shape index: {}]
  %s4 = sld [smem:[#allocation0]]
  $region45: #{aux_head_forward.3} parent=0
    _
  %s6 = ssub.s32 1, %s4
  %s7 = scalar_select 0, %s6, %s4
  loop: start=0, step=1, limit=4
  $region2: #{aux_head_forward.3} parent=0 // loop_pre_header
    _
  $region3: #{aux_head_forward.3} parent=0 // loop_header
    %s9 = sphi 0, %s13
    %p10 = scmp.ge.s32.totalorder %s9, 4
    %s19 = sphi 0, %s21
    %s22 = sphi 0, %s19
    %s23 = sphi 0, %s22
    %s39 = sphi 0, %s23
    %s43 = sphi 0, %s43
    %s45 = sphi 0, %s43
    %s46 = sphi 0, %s45
    %s60 = sphi 0, %s46
    %s64 = sphi 0, %s64
    %s66 = sphi 0, %s64
    %s67 = sphi 0, %s66
    %s81 = sphi 0, %s67
    %s87 = sphi 0, %s89
    %s90 = sphi 0, %s87
    %s91 = sphi 0, %s90
    %s107 = sphi 0, %s91
  $region4: #{aux_head_forward.3} parent=0 // loop_header_branch
    %12 = sbr.rel (%p10) target = $region8
  $region5: #{aux_head_forward.3} parent=0 // loop_body
    %s14 = ssub.s32 %s9, 1
    %s15 = ssub.s32 %s9, 2
    %s16 = sadd.s32 %s9, 1
    %s17 = ssub.s32 %s9, %s16
    %p18 = scmp.eq.s32.totalorder %s17, 0
    %s20 = sadd.s32 %s19, 1
    %s21 = scalar_select %p18, %s19, %s20
    %p24 = pneg %p18
    %p25 = scmp.eq.s32.totalorder %s9, 1
    %p26 = por %p24, %p25
    %p27 = scmp.ne.s32.totalorder %s19, %s22
    %p28 = scmp.eq.s32.totalorder %s9, 0
    %p29 = por %p27, %p28
    %p30 = scmp.ne.s32.totalorder %s19, %s22
    %p31 = scmp.eq.s32.totalorder %s14, 1
    %p32 = por %p30, %p31
    %p33 = scmp.ne.s32.totalorder %s22, %s23
    %p34 = scmp.eq.s32.totalorder %s14, 0
    %p35 = por %p33, %p34
    %p36 = scmp.ne.s32.totalorder %s22, %s23
    %p37 = scmp.eq.s32.totalorder %s15, 1
    %p38 = por %p36, %p37
    %p40 = scmp.ne.s32.totalorder %s23, %s39
    %p41 = scmp.eq.s32.totalorder %s15, 0
    %p42 = por %p40, %p41
    %s44 = sadd.s32 %s43, 1
    %p47 = scmp.eq.s32.totalorder %s9, 1
    %p48 = scmp.ne.s32.totalorder %s43, %s45
    %p49 = scmp.eq.s32.totalorder %s9, 0
    %p50 = por %p48, %p49
    %p51 = scmp.ne.s32.totalorder %s43, %s45
    %p52 = scmp.eq.s32.totalorder %s14, 1
    %p53 = por %p51, %p52
    %p54 = scmp.ne.s32.totalorder %s45, %s46
    %p55 = scmp.eq.s32.totalorder %s14, 0
    %p56 = por %p54, %p55
    %p57 = scmp.ne.s32.totalorder %s45, %s46
    %p58 = scmp.eq.s32.totalorder %s15, 1
    %p59 = por %p57, %p58
    %p61 = scmp.ne.s32.totalorder %s46, %s60
    %p62 = scmp.eq.s32.totalorder %s15, 0
    %p63 = por %p61, %p62
    %s65 = sadd.s32 %s64, 1
    %p68 = scmp.eq.s32.totalorder %s9, 1
    %p69 = scmp.ne.s32.totalorder %s64, %s66
    %p70 = scmp.eq.s32.totalorder %s9, 0
    %p71 = por %p69, %p70
    %p72 = scmp.ne.s32.totalorder %s64, %s66
    %p73 = scmp.eq.s32.totalorder %s14, 1
    %p74 = por %p72, %p73
    %p75 = scmp.ne.s32.totalorder %s66, %s67
    %p76 = scmp.eq.s32.totalorder %s14, 0
    %p77 = por %p75, %p76
    %p78 = scmp.ne.s32.totalorder %s66, %s67
    %p79 = scmp.eq.s32.totalorder %s15, 1
    %p80 = por %p78, %p79
    %p82 = scmp.ne.s32.totalorder %s67, %s81
    %p83 = scmp.eq.s32.totalorder %s15, 0
    %p84 = por %p82, %p83
    %s85 = ssub.s32 %s9, %s16
    %p86 = scmp.eq.s32.totalorder %s85, 0
    %s88 = sadd.s32 %s87, 1
    %s89 = scalar_select %p86, %s87, %s88
    %p92 = pneg %p86
    %p93 = scmp.eq.s32.totalorder %s9, 1
    %p94 = por %p92, %p93
    %p95 = scmp.ne.s32.totalorder %s87, %s90
    %p96 = scmp.eq.s32.totalorder %s9, 0
    %p97 = por %p95, %p96
    %p98 = scmp.ne.s32.totalorder %s87, %s90
    %p99 = scmp.eq.s32.totalorder %s14, 1
    %p100 = por %p98, %p99
    %p101 = scmp.ne.s32.totalorder %s90, %s91
    %p102 = scmp.eq.s32.totalorder %s14, 0
    %p103 = por %p101, %p102
    %p104 = scmp.ne.s32.totalorder %s90, %s91
    %p105 = scmp.eq.s32.totalorder %s15, 1
    %p106 = por %p104, %p105
    %p108 = scmp.ne.s32.totalorder %s91, %s107
    %p109 = scmp.eq.s32.totalorder %s15, 0
    %p110 = por %p108, %p109
    %p111 = scmp.le.s32.totalorder 1, %s9
    %p112 = scmp.lt.s32.totalorder %s9, 3
    %p113 = pnand %p111, %p112
    %p114 = pneg %p113
    // Predicated region
    $region9: #{aux_head_forward.3} parent=5 // pred_check
      _
    $region10: #{aux_head_forward.3} parent=5 // pred_check_branch
      %116 = sbr.rel (%p113) target = $region12
    $region11: #{aux_head_forward.3} parent=5 // pred_region
      %s117 = ssub.s32 %s9, 1
      // Predicated region
      $region13: #{aux_head_forward.3} parent=11 // pred_check
        %p118 = pneg %p56
      $region14: #{aux_head_forward.3} parent=11 // pred_check_branch
        %120 = sbr.rel (%p118) target = $region16
      $region15: #{aux_head_forward.3} parent=11 // pred_region
        _
      $region16: #{aux_head_forward.3} parent=11 // pred_fallthru
        _
      // Predicated region
      $region17: #{aux_head_forward.3} parent=11 // pred_check
        %p121 = pneg %p77
      $region18: #{aux_head_forward.3} parent=11 // pred_check_branch
        %123 = sbr.rel (%p121) target = $region20
      $region19: #{aux_head_forward.3} parent=11 // pred_region
        _
      $region20: #{aux_head_forward.3} parent=11 // pred_fallthru
        _
    $region12: #{aux_head_forward.3} parent=5 // pred_fallthru
      _
    %p124 = scmp.lt.s32.totalorder %s9, 2
    // Predicated region
    $region21: #{aux_head_forward.3} parent=5 // pred_check
      %p125 = pneg %p124
    $region22: #{aux_head_forward.3} parent=5 // pred_check_branch
      %127 = sbr.rel (%p125) target = $region24
    $region23: #{aux_head_forward.3} parent=5 // pred_region
      // Predicated region
      $region25: #{aux_head_forward.3} parent=23 // pred_check
        %p128 = pneg %p29
      $region26: #{aux_head_forward.3} parent=23 // pred_check_branch
        %130 = sbr.rel (%p128) target = $region28
      $region27: #{aux_head_forward.3} parent=23 // pred_region
        %s131 = smul.u32 4, %s9
        %p132 = scmp.lt.s32.totalorder %s131, 7
        %s133 = scalar_select %p132, %s131, 7
        %s134 = smul.addr %s133, 8
        %s135 = scalar_lea.vmem %s0, %s134
        %s136 = smul.u32 4, %s9
      $region28: #{aux_head_forward.3} parent=23 // pred_fallthru
        _
    $region24: #{aux_head_forward.3} parent=5 // pred_fallthru
      _
    %p137 = scmp.le.s32.totalorder 1, %s9
    %p138 = scmp.lt.s32.totalorder %s9, 3
    %p139 = pnand %p137, %p138
    %p140 = pneg %p139
    // Predicated region
    $region29: #{aux_head_forward.3} parent=5 // pred_check
      _
    $region30: #{aux_head_forward.3} parent=5 // pred_check_branch
      %142 = sbr.rel (%p139) target = $region32
    $region31: #{aux_head_forward.3} parent=5 // pred_region
      %s143 = ssub.s32 %s9, 1
      %s144 = smul.u32 4, %s14
      %p145 = scmp.lt.s32.totalorder %s144, 7
      %s146 = scalar_select %p145, %s144, 7
      %s147 = smul.addr %s146, 8
      %s148 = scalar_lea.vmem %s0, %s147
      %p149 = pneg %p35
      %p150 = pneg %p32
      %p151 = pneg %p56
      %p152 = pneg %p53
      %p153 = pneg %p77
      %p154 = pneg %p74
      %p155 = pneg %p103
      %p156 = pneg %p100
      %s157 = smul.u32 8, %s14
      %p158 = scmp.lt.s32.totalorder %s157, 15
      %s159 = scalar_select %p158, %s157, 15
      %s160 = smul.addr %s159, 2
      %s161 = smul.addr %s160, 8
      %s162 = scalar_lea.vmem %s3, %s161
      %s163 = smul.u32 4, %s14
      %p164 = scmp.lt.s32.totalorder %s163, 7
      %s165 = scalar_select %p164, %s163, 7
      %s166 = smul.addr %s165, 8
      %s167 = scalar_lea.vmem %s0, %s166
      %s168 = smul.u32 4, %s14
      %s169 = smul.u32 8, %s14
      %p170 = scmp.lt.s32.totalorder %s169, 15
      %s171 = scalar_select %p170, %s169, 15
      %s172 = smul.addr %s171, 2
      %s173 = smul.addr %s172, 8
      %s174 = scalar_lea.vmem %s3, %s173
      %s175 = smul.u32 8, %s14
      %v177 = vld [vmem:[%s167] sm:$0xff]
      %v178 = vld [vmem:[%s167 + $0x8] sm:$0xff]
      %v179 = vld [vmem:[%s167 + $0x10] sm:$0xff]
      %v180 = vld [vmem:[%s167 + $0x18] sm:$0xff]
      %v181 = vpack.c.bf16 %v178, %v177
      %v182 = vpack.c.bf16 %v180, %v179
      %v183 = vld [vmem:[%s2] sm:$0xff]
      %v184 = vld [vmem:[%s2 + $0x8] sm:$0xff]
      %v185 = vld [vmem:[%s2 + $0x10] sm:$0xff]
      %v186 = vld [vmem:[%s2 + $0x18] sm:$0xff]
      %v187 = vld [vmem:[%s2 + $0x20] sm:$0xff]
      %v188 = vld [vmem:[%s2 + $0x28] sm:$0xff]
      %v189 = vld [vmem:[%s2 + $0x30] sm:$0xff]
      %v190 = vld [vmem:[%s2 + $0x38] sm:$0xff]
      %v191 = vld [vmem:[%s2 + $0x40] sm:$0xff]
      %v192 = vld [vmem:[%s2 + $0x48] sm:$0xff]
      %v193 = vld [vmem:[%s2 + $0x50] sm:$0xff]
      %v194 = vld [vmem:[%s2 + $0x58] sm:$0xff]
      %v195 = vld [vmem:[%s2 + $0x60] sm:$0xff]
      %v196 = vld [vmem:[%s2 + $0x68] sm:$0xff]
      %v197 = vld [vmem:[%s2 + $0x70] sm:$0xff]
      %v198 = vld [vmem:[%s2 + $0x78] sm:$0xff]
      %v215 = vunpack.c.l.b16 %v183
      %v216 = vunpack.c.h.b16 %v183
      %v217 = vunpack.c.l.b16 %v184
      %v218 = vunpack.c.h.b16 %v184
      %v219 = vunpack.c.l.b16 %v185
      %v220 = vunpack.c.h.b16 %v185
      %v221 = vunpack.c.l.b16 %v186
      %v222 = vunpack.c.h.b16 %v186
      %v223 = vunpack.c.l.b16 %v187
      %v224 = vunpack.c.h.b16 %v187
      %v225 = vunpack.c.l.b16 %v188
      %v226 = vunpack.c.h.b16 %v188
      %v227 = vunpack.c.l.b16 %v189
      %v228 = vunpack.c.h.b16 %v189
      %v229 = vunpack.c.l.b16 %v190
      %v230 = vunpack.c.h.b16 %v190
      %v231 = vunpack.c.l.b16 %v191
      %v232 = vunpack.c.h.b16 %v191
      %v233 = vunpack.c.l.b16 %v192
      %v234 = vunpack.c.h.b16 %v192
      %v235 = vunpack.c.l.b16 %v193
      %v236 = vunpack.c.h.b16 %v193
      %v237 = vunpack.c.l.b16 %v194
      %v238 = vunpack.c.h.b16 %v194
      %v239 = vunpack.c.l.b16 %v195
      %v240 = vunpack.c.h.b16 %v195
      %v241 = vunpack.c.l.b16 %v196
      %v242 = vunpack.c.h.b16 %v196
      %v243 = vunpack.c.l.b16 %v197
      %v244 = vunpack.c.h.b16 %v197
      %v245 = vunpack.c.l.b16 %v198
      %v246 = vunpack.c.h.b16 %v198
      %v247 = vpack.c.b16 %v217, %v215
      %v248 = vpack.c.b16 %v218, %v216
      %v249 = vpack.c.b16 %v221, %v219
      %v250 = vpack.c.b16 %v222, %v220
      %v251 = vpack.c.b16 %v225, %v223
      %v252 = vpack.c.b16 %v226, %v224
      %v253 = vpack.c.b16 %v229, %v227
      %v254 = vpack.c.b16 %v230, %v228
      %v255 = vpack.c.b16 %v233, %v231
      %v256 = vpack.c.b16 %v234, %v232
      %v257 = vpack.c.b16 %v237, %v235
      %v258 = vpack.c.b16 %v238, %v236
      %v259 = vpack.c.b16 %v241, %v239
      %v260 = vpack.c.b16 %v242, %v240
      %v261 = vpack.c.b16 %v245, %v243
      %v262 = vpack.c.b16 %v246, %v244
      %279 = vmatprep.subr.bf16.mxu0 %v248
      %280 = vmatpush1.bf16.msra.mxu0 %v247
      %281 = vmatprep.subr.bf16.mxu0 %v250
      %282 = vmatpush1.bf16.msra.mxu0 %v249
      %283 = vmatprep.subr.bf16.mxu0 %v252
      %284 = vmatpush1.bf16.msra.mxu0 %v251
      %285 = vmatprep.subr.bf16.mxu0 %v254
      %286 = vmatpush1.bf16.msra.mxu0 %v253
      %287 = vmatprep.subr.bf16.mxu0 %v256
      %288 = vmatpush1.bf16.msra.mxu0 %v255
      %289 = vmatprep.subr.bf16.mxu0 %v258
      %290 = vmatpush1.bf16.msra.mxu0 %v257
      %291 = vmatprep.subr.bf16.mxu0 %v260
      %292 = vmatpush1.bf16.msra.mxu0 %v259
      %293 = vmatprep.subr.bf16.mxu0 %v262
      %294 = vmatpush1.bf16.msra.mxu0 %v261
      %295 = vmatprep.subr.bf16.mxu0 0
      %296 = vmatpush1.bf16.msra.mxu0 0
      %297 = vmatprep.subr.bf16.mxu0 0
      %298 = vmatpush1.bf16.msra.mxu0 0
      %299 = vmatprep.subr.bf16.mxu0 0
      %300 = vmatpush1.bf16.msra.mxu0 0
      %301 = vmatprep.subr.bf16.mxu0 0
      %302 = vmatpush1.bf16.msra.mxu0 0
      %303 = vmatprep.subr.bf16.mxu0 0
      %304 = vmatpush1.bf16.msra.mxu0 0
      %305 = vmatprep.subr.bf16.mxu0 0
      %306 = vmatpush1.bf16.msra.mxu0 0
      %307 = vmatprep.subr.bf16.mxu0 0
      %308 = vmatpush1.bf16.msra.mxu0 0
      %309 = vmatprep.subr.bf16.mxu0 0
      %310 = vmatpush1.bf16.msra.mxu0 0
      %311 = vmatprep.mubr.bf16.mxu0 0
      %312 = vmatmul.mubr.bf16.gmra.mrb[0].mxu0 %v181
      %v313 = vpop.f32.mrb[0].mxu0
      %v314 = vadd.f32 0.0, %v313
      %v315 = vpop.f32.mrb[0].mxu0
      %v316 = vadd.f32 0.0, %v315
      %v317 = vpop.f32.mrb[0].mxu0
      %v318 = vadd.f32 0.0, %v317
      %v319 = vpop.f32.mrb[0].mxu0
      %v320 = vadd.f32 0.0, %v319
      %321 = vmatprep.mubr.bf16.mxu0 0
      %322 = vmatmul.mubr.bf16.gmra.mrb[0].mxu0 %v182
      %v323 = vpop.f32.mrb[0].mxu0
      %v324 = vadd.f32 0.0, %v323
      %v325 = vpop.f32.mrb[0].mxu0
      %v326 = vadd.f32 0.0, %v325
      %v327 = vpop.f32.mrb[0].mxu0
      %v328 = vadd.f32 0.0, %v327
      %v329 = vpop.f32.mrb[0].mxu0
      %v330 = vadd.f32 0.0, %v329
      %331 = vdwg.mxu0
      %v332 = vpack.c.bf16 %v318, %v314
      %v333 = vpack.c.bf16 %v320, %v316
      %v334 = vpack.c.bf16 %v328, %v324
      %v335 = vpack.c.bf16 %v330, %v326
      %v336 = vld [vmem:[%s1] sm:$0xf]
      %v337 = vld [vmem:[%s1 + $0x4] sm:$0xf]
      %v338 = vld [vmem:[%s1 + $0x8] sm:$0xf]
      %v339 = vld [vmem:[%s1 + $0xc] sm:$0xf]
      %v344 = vunpack.c.l.b16 %v336
      %v345 = vunpack.c.l.b16 %v337
      %v346 = vunpack.c.l.b16 %v338
      %v347 = vunpack.c.l.b16 %v339
      %v348 = vpack.c.b16 %v345, %v344
      %v349 = vpack.c.b16 %v347, %v346
      %vm350 = vcmask 130048
      %v352 = vsel %vm350, %v348, 0
      %v355 = vsel %vm350, %v349, 0
      %357 = vmatprep.subr.bf16.mxu0 %v333
      %358 = vmatpush1.bf16.msra.mxu0 %v332
      %359 = vmatprep.subr.bf16.mxu0 0
      %360 = vmatpush1.bf16.msra.mxu0 0
      %361 = vmatprep.subr.bf16.mxu0 0
      %362 = vmatpush1.bf16.msra.mxu0 0
      %363 = vmatprep.subr.bf16.mxu0 0
      %364 = vmatpush1.bf16.msra.mxu0 0
      %365 = vmatprep.subr.bf16.mxu0 0
      %366 = vmatpush1.bf16.msra.mxu0 0
      %367 = vmatprep.subr.bf16.mxu0 0
      %368 = vmatpush1.bf16.msra.mxu0 0
      %369 = vmatprep.subr.bf16.mxu0 0
      %370 = vmatpush1.bf16.msra.mxu0 0
      %371 = vmatprep.subr.bf16.mxu0 0
      %372 = vmatpush1.bf16.msra.mxu0 0
      %373 = vmatprep.subr.bf16.mxu0 0
      %374 = vmatpush1.bf16.msra.mxu0 0
      %375 = vmatprep.subr.bf16.mxu0 0
      %376 = vmatpush1.bf16.msra.mxu0 0
      %377 = vmatprep.subr.bf16.mxu0 0
      %378 = vmatpush1.bf16.msra.mxu0 0
      %379 = vmatprep.subr.bf16.mxu0 0
      %380 = vmatpush1.bf16.msra.mxu0 0
      %381 = vmatprep.subr.bf16.mxu0 0
      %382 = vmatpush1.bf16.msra.mxu0 0
      %383 = vmatprep.subr.bf16.mxu0 0
      %384 = vmatpush1.bf16.msra.mxu0 0
      %385 = vmatprep.subr.bf16.mxu0 0
      %386 = vmatpush1.bf16.msra.mxu0 0
      %387 = vmatprep.subr.bf16.mxu0 0
      %388 = vmatpush1.bf16.msra.mxu0 0
      %389 = vmatprep.mubr.bf16.mxu0 0
      %390 = vmatmul.mubr.bf16.gmra.mrb[0].mxu0 %v352
      %v391 = vpop.f32.mrb[0].mxu0
      %v392 = vadd.f32 0.0, %v391
      %v393 = vpop.f32.mrb[0].mxu0
      %v394 = vadd.f32 0.0, %v393
      %v395 = vpop.f32.mrb[0].mxu0
      %v396 = vadd.f32 0.0, %v395
      %v397 = vpop.f32.mrb[0].mxu0
      %v398 = vadd.f32 0.0, %v397
      %399 = vmatprep.mubr.bf16.mxu0 0
      %400 = vmatmul.mubr.bf16.gmra.mrb[0].mxu0 %v355
      %v401 = vpop.f32.mrb[0].mxu0
      %v402 = vadd.f32 0.0, %v401
      %v403 = vpop.f32.mrb[0].mxu0
      %v404 = vadd.f32 0.0, %v403
      %v405 = vpop.f32.mrb[0].mxu0
      %v406 = vadd.f32 0.0, %v405
      %v407 = vpop.f32.mrb[0].mxu0
      %v408 = vadd.f32 0.0, %v407
      %409 = vdwg.mxu0
      %410 = vst [vmem:[%s174] sm:$0xff] %v392
      %411 = vst [vmem:[%s174 + $0x8] sm:$0xff] %v394
      %412 = vst [vmem:[%s174 + $0x10] sm:$0xff] %v396
      %413 = vst [vmem:[%s174 + $0x18] sm:$0xff] %v398
      %414 = vst [vmem:[%s174 + $0x20] sm:$0xff] %v402
      %415 = vst [vmem:[%s174 + $0x28] sm:$0xff] %v404
      %416 = vst [vmem:[%s174 + $0x30] sm:$0xff] %v406
      %417 = vst [vmem:[%s174 + $0x38] sm:$0xff] %v408
      %418 = vmatprep.subr.bf16.mxu0 %v335
      %419 = vmatpush1.bf16.msra.mxu0 %v334
      %420 = vmatprep.subr.bf16.mxu0 0
      %421 = vmatpush1.bf16.msra.mxu0 0
      %422 = vmatprep.subr.bf16.mxu0 0
      %423 = vmatpush1.bf16.msra.mxu0 0
      %424 = vmatprep.subr.bf16.mxu0 0
      %425 = vmatpush1.bf16.msra.mxu0 0
      %426 = vmatprep.subr.bf16.mxu0 0
      %427 = vmatpush1.bf16.msra.mxu0 0
      %428 = vmatprep.subr.bf16.mxu0 0
      %429 = vmatpush1.bf16.msra.mxu0 0
      %430 = vmatprep.subr.bf16.mxu0 0
      %431 = vmatpush1.bf16.msra.mxu0 0
      %432 = vmatprep.subr.bf16.mxu0 0
      %433 = vmatpush1.bf16.msra.mxu0 0
      %434 = vmatprep.subr.bf16.mxu0 0
      %435 = vmatpush1.bf16.msra.mxu0 0
      %436 = vmatprep.subr.bf16.mxu0 0
      %437 = vmatpush1.bf16.msra.mxu0 0
      %438 = vmatprep.subr.bf16.mxu0 0
      %439 = vmatpush1.bf16.msra.mxu0 0
      %440 = vmatprep.subr.bf16.mxu0 0
      %441 = vmatpush1.bf16.msra.mxu0 0
      %442 = vmatprep.subr.bf16.mxu0 0
      %443 = vmatpush1.bf16.msra.mxu0 0
      %444 = vmatprep.subr.bf16.mxu0 0
      %445 = vmatpush1.bf16.msra.mxu0 0
      %446 = vmatprep.subr.bf16.mxu0 0
      %447 = vmatpush1.bf16.msra.mxu0 0
      %448 = vmatprep.subr.bf16.mxu0 0
      %449 = vmatpush1.bf16.msra.mxu0 0
      %450 = vmatprep.mubr.bf16.mxu0 0
      %451 = vmatmul.mubr.bf16.gmra.mrb[0].mxu0 %v352
      %v452 = vpop.f32.mrb[0].mxu0
      %v453 = vadd.f32 0.0, %v452
      %v454 = vpop.f32.mrb[0].mxu0
      %v455 = vadd.f32 0.0, %v454
      %v456 = vpop.f32.mrb[0].mxu0
      %v457 = vadd.f32 0.0, %v456
      %v458 = vpop.f32.mrb[0].mxu0
      %v459 = vadd.f32 0.0, %v458
      %460 = vmatprep.mubr.bf16.mxu0 0
      %461 = vmatmul.mubr.bf16.gmra.mrb[0].mxu0 %v355
      %v462 = vpop.f32.mrb[0].mxu0
      %v463 = vadd.f32 0.0, %v462
      %v464 = vpop.f32.mrb[0].mxu0
      %v465 = vadd.f32 0.0, %v464
      %v466 = vpop.f32.mrb[0].mxu0
      %v467 = vadd.f32 0.0, %v466
      %v468 = vpop.f32.mrb[0].mxu0
      %v469 = vadd.f32 0.0, %v468
      %470 = vdwg.mxu0
      %471 = vst [vmem:[%s174 + $0x40] sm:$0xff] %v453
      %472 = vst [vmem:[%s174 + $0x48] sm:$0xff] %v455
      %473 = vst [vmem:[%s174 + $0x50] sm:$0xff] %v457
      %474 = vst [vmem:[%s174 + $0x58] sm:$0xff] %v459
      %475 = vst [vmem:[%s174 + $0x60] sm:$0xff] %v463
      %476 = vst [vmem:[%s174 + $0x68] sm:$0xff] %v465
      %477 = vst [vmem:[%s174 + $0x70] sm:$0xff] %v467
      %478 = vst [vmem:[%s174 + $0x78] sm:$0xff] %v469
      %s479 = smul.u32 8, %s14
      %p480 = scmp.lt.s32.totalorder %s479, 15
      %s481 = scalar_select %p480, %s479, 15
      %s482 = smul.addr %s481, 2
      %s483 = smul.addr %s482, 8
      %s484 = scalar_lea.vmem %s3, %s483
      // Predicated region
      $region33: #{aux_head_forward.3} parent=31 // pred_check
        %p485 = pneg %p100
      $region34: #{aux_head_forward.3} parent=31 // pred_check_branch
        %487 = sbr.rel (%p485) target = $region36
      $region35: #{aux_head_forward.3} parent=31 // pred_region
        %s488 = smul.u32 8, %s14
      $region36: #{aux_head_forward.3} parent=31 // pred_fallthru
        _
    $region32: #{aux_head_forward.3} parent=5 // pred_fallthru
      _
    %p489 = scmp.le.s32.totalorder 2, %s9
    // Predicated region
    $region37: #{aux_head_forward.3} parent=5 // pred_check
      %p490 = pneg %p489
    $region38: #{aux_head_forward.3} parent=5 // pred_check_branch
      %492 = sbr.rel (%p490) target = $region40
    $region39: #{aux_head_forward.3} parent=5 // pred_region
      %s493 = ssub.s32 %s9, 2
      // Predicated region
      $region41: #{aux_head_forward.3} parent=39 // pred_check
        %p494 = pneg %p106
      $region42: #{aux_head_forward.3} parent=39 // pred_check_branch
        %496 = sbr.rel (%p494) target = $region44
      $region43: #{aux_head_forward.3} parent=39 // pred_region
        %s497 = smul.u32 8, %s15
        %p498 = scmp.lt.s32.totalorder %s497, 15
        %s499 = scalar_select %p498, %s497, 15
        %s500 = smul.addr %s499, 2
        %s501 = smul.addr %s500, 8
        %s502 = scalar_lea.vmem %s3, %s501
      $region44: #{aux_head_forward.3} parent=39 // pred_fallthru
        _
    $region40: #{aux_head_forward.3} parent=5 // pred_fallthru
      _
  $region6: #{aux_head_forward.3} parent=0 // loop_footer
    %s13 = sadd.s32 1, %s9
  $region7: #{aux_head_forward.3} parent=0 // loop_footer_branch
    %8 = sbr.rel target = $region3
  $region8: #{aux_head_forward.3} parent=0 // loop_exit
    _

</llo_original>
